<compile_context>
chip_gen: v5e
topology: v5e:2x2
jax: 0.10.0
libtpu: 0.0.40
codegen_flags: <defaults>
</compile_context>

<pallas_src>
import functools

import jax
import jax.numpy as jnp
from jax import lax
from jax.experimental import pallas as pl
from jax.experimental.pallas import tpu as pltpu

HIDDEN = 64          # hidden units of fc1/fc2
COLS = 512           # lane-dense width (multiple of 128)
MAX_TILE_ROWS = 256  # 256*512*4 B = 512 KiB per pipelined buffer
CHUNK_ROWS = 16      # rows per in-kernel chunk -> 16*512 f32 = 8 vregs live


def _round_up(a, b):
    return ((a + b - 1) // b) * b


def mlp_kernel(params_ref, x_ref, o_ref, *, tile_rows):
    # params_ref: SMEM f32[3*HIDDEN + 1] = [w1(64) | b1(64) | w2(64) | b2(1)]
    # x_ref, o_ref: VMEM f32[tile_rows, COLS] (lane-dense batch tile)
    b2 = params_ref[3 * HIDDEN]

    @pl.loop(0, tile_rows // CHUNK_ROWS)
    def _(c):
        r0 = pl.multiple_of(c * CHUNK_ROWS, CHUNK_ROWS)
        x = x_ref[pl.ds(r0, CHUNK_ROWS), :]

        def hidden_step(j, acc):
            # Scalar (SMEM) broadcast against the lane-dense tile: pure VPU.
            h = jnp.maximum(params_ref[j] * x + params_ref[HIDDEN + j], 0.0)
            return acc + params_ref[2 * HIDDEN + j] * h

        acc = lax.fori_loop(0, HIDDEN, hidden_step, jnp.zeros_like(x),
                            unroll=True)
        o_ref[pl.ds(r0, CHUNK_ROWS), :] = (acc + b2).astype(o_ref.dtype)


def anomaly_detection_forward(x, w1, b1, w2, b2):
    """x: (N, 1).  w1: (1, 64), b1: (64,), w2: (64, 1), b2: (1,).

    Weights are the torch nn.Linear weights pre-transposed to
    (in_features, out_features); semantics match fc2(relu(fc1(x))).
    """
    n = x.shape[0]
    out_dtype = x.dtype

    # Flatten the 193-scalar parameter set into one SMEM-resident vector.
    params = jnp.concatenate([
        jnp.asarray(w1, jnp.float32).reshape(-1),   # w1[j] -> params[j]
        jnp.asarray(b1, jnp.float32).reshape(-1),   # b1[j] -> params[64 + j]
        jnp.asarray(w2, jnp.float32).reshape(-1),   # w2[j] -> params[128 + j]
        jnp.asarray(b2, jnp.float32).reshape(-1),   # b2    -> params[192]
    ])

    # Lane-dense repack: (N, 1) -> (rows, COLS), zero-padded to whole tiles.
    rows = max(CHUNK_ROWS, _round_up(pl.cdiv(n, COLS), CHUNK_ROWS))
    tile_rows = min(MAX_TILE_ROWS, rows)
    rows = _round_up(rows, tile_rows)
    num_tiles = rows // tile_rows
    padded = rows * COLS

    flat = jnp.pad(x.reshape(-1).astype(jnp.float32), (0, padded - n))
    x2d = flat.reshape(rows, COLS)

    cost = pl.CostEstimate(
        flops=5 * HIDDEN * padded,               # mul/add/max/mul/add per unit
        transcendentals=0,
        bytes_accessed=2 * 4 * padded + 4 * int(params.size),
    )

    kernel = functools.partial(mlp_kernel, tile_rows=tile_rows)
    out2d = pl.pallas_call(
        kernel,
        out_shape=jax.ShapeDtypeStruct((rows, COLS), jnp.float32),
        grid_spec=pltpu.PrefetchScalarGridSpec(
            num_scalar_prefetch=1,               # params -> SMEM, grid-resident
            grid=(num_tiles,),
            in_specs=[pl.BlockSpec((tile_rows, COLS), lambda i, p: (i, 0))],
            out_specs=pl.BlockSpec((tile_rows, COLS), lambda i, p: (i, 0)),
        ),
        compiler_params=pltpu.CompilerParams(
            dimension_semantics=("parallel",),   # megacore sharding on v7x
        ),
        cost_estimate=cost,
    )(params, x2d)

    # Drop padding and restore the (N, 1) torch layout.
    return out2d.reshape(-1)[:n].reshape(n, 1).astype(out_dtype)


def init_params(key):
    """Deterministic init mirroring nn.Linear (uniform +/- 1/sqrt(fan_in))."""
    k1, k2, k3, k4 = jax.random.split(key, 4)
    bound1 = 1.0                                  # fc1: fan_in = 1
    w1 = jax.random.uniform(k1, (1, HIDDEN), jnp.float32, -bound1, bound1)
    b1 = jax.random.uniform(k2, (HIDDEN,), jnp.float32, -bound1, bound1)
    bound2 = 1.0 / jnp.sqrt(float(HIDDEN))        # fc2: fan_in = 64
    w2 = jax.random.uniform(k3, (HIDDEN, 1), jnp.float32, -bound2, bound2)
    b2 = jax.random.uniform(k4, (1,), jnp.float32, -bound2, bound2)
    return w1, b1, w2, b2


if __name__ == "__main__":
    key = jax.random.PRNGKey(0)
    kx, kp = jax.random.split(key)

    batch = 8
    x = jax.random.normal(kx, (batch, 1), dtype=jnp.float32)
    w1, b1, w2, b2 = init_params(kp)

    out = anomaly_detection_forward(x, w1, b1, w2, b2)
    out = jax.block_until_ready(out)

    # Pure-JAX reference of the same forward pass.
    ref = jnp.maximum(x @ w1 + b1.reshape(1, HIDDEN), 0.0) @ w2 + b2.reshape(1, 1)
    assert out.shape == (batch, 1)
    assert jnp.allclose(out, ref, atol=1e-5, rtol=1e-5), float(
        jnp.max(jnp.abs(out - ref)))

    print("KERNEL_OK")
</pallas_src>

<mosaic_0001>
module attributes {stable_mosaic.version = 11 : i64} {
  func.func @mlp_kernel(%arg0: i32, %arg1: memref<193xf32, #tpu.memory_space<smem>>, %arg2: memref<16x512xf32, #tpu.memory_space<vmem>>, %arg3: memref<16x512xf32, #tpu.memory_space<vmem>>) attributes {dimension_semantics = [#tpu.dimension_semantics<parallel>], iteration_bounds = array<i64: 1>, scalar_prefetch = 1 : i64, scratch_operands = 0 : i64, tpu.core_type = #tpu.core_type<tc>, window_params = [{transform_indices = @transform_0, window_bounds = array<i64: 16, 512>}, {transform_indices = @transform_1, window_bounds = array<i64: 16, 512>}]} {
    %c192 = arith.constant 192 : index
    %0 = memref.load %arg1[%c192] : memref<193xf32, #tpu.memory_space<smem>>
    %c0_i32 = arith.constant 0 : i32
    %c1_i32 = arith.constant 1 : i32
    %1 = arith.muli %c0_i32, %c1_i32 : i32
    %c0_i32_0 = arith.constant 0 : i32
    %2 = arith.addi %c0_i32_0, %1 : i32
    %c16_i32 = arith.constant 16 : i32
    %3 = arith.muli %2, %c16_i32 : i32
    %4 = tpu.assume_multiple %3, 16 : i32
    %5 = arith.index_cast %4 : i32 to index
    %c0 = arith.constant 0 : index
    %6 = vector.load %arg2[%5, %c0] : memref<16x512xf32, #tpu.memory_space<vmem>>, vector<16x512xf32>
    %cst = arith.constant 0.000000e+00 : f32
    %7 = vector.broadcast %cst : f32 to vector<16x512xf32>
    %c0_i32_1 = arith.constant 0 : i32
    %8 = arith.index_cast %c0_i32_1 : i32 to index
    %9 = memref.load %arg1[%8] : memref<193xf32, #tpu.memory_space<smem>>
    %10 = vector.broadcast %9 : f32 to vector<16x512xf32>
    %11 = arith.mulf %10, %6 : vector<16x512xf32>
    %c64_i32 = arith.constant 64 : i32
    %12 = arith.addi %c64_i32, %c0_i32_1 : i32
    %13 = arith.index_cast %12 : i32 to index
    %14 = memref.load %arg1[%13] : memref<193xf32, #tpu.memory_space<smem>>
    %15 = vector.broadcast %14 : f32 to vector<16x512xf32>
    %16 = arith.addf %11, %15 : vector<16x512xf32>
    %cst_2 = arith.constant 0.000000e+00 : f32
    %17 = vector.broadcast %cst_2 : f32 to vector<16x512xf32>
    %18 = arith.maximumf %16, %17 : vector<16x512xf32>
    %c128_i32 = arith.constant 128 : i32
    %19 = arith.addi %c128_i32, %c0_i32_1 : i32
    %20 = arith.index_cast %19 : i32 to index
    %21 = memref.load %arg1[%20] : memref<193xf32, #tpu.memory_space<smem>>
    %22 = vector.broadcast %21 : f32 to vector<16x512xf32>
    %23 = arith.mulf %22, %18 : vector<16x512xf32>
    %24 = arith.addf %7, %23 : vector<16x512xf32>
    %c1_i32_3 = arith.constant 1 : i32
    %25 = arith.index_cast %c1_i32_3 : i32 to index
    %26 = memref.load %arg1[%25] : memref<193xf32, #tpu.memory_space<smem>>
    %27 = vector.broadcast %26 : f32 to vector<16x512xf32>
    %28 = arith.mulf %27, %6 : vector<16x512xf32>
    %c64_i32_4 = arith.constant 64 : i32
    %29 = arith.addi %c64_i32_4, %c1_i32_3 : i32
    %30 = arith.index_cast %29 : i32 to index
    %31 = memref.load %arg1[%30] : memref<193xf32, #tpu.memory_space<smem>>
    %32 = vector.broadcast %31 : f32 to vector<16x512xf32>
    %33 = arith.addf %28, %32 : vector<16x512xf32>
    %cst_5 = arith.constant 0.000000e+00 : f32
    %34 = vector.broadcast %cst_5 : f32 to vector<16x512xf32>
    %35 = arith.maximumf %33, %34 : vector<16x512xf32>
    %c128_i32_6 = arith.constant 128 : i32
    %36 = arith.addi %c128_i32_6, %c1_i32_3 : i32
    %37 = arith.index_cast %36 : i32 to index
    %38 = memref.load %arg1[%37] : memref<193xf32, #tpu.memory_space<smem>>
    %39 = vector.broadcast %38 : f32 to vector<16x512xf32>
    %40 = arith.mulf %39, %35 : vector<16x512xf32>
    %41 = arith.addf %24, %40 : vector<16x512xf32>
    %c2_i32 = arith.constant 2 : i32
    %42 = arith.index_cast %c2_i32 : i32 to index
    %43 = memref.load %arg1[%42] : memref<193xf32, #tpu.memory_space<smem>>
    %44 = vector.broadcast %43 : f32 to vector<16x512xf32>
    %45 = arith.mulf %44, %6 : vector<16x512xf32>
    %c64_i32_7 = arith.constant 64 : i32
    %46 = arith.addi %c64_i32_7, %c2_i32 : i32
    %47 = arith.index_cast %46 : i32 to index
    %48 = memref.load %arg1[%47] : memref<193xf32, #tpu.memory_space<smem>>
    %49 = vector.broadcast %48 : f32 to vector<16x512xf32>
    %50 = arith.addf %45, %49 : vector<16x512xf32>
    %cst_8 = arith.constant 0.000000e+00 : f32
    %51 = vector.broadcast %cst_8 : f32 to vector<16x512xf32>
    %52 = arith.maximumf %50, %51 : vector<16x512xf32>
    %c128_i32_9 = arith.constant 128 : i32
    %53 = arith.addi %c128_i32_9, %c2_i32 : i32
    %54 = arith.index_cast %53 : i32 to index
    %55 = memref.load %arg1[%54] : memref<193xf32, #tpu.memory_space<smem>>
    %56 = vector.broadcast %55 : f32 to vector<16x512xf32>
    %57 = arith.mulf %56, %52 : vector<16x512xf32>
    %58 = arith.addf %41, %57 : vector<16x512xf32>
    %c3_i32 = arith.constant 3 : i32
    %59 = arith.index_cast %c3_i32 : i32 to index
    %60 = memref.load %arg1[%59] : memref<193xf32, #tpu.memory_space<smem>>
    %61 = vector.broadcast %60 : f32 to vector<16x512xf32>
    %62 = arith.mulf %61, %6 : vector<16x512xf32>
    %c64_i32_10 = arith.constant 64 : i32
    %63 = arith.addi %c64_i32_10, %c3_i32 : i32
    %64 = arith.index_cast %63 : i32 to index
    %65 = memref.load %arg1[%64] : memref<193xf32, #tpu.memory_space<smem>>
    %66 = vector.broadcast %65 : f32 to vector<16x512xf32>
    %67 = arith.addf %62, %66 : vector<16x512xf32>
    %cst_11 = arith.constant 0.000000e+00 : f32
    %68 = vector.broadcast %cst_11 : f32 to vector<16x512xf32>
    %69 = arith.maximumf %67, %68 : vector<16x512xf32>
    %c128_i32_12 = arith.constant 128 : i32
    %70 = arith.addi %c128_i32_12, %c3_i32 : i32
    %71 = arith.index_cast %70 : i32 to index
    %72 = memref.load %arg1[%71] : memref<193xf32, #tpu.memory_space<smem>>
    %73 = vector.broadcast %72 : f32 to vector<16x512xf32>
    %74 = arith.mulf %73, %69 : vector<16x512xf32>
    %75 = arith.addf %58, %74 : vector<16x512xf32>
    %c4_i32 = arith.constant 4 : i32
    %76 = arith.index_cast %c4_i32 : i32 to index
    %77 = memref.load %arg1[%76] : memref<193xf32, #tpu.memory_space<smem>>
    %78 = vector.broadcast %77 : f32 to vector<16x512xf32>
    %79 = arith.mulf %78, %6 : vector<16x512xf32>
    %c64_i32_13 = arith.constant 64 : i32
    %80 = arith.addi %c64_i32_13, %c4_i32 : i32
    %81 = arith.index_cast %80 : i32 to index
    %82 = memref.load %arg1[%81] : memref<193xf32, #tpu.memory_space<smem>>
    %83 = vector.broadcast %82 : f32 to vector<16x512xf32>
    %84 = arith.addf %79, %83 : vector<16x512xf32>
    %cst_14 = arith.constant 0.000000e+00 : f32
    %85 = vector.broadcast %cst_14 : f32 to vector<16x512xf32>
    %86 = arith.maximumf %84, %85 : vector<16x512xf32>
    %c128_i32_15 = arith.constant 128 : i32
    %87 = arith.addi %c128_i32_15, %c4_i32 : i32
    %88 = arith.index_cast %87 : i32 to index
    %89 = memref.load %arg1[%88] : memref<193xf32, #tpu.memory_space<smem>>
    %90 = vector.broadcast %89 : f32 to vector<16x512xf32>
    %91 = arith.mulf %90, %86 : vector<16x512xf32>
    %92 = arith.addf %75, %91 : vector<16x512xf32>
    %c5_i32 = arith.constant 5 : i32
    %93 = arith.index_cast %c5_i32 : i32 to index
    %94 = memref.load %arg1[%93] : memref<193xf32, #tpu.memory_space<smem>>
    %95 = vector.broadcast %94 : f32 to vector<16x512xf32>
    %96 = arith.mulf %95, %6 : vector<16x512xf32>
    %c64_i32_16 = arith.constant 64 : i32
    %97 = arith.addi %c64_i32_16, %c5_i32 : i32
    %98 = arith.index_cast %97 : i32 to index
    %99 = memref.load %arg1[%98] : memref<193xf32, #tpu.memory_space<smem>>
    %100 = vector.broadcast %99 : f32 to vector<16x512xf32>
    %101 = arith.addf %96, %100 : vector<16x512xf32>
    %cst_17 = arith.constant 0.000000e+00 : f32
    %102 = vector.broadcast %cst_17 : f32 to vector<16x512xf32>
    %103 = arith.maximumf %101, %102 : vector<16x512xf32>
    %c128_i32_18 = arith.constant 128 : i32
    %104 = arith.addi %c128_i32_18, %c5_i32 : i32
    %105 = arith.index_cast %104 : i32 to index
    %106 = memref.load %arg1[%105] : memref<193xf32, #tpu.memory_space<smem>>
    %107 = vector.broadcast %106 : f32 to vector<16x512xf32>
    %108 = arith.mulf %107, %103 : vector<16x512xf32>
    %109 = arith.addf %92, %108 : vector<16x512xf32>
    %c6_i32 = arith.constant 6 : i32
    %110 = arith.index_cast %c6_i32 : i32 to index
    %111 = memref.load %arg1[%110] : memref<193xf32, #tpu.memory_space<smem>>
    %112 = vector.broadcast %111 : f32 to vector<16x512xf32>
    %113 = arith.mulf %112, %6 : vector<16x512xf32>
    %c64_i32_19 = arith.constant 64 : i32
    %114 = arith.addi %c64_i32_19, %c6_i32 : i32
    %115 = arith.index_cast %114 : i32 to index
    %116 = memref.load %arg1[%115] : memref<193xf32, #tpu.memory_space<smem>>
    %117 = vector.broadcast %116 : f32 to vector<16x512xf32>
    %118 = arith.addf %113, %117 : vector<16x512xf32>
    %cst_20 = arith.constant 0.000000e+00 : f32
    %119 = vector.broadcast %cst_20 : f32 to vector<16x512xf32>
    %120 = arith.maximumf %118, %119 : vector<16x512xf32>
    %c128_i32_21 = arith.constant 128 : i32
    %121 = arith.addi %c128_i32_21, %c6_i32 : i32
    %122 = arith.index_cast %121 : i32 to index
    %123 = memref.load %arg1[%122] : memref<193xf32, #tpu.memory_space<smem>>
    %124 = vector.broadcast %123 : f32 to vector<16x512xf32>
    %125 = arith.mulf %124, %120 : vector<16x512xf32>
    %126 = arith.addf %109, %125 : vector<16x512xf32>
    %c7_i32 = arith.constant 7 : i32
    %127 = arith.index_cast %c7_i32 : i32 to index
    %128 = memref.load %arg1[%127] : memref<193xf32, #tpu.memory_space<smem>>
    %129 = vector.broadcast %128 : f32 to vector<16x512xf32>
    %130 = arith.mulf %129, %6 : vector<16x512xf32>
    %c64_i32_22 = arith.constant 64 : i32
    %131 = arith.addi %c64_i32_22, %c7_i32 : i32
    %132 = arith.index_cast %131 : i32 to index
    %133 = memref.load %arg1[%132] : memref<193xf32, #tpu.memory_space<smem>>
    %134 = vector.broadcast %133 : f32 to vector<16x512xf32>
    %135 = arith.addf %130, %134 : vector<16x512xf32>
    %cst_23 = arith.constant 0.000000e+00 : f32
    %136 = vector.broadcast %cst_23 : f32 to vector<16x512xf32>
    %137 = arith.maximumf %135, %136 : vector<16x512xf32>
    %c128_i32_24 = arith.constant 128 : i32
    %138 = arith.addi %c128_i32_24, %c7_i32 : i32
    %139 = arith.index_cast %138 : i32 to index
    %140 = memref.load %arg1[%139] : memref<193xf32, #tpu.memory_space<smem>>
    %141 = vector.broadcast %140 : f32 to vector<16x512xf32>
    %142 = arith.mulf %141, %137 : vector<16x512xf32>
    %143 = arith.addf %126, %142 : vector<16x512xf32>
    %c8_i32 = arith.constant 8 : i32
    %144 = arith.index_cast %c8_i32 : i32 to index
    %145 = memref.load %arg1[%144] : memref<193xf32, #tpu.memory_space<smem>>
    %146 = vector.broadcast %145 : f32 to vector<16x512xf32>
    %147 = arith.mulf %146, %6 : vector<16x512xf32>
    %c64_i32_25 = arith.constant 64 : i32
    %148 = arith.addi %c64_i32_25, %c8_i32 : i32
    %149 = arith.index_cast %148 : i32 to index
    %150 = memref.load %arg1[%149] : memref<193xf32, #tpu.memory_space<smem>>
    %151 = vector.broadcast %150 : f32 to vector<16x512xf32>
    %152 = arith.addf %147, %151 : vector<16x512xf32>
    %cst_26 = arith.constant 0.000000e+00 : f32
    %153 = vector.broadcast %cst_26 : f32 to vector<16x512xf32>
    %154 = arith.maximumf %152, %153 : vector<16x512xf32>
    %c128_i32_27 = arith.constant 128 : i32
    %155 = arith.addi %c128_i32_27, %c8_i32 : i32
    %156 = arith.index_cast %155 : i32 to index
    %157 = memref.load %arg1[%156] : memref<193xf32, #tpu.memory_space<smem>>
    %158 = vector.broadcast %157 : f32 to vector<16x512xf32>
    %159 = arith.mulf %158, %154 : vector<16x512xf32>
    %160 = arith.addf %143, %159 : vector<16x512xf32>
    %c9_i32 = arith.constant 9 : i32
    %161 = arith.index_cast %c9_i32 : i32 to index
    %162 = memref.load %arg1[%161] : memref<193xf32, #tpu.memory_space<smem>>
    %163 = vector.broadcast %162 : f32 to vector<16x512xf32>
    %164 = arith.mulf %163, %6 : vector<16x512xf32>
    %c64_i32_28 = arith.constant 64 : i32
    %165 = arith.addi %c64_i32_28, %c9_i32 : i32
    %166 = arith.index_cast %165 : i32 to index
    %167 = memref.load %arg1[%166] : memref<193xf32, #tpu.memory_space<smem>>
    %168 = vector.broadcast %167 : f32 to vector<16x512xf32>
    %169 = arith.addf %164, %168 : vector<16x512xf32>
    %cst_29 = arith.constant 0.000000e+00 : f32
    %170 = vector.broadcast %cst_29 : f32 to vector<16x512xf32>
    %171 = arith.maximumf %169, %170 : vector<16x512xf32>
    %c128_i32_30 = arith.constant 128 : i32
    %172 = arith.addi %c128_i32_30, %c9_i32 : i32
    %173 = arith.index_cast %172 : i32 to index
    %174 = memref.load %arg1[%173] : memref<193xf32, #tpu.memory_space<smem>>
    %175 = vector.broadcast %174 : f32 to vector<16x512xf32>
    %176 = arith.mulf %175, %171 : vector<16x512xf32>
    %177 = arith.addf %160, %176 : vector<16x512xf32>
    %c10_i32 = arith.constant 10 : i32
    %178 = arith.index_cast %c10_i32 : i32 to index
    %179 = memref.load %arg1[%178] : memref<193xf32, #tpu.memory_space<smem>>
    %180 = vector.broadcast %179 : f32 to vector<16x512xf32>
    %181 = arith.mulf %180, %6 : vector<16x512xf32>
    %c64_i32_31 = arith.constant 64 : i32
    %182 = arith.addi %c64_i32_31, %c10_i32 : i32
    %183 = arith.index_cast %182 : i32 to index
    %184 = memref.load %arg1[%183] : memref<193xf32, #tpu.memory_space<smem>>
    %185 = vector.broadcast %184 : f32 to vector<16x512xf32>
    %186 = arith.addf %181, %185 : vector<16x512xf32>
    %cst_32 = arith.constant 0.000000e+00 : f32
    %187 = vector.broadcast %cst_32 : f32 to vector<16x512xf32>
    %188 = arith.maximumf %186, %187 : vector<16x512xf32>
    %c128_i32_33 = arith.constant 128 : i32
    %189 = arith.addi %c128_i32_33, %c10_i32 : i32
    %190 = arith.index_cast %189 : i32 to index
    %191 = memref.load %arg1[%190] : memref<193xf32, #tpu.memory_space<smem>>
    %192 = vector.broadcast %191 : f32 to vector<16x512xf32>
    %193 = arith.mulf %192, %188 : vector<16x512xf32>
    %194 = arith.addf %177, %193 : vector<16x512xf32>
    %c11_i32 = arith.constant 11 : i32
    %195 = arith.index_cast %c11_i32 : i32 to index
    %196 = memref.load %arg1[%195] : memref<193xf32, #tpu.memory_space<smem>>
    %197 = vector.broadcast %196 : f32 to vector<16x512xf32>
    %198 = arith.mulf %197, %6 : vector<16x512xf32>
    %c64_i32_34 = arith.constant 64 : i32
    %199 = arith.addi %c64_i32_34, %c11_i32 : i32
    %200 = arith.index_cast %199 : i32 to index
    %201 = memref.load %arg1[%200] : memref<193xf32, #tpu.memory_space<smem>>
    %202 = vector.broadcast %201 : f32 to vector<16x512xf32>
    %203 = arith.addf %198, %202 : vector<16x512xf32>
    %cst_35 = arith.constant 0.000000e+00 : f32
    %204 = vector.broadcast %cst_35 : f32 to vector<16x512xf32>
    %205 = arith.maximumf %203, %204 : vector<16x512xf32>
    %c128_i32_36 = arith.constant 128 : i32
    %206 = arith.addi %c128_i32_36, %c11_i32 : i32
    %207 = arith.index_cast %206 : i32 to index
    %208 = memref.load %arg1[%207] : memref<193xf32, #tpu.memory_space<smem>>
    %209 = vector.broadcast %208 : f32 to vector<16x512xf32>
    %210 = arith.mulf %209, %205 : vector<16x512xf32>
    %211 = arith.addf %194, %210 : vector<16x512xf32>
    %c12_i32 = arith.constant 12 : i32
    %212 = arith.index_cast %c12_i32 : i32 to index
    %213 = memref.load %arg1[%212] : memref<193xf32, #tpu.memory_space<smem>>
    %214 = vector.broadcast %213 : f32 to vector<16x512xf32>
    %215 = arith.mulf %214, %6 : vector<16x512xf32>
    %c64_i32_37 = arith.constant 64 : i32
    %216 = arith.addi %c64_i32_37, %c12_i32 : i32
    %217 = arith.index_cast %216 : i32 to index
    %218 = memref.load %arg1[%217] : memref<193xf32, #tpu.memory_space<smem>>
    %219 = vector.broadcast %218 : f32 to vector<16x512xf32>
    %220 = arith.addf %215, %219 : vector<16x512xf32>
    %cst_38 = arith.constant 0.000000e+00 : f32
    %221 = vector.broadcast %cst_38 : f32 to vector<16x512xf32>
    %222 = arith.maximumf %220, %221 : vector<16x512xf32>
    %c128_i32_39 = arith.constant 128 : i32
    %223 = arith.addi %c128_i32_39, %c12_i32 : i32
    %224 = arith.index_cast %223 : i32 to index
    %225 = memref.load %arg1[%224] : memref<193xf32, #tpu.memory_space<smem>>
    %226 = vector.broadcast %225 : f32 to vector<16x512xf32>
    %227 = arith.mulf %226, %222 : vector<16x512xf32>
    %228 = arith.addf %211, %227 : vector<16x512xf32>
    %c13_i32 = arith.constant 13 : i32
    %229 = arith.index_cast %c13_i32 : i32 to index
    %230 = memref.load %arg1[%229] : memref<193xf32, #tpu.memory_space<smem>>
    %231 = vector.broadcast %230 : f32 to vector<16x512xf32>
    %232 = arith.mulf %231, %6 : vector<16x512xf32>
    %c64_i32_40 = arith.constant 64 : i32
    %233 = arith.addi %c64_i32_40, %c13_i32 : i32
    %234 = arith.index_cast %233 : i32 to index
    %235 = memref.load %arg1[%234] : memref<193xf32, #tpu.memory_space<smem>>
    %236 = vector.broadcast %235 : f32 to vector<16x512xf32>
    %237 = arith.addf %232, %236 : vector<16x512xf32>
    %cst_41 = arith.constant 0.000000e+00 : f32
    %238 = vector.broadcast %cst_41 : f32 to vector<16x512xf32>
    %239 = arith.maximumf %237, %238 : vector<16x512xf32>
    %c128_i32_42 = arith.constant 128 : i32
    %240 = arith.addi %c128_i32_42, %c13_i32 : i32
    %241 = arith.index_cast %240 : i32 to index
    %242 = memref.load %arg1[%241] : memref<193xf32, #tpu.memory_space<smem>>
    %243 = vector.broadcast %242 : f32 to vector<16x512xf32>
    %244 = arith.mulf %243, %239 : vector<16x512xf32>
    %245 = arith.addf %228, %244 : vector<16x512xf32>
    %c14_i32 = arith.constant 14 : i32
    %246 = arith.index_cast %c14_i32 : i32 to index
    %247 = memref.load %arg1[%246] : memref<193xf32, #tpu.memory_space<smem>>
    %248 = vector.broadcast %247 : f32 to vector<16x512xf32>
    %249 = arith.mulf %248, %6 : vector<16x512xf32>
    %c64_i32_43 = arith.constant 64 : i32
    %250 = arith.addi %c64_i32_43, %c14_i32 : i32
    %251 = arith.index_cast %250 : i32 to index
    %252 = memref.load %arg1[%251] : memref<193xf32, #tpu.memory_space<smem>>
    %253 = vector.broadcast %252 : f32 to vector<16x512xf32>
    %254 = arith.addf %249, %253 : vector<16x512xf32>
    %cst_44 = arith.constant 0.000000e+00 : f32
    %255 = vector.broadcast %cst_44 : f32 to vector<16x512xf32>
    %256 = arith.maximumf %254, %255 : vector<16x512xf32>
    %c128_i32_45 = arith.constant 128 : i32
    %257 = arith.addi %c128_i32_45, %c14_i32 : i32
    %258 = arith.index_cast %257 : i32 to index
    %259 = memref.load %arg1[%258] : memref<193xf32, #tpu.memory_space<smem>>
    %260 = vector.broadcast %259 : f32 to vector<16x512xf32>
    %261 = arith.mulf %260, %256 : vector<16x512xf32>
    %262 = arith.addf %245, %261 : vector<16x512xf32>
    %c15_i32 = arith.constant 15 : i32
    %263 = arith.index_cast %c15_i32 : i32 to index
    %264 = memref.load %arg1[%263] : memref<193xf32, #tpu.memory_space<smem>>
    %265 = vector.broadcast %264 : f32 to vector<16x512xf32>
    %266 = arith.mulf %265, %6 : vector<16x512xf32>
    %c64_i32_46 = arith.constant 64 : i32
    %267 = arith.addi %c64_i32_46, %c15_i32 : i32
    %268 = arith.index_cast %267 : i32 to index
    %269 = memref.load %arg1[%268] : memref<193xf32, #tpu.memory_space<smem>>
    %270 = vector.broadcast %269 : f32 to vector<16x512xf32>
    %271 = arith.addf %266, %270 : vector<16x512xf32>
    %cst_47 = arith.constant 0.000000e+00 : f32
    %272 = vector.broadcast %cst_47 : f32 to vector<16x512xf32>
    %273 = arith.maximumf %271, %272 : vector<16x512xf32>
    %c128_i32_48 = arith.constant 128 : i32
    %274 = arith.addi %c128_i32_48, %c15_i32 : i32
    %275 = arith.index_cast %274 : i32 to index
    %276 = memref.load %arg1[%275] : memref<193xf32, #tpu.memory_space<smem>>
    %277 = vector.broadcast %276 : f32 to vector<16x512xf32>
    %278 = arith.mulf %277, %273 : vector<16x512xf32>
    %279 = arith.addf %262, %278 : vector<16x512xf32>
    %c16_i32_49 = arith.constant 16 : i32
    %280 = arith.index_cast %c16_i32_49 : i32 to index
    %281 = memref.load %arg1[%280] : memref<193xf32, #tpu.memory_space<smem>>
    %282 = vector.broadcast %281 : f32 to vector<16x512xf32>
    %283 = arith.mulf %282, %6 : vector<16x512xf32>
    %c64_i32_50 = arith.constant 64 : i32
    %284 = arith.addi %c64_i32_50, %c16_i32_49 : i32
    %285 = arith.index_cast %284 : i32 to index
    %286 = memref.load %arg1[%285] : memref<193xf32, #tpu.memory_space<smem>>
    %287 = vector.broadcast %286 : f32 to vector<16x512xf32>
    %288 = arith.addf %283, %287 : vector<16x512xf32>
    %cst_51 = arith.constant 0.000000e+00 : f32
    %289 = vector.broadcast %cst_51 : f32 to vector<16x512xf32>
    %290 = arith.maximumf %288, %289 : vector<16x512xf32>
    %c128_i32_52 = arith.constant 128 : i32
    %291 = arith.addi %c128_i32_52, %c16_i32_49 : i32
    %292 = arith.index_cast %291 : i32 to index
    %293 = memref.load %arg1[%292] : memref<193xf32, #tpu.memory_space<smem>>
    %294 = vector.broadcast %293 : f32 to vector<16x512xf32>
    %295 = arith.mulf %294, %290 : vector<16x512xf32>
    %296 = arith.addf %279, %295 : vector<16x512xf32>
    %c17_i32 = arith.constant 17 : i32
    %297 = arith.index_cast %c17_i32 : i32 to index
    %298 = memref.load %arg1[%297] : memref<193xf32, #tpu.memory_space<smem>>
    %299 = vector.broadcast %298 : f32 to vector<16x512xf32>
    %300 = arith.mulf %299, %6 : vector<16x512xf32>
    %c64_i32_53 = arith.constant 64 : i32
    %301 = arith.addi %c64_i32_53, %c17_i32 : i32
    %302 = arith.index_cast %301 : i32 to index
    %303 = memref.load %arg1[%302] : memref<193xf32, #tpu.memory_space<smem>>
    %304 = vector.broadcast %303 : f32 to vector<16x512xf32>
    %305 = arith.addf %300, %304 : vector<16x512xf32>
    %cst_54 = arith.constant 0.000000e+00 : f32
    %306 = vector.broadcast %cst_54 : f32 to vector<16x512xf32>
    %307 = arith.maximumf %305, %306 : vector<16x512xf32>
    %c128_i32_55 = arith.constant 128 : i32
    %308 = arith.addi %c128_i32_55, %c17_i32 : i32
    %309 = arith.index_cast %308 : i32 to index
    %310 = memref.load %arg1[%309] : memref<193xf32, #tpu.memory_space<smem>>
    %311 = vector.broadcast %310 : f32 to vector<16x512xf32>
    %312 = arith.mulf %311, %307 : vector<16x512xf32>
    %313 = arith.addf %296, %312 : vector<16x512xf32>
    %c18_i32 = arith.constant 18 : i32
    %314 = arith.index_cast %c18_i32 : i32 to index
    %315 = memref.load %arg1[%314] : memref<193xf32, #tpu.memory_space<smem>>
    %316 = vector.broadcast %315 : f32 to vector<16x512xf32>
    %317 = arith.mulf %316, %6 : vector<16x512xf32>
    %c64_i32_56 = arith.constant 64 : i32
    %318 = arith.addi %c64_i32_56, %c18_i32 : i32
    %319 = arith.index_cast %318 : i32 to index
    %320 = memref.load %arg1[%319] : memref<193xf32, #tpu.memory_space<smem>>
    %321 = vector.broadcast %320 : f32 to vector<16x512xf32>
    %322 = arith.addf %317, %321 : vector<16x512xf32>
    %cst_57 = arith.constant 0.000000e+00 : f32
    %323 = vector.broadcast %cst_57 : f32 to vector<16x512xf32>
    %324 = arith.maximumf %322, %323 : vector<16x512xf32>
    %c128_i32_58 = arith.constant 128 : i32
    %325 = arith.addi %c128_i32_58, %c18_i32 : i32
    %326 = arith.index_cast %325 : i32 to index
    %327 = memref.load %arg1[%326] : memref<193xf32, #tpu.memory_space<smem>>
    %328 = vector.broadcast %327 : f32 to vector<16x512xf32>
    %329 = arith.mulf %328, %324 : vector<16x512xf32>
    %330 = arith.addf %313, %329 : vector<16x512xf32>
    %c19_i32 = arith.constant 19 : i32
    %331 = arith.index_cast %c19_i32 : i32 to index
    %332 = memref.load %arg1[%331] : memref<193xf32, #tpu.memory_space<smem>>
    %333 = vector.broadcast %332 : f32 to vector<16x512xf32>
    %334 = arith.mulf %333, %6 : vector<16x512xf32>
    %c64_i32_59 = arith.constant 64 : i32
    %335 = arith.addi %c64_i32_59, %c19_i32 : i32
    %336 = arith.index_cast %335 : i32 to index
    %337 = memref.load %arg1[%336] : memref<193xf32, #tpu.memory_space<smem>>
    %338 = vector.broadcast %337 : f32 to vector<16x512xf32>
    %339 = arith.addf %334, %338 : vector<16x512xf32>
    %cst_60 = arith.constant 0.000000e+00 : f32
    %340 = vector.broadcast %cst_60 : f32 to vector<16x512xf32>
    %341 = arith.maximumf %339, %340 : vector<16x512xf32>
    %c128_i32_61 = arith.constant 128 : i32
    %342 = arith.addi %c128_i32_61, %c19_i32 : i32
    %343 = arith.index_cast %342 : i32 to index
    %344 = memref.load %arg1[%343] : memref<193xf32, #tpu.memory_space<smem>>
    %345 = vector.broadcast %344 : f32 to vector<16x512xf32>
    %346 = arith.mulf %345, %341 : vector<16x512xf32>
    %347 = arith.addf %330, %346 : vector<16x512xf32>
    %c20_i32 = arith.constant 20 : i32
    %348 = arith.index_cast %c20_i32 : i32 to index
    %349 = memref.load %arg1[%348] : memref<193xf32, #tpu.memory_space<smem>>
    %350 = vector.broadcast %349 : f32 to vector<16x512xf32>
    %351 = arith.mulf %350, %6 : vector<16x512xf32>
    %c64_i32_62 = arith.constant 64 : i32
    %352 = arith.addi %c64_i32_62, %c20_i32 : i32
    %353 = arith.index_cast %352 : i32 to index
    %354 = memref.load %arg1[%353] : memref<193xf32, #tpu.memory_space<smem>>
    %355 = vector.broadcast %354 : f32 to vector<16x512xf32>
    %356 = arith.addf %351, %355 : vector<16x512xf32>
    %cst_63 = arith.constant 0.000000e+00 : f32
    %357 = vector.broadcast %cst_63 : f32 to vector<16x512xf32>
    %358 = arith.maximumf %356, %357 : vector<16x512xf32>
    %c128_i32_64 = arith.constant 128 : i32
    %359 = arith.addi %c128_i32_64, %c20_i32 : i32
    %360 = arith.index_cast %359 : i32 to index
    %361 = memref.load %arg1[%360] : memref<193xf32, #tpu.memory_space<smem>>
    %362 = vector.broadcast %361 : f32 to vector<16x512xf32>
    %363 = arith.mulf %362, %358 : vector<16x512xf32>
    %364 = arith.addf %347, %363 : vector<16x512xf32>
    %c21_i32 = arith.constant 21 : i32
    %365 = arith.index_cast %c21_i32 : i32 to index
    %366 = memref.load %arg1[%365] : memref<193xf32, #tpu.memory_space<smem>>
    %367 = vector.broadcast %366 : f32 to vector<16x512xf32>
    %368 = arith.mulf %367, %6 : vector<16x512xf32>
    %c64_i32_65 = arith.constant 64 : i32
    %369 = arith.addi %c64_i32_65, %c21_i32 : i32
    %370 = arith.index_cast %369 : i32 to index
    %371 = memref.load %arg1[%370] : memref<193xf32, #tpu.memory_space<smem>>
    %372 = vector.broadcast %371 : f32 to vector<16x512xf32>
    %373 = arith.addf %368, %372 : vector<16x512xf32>
    %cst_66 = arith.constant 0.000000e+00 : f32
    %374 = vector.broadcast %cst_66 : f32 to vector<16x512xf32>
    %375 = arith.maximumf %373, %374 : vector<16x512xf32>
    %c128_i32_67 = arith.constant 128 : i32
    %376 = arith.addi %c128_i32_67, %c21_i32 : i32
    %377 = arith.index_cast %376 : i32 to index
    %378 = memref.load %arg1[%377] : memref<193xf32, #tpu.memory_space<smem>>
    %379 = vector.broadcast %378 : f32 to vector<16x512xf32>
    %380 = arith.mulf %379, %375 : vector<16x512xf32>
    %381 = arith.addf %364, %380 : vector<16x512xf32>
    %c22_i32 = arith.constant 22 : i32
    %382 = arith.index_cast %c22_i32 : i32 to index
    %383 = memref.load %arg1[%382] : memref<193xf32, #tpu.memory_space<smem>>
    %384 = vector.broadcast %383 : f32 to vector<16x512xf32>
    %385 = arith.mulf %384, %6 : vector<16x512xf32>
    %c64_i32_68 = arith.constant 64 : i32
    %386 = arith.addi %c64_i32_68, %c22_i32 : i32
    %387 = arith.index_cast %386 : i32 to index
    %388 = memref.load %arg1[%387] : memref<193xf32, #tpu.memory_space<smem>>
    %389 = vector.broadcast %388 : f32 to vector<16x512xf32>
    %390 = arith.addf %385, %389 : vector<16x512xf32>
    %cst_69 = arith.constant 0.000000e+00 : f32
    %391 = vector.broadcast %cst_69 : f32 to vector<16x512xf32>
    %392 = arith.maximumf %390, %391 : vector<16x512xf32>
    %c128_i32_70 = arith.constant 128 : i32
    %393 = arith.addi %c128_i32_70, %c22_i32 : i32
    %394 = arith.index_cast %393 : i32 to index
    %395 = memref.load %arg1[%394] : memref<193xf32, #tpu.memory_space<smem>>
    %396 = vector.broadcast %395 : f32 to vector<16x512xf32>
    %397 = arith.mulf %396, %392 : vector<16x512xf32>
    %398 = arith.addf %381, %397 : vector<16x512xf32>
    %c23_i32 = arith.constant 23 : i32
    %399 = arith.index_cast %c23_i32 : i32 to index
    %400 = memref.load %arg1[%399] : memref<193xf32, #tpu.memory_space<smem>>
    %401 = vector.broadcast %400 : f32 to vector<16x512xf32>
    %402 = arith.mulf %401, %6 : vector<16x512xf32>
    %c64_i32_71 = arith.constant 64 : i32
    %403 = arith.addi %c64_i32_71, %c23_i32 : i32
    %404 = arith.index_cast %403 : i32 to index
    %405 = memref.load %arg1[%404] : memref<193xf32, #tpu.memory_space<smem>>
    %406 = vector.broadcast %405 : f32 to vector<16x512xf32>
    %407 = arith.addf %402, %406 : vector<16x512xf32>
    %cst_72 = arith.constant 0.000000e+00 : f32
    %408 = vector.broadcast %cst_72 : f32 to vector<16x512xf32>
    %409 = arith.maximumf %407, %408 : vector<16x512xf32>
    %c128_i32_73 = arith.constant 128 : i32
    %410 = arith.addi %c128_i32_73, %c23_i32 : i32
    %411 = arith.index_cast %410 : i32 to index
    %412 = memref.load %arg1[%411] : memref<193xf32, #tpu.memory_space<smem>>
    %413 = vector.broadcast %412 : f32 to vector<16x512xf32>
    %414 = arith.mulf %413, %409 : vector<16x512xf32>
    %415 = arith.addf %398, %414 : vector<16x512xf32>
    %c24_i32 = arith.constant 24 : i32
    %416 = arith.index_cast %c24_i32 : i32 to index
    %417 = memref.load %arg1[%416] : memref<193xf32, #tpu.memory_space<smem>>
    %418 = vector.broadcast %417 : f32 to vector<16x512xf32>
    %419 = arith.mulf %418, %6 : vector<16x512xf32>
    %c64_i32_74 = arith.constant 64 : i32
    %420 = arith.addi %c64_i32_74, %c24_i32 : i32
    %421 = arith.index_cast %420 : i32 to index
    %422 = memref.load %arg1[%421] : memref<193xf32, #tpu.memory_space<smem>>
    %423 = vector.broadcast %422 : f32 to vector<16x512xf32>
    %424 = arith.addf %419, %423 : vector<16x512xf32>
    %cst_75 = arith.constant 0.000000e+00 : f32
    %425 = vector.broadcast %cst_75 : f32 to vector<16x512xf32>
    %426 = arith.maximumf %424, %425 : vector<16x512xf32>
    %c128_i32_76 = arith.constant 128 : i32
    %427 = arith.addi %c128_i32_76, %c24_i32 : i32
    %428 = arith.index_cast %427 : i32 to index
    %429 = memref.load %arg1[%428] : memref<193xf32, #tpu.memory_space<smem>>
    %430 = vector.broadcast %429 : f32 to vector<16x512xf32>
    %431 = arith.mulf %430, %426 : vector<16x512xf32>
    %432 = arith.addf %415, %431 : vector<16x512xf32>
    %c25_i32 = arith.constant 25 : i32
    %433 = arith.index_cast %c25_i32 : i32 to index
    %434 = memref.load %arg1[%433] : memref<193xf32, #tpu.memory_space<smem>>
    %435 = vector.broadcast %434 : f32 to vector<16x512xf32>
    %436 = arith.mulf %435, %6 : vector<16x512xf32>
    %c64_i32_77 = arith.constant 64 : i32
    %437 = arith.addi %c64_i32_77, %c25_i32 : i32
    %438 = arith.index_cast %437 : i32 to index
    %439 = memref.load %arg1[%438] : memref<193xf32, #tpu.memory_space<smem>>
    %440 = vector.broadcast %439 : f32 to vector<16x512xf32>
    %441 = arith.addf %436, %440 : vector<16x512xf32>
    %cst_78 = arith.constant 0.000000e+00 : f32
    %442 = vector.broadcast %cst_78 : f32 to vector<16x512xf32>
    %443 = arith.maximumf %441, %442 : vector<16x512xf32>
    %c128_i32_79 = arith.constant 128 : i32
    %444 = arith.addi %c128_i32_79, %c25_i32 : i32
    %445 = arith.index_cast %444 : i32 to index
    %446 = memref.load %arg1[%445] : memref<193xf32, #tpu.memory_space<smem>>
    %447 = vector.broadcast %446 : f32 to vector<16x512xf32>
    %448 = arith.mulf %447, %443 : vector<16x512xf32>
    %449 = arith.addf %432, %448 : vector<16x512xf32>
    %c26_i32 = arith.constant 26 : i32
    %450 = arith.index_cast %c26_i32 : i32 to index
    %451 = memref.load %arg1[%450] : memref<193xf32, #tpu.memory_space<smem>>
    %452 = vector.broadcast %451 : f32 to vector<16x512xf32>
    %453 = arith.mulf %452, %6 : vector<16x512xf32>
    %c64_i32_80 = arith.constant 64 : i32
    %454 = arith.addi %c64_i32_80, %c26_i32 : i32
    %455 = arith.index_cast %454 : i32 to index
    %456 = memref.load %arg1[%455] : memref<193xf32, #tpu.memory_space<smem>>
    %457 = vector.broadcast %456 : f32 to vector<16x512xf32>
    %458 = arith.addf %453, %457 : vector<16x512xf32>
    %cst_81 = arith.constant 0.000000e+00 : f32
    %459 = vector.broadcast %cst_81 : f32 to vector<16x512xf32>
    %460 = arith.maximumf %458, %459 : vector<16x512xf32>
    %c128_i32_82 = arith.constant 128 : i32
    %461 = arith.addi %c128_i32_82, %c26_i32 : i32
    %462 = arith.index_cast %461 : i32 to index
    %463 = memref.load %arg1[%462] : memref<193xf32, #tpu.memory_space<smem>>
    %464 = vector.broadcast %463 : f32 to vector<16x512xf32>
    %465 = arith.mulf %464, %460 : vector<16x512xf32>
    %466 = arith.addf %449, %465 : vector<16x512xf32>
    %c27_i32 = arith.constant 27 : i32
    %467 = arith.index_cast %c27_i32 : i32 to index
    %468 = memref.load %arg1[%467] : memref<193xf32, #tpu.memory_space<smem>>
    %469 = vector.broadcast %468 : f32 to vector<16x512xf32>
    %470 = arith.mulf %469, %6 : vector<16x512xf32>
    %c64_i32_83 = arith.constant 64 : i32
    %471 = arith.addi %c64_i32_83, %c27_i32 : i32
    %472 = arith.index_cast %471 : i32 to index
    %473 = memref.load %arg1[%472] : memref<193xf32, #tpu.memory_space<smem>>
    %474 = vector.broadcast %473 : f32 to vector<16x512xf32>
    %475 = arith.addf %470, %474 : vector<16x512xf32>
    %cst_84 = arith.constant 0.000000e+00 : f32
    %476 = vector.broadcast %cst_84 : f32 to vector<16x512xf32>
    %477 = arith.maximumf %475, %476 : vector<16x512xf32>
    %c128_i32_85 = arith.constant 128 : i32
    %478 = arith.addi %c128_i32_85, %c27_i32 : i32
    %479 = arith.index_cast %478 : i32 to index
    %480 = memref.load %arg1[%479] : memref<193xf32, #tpu.memory_space<smem>>
    %481 = vector.broadcast %480 : f32 to vector<16x512xf32>
    %482 = arith.mulf %481, %477 : vector<16x512xf32>
    %483 = arith.addf %466, %482 : vector<16x512xf32>
    %c28_i32 = arith.constant 28 : i32
    %484 = arith.index_cast %c28_i32 : i32 to index
    %485 = memref.load %arg1[%484] : memref<193xf32, #tpu.memory_space<smem>>
    %486 = vector.broadcast %485 : f32 to vector<16x512xf32>
    %487 = arith.mulf %486, %6 : vector<16x512xf32>
    %c64_i32_86 = arith.constant 64 : i32
    %488 = arith.addi %c64_i32_86, %c28_i32 : i32
    %489 = arith.index_cast %488 : i32 to index
    %490 = memref.load %arg1[%489] : memref<193xf32, #tpu.memory_space<smem>>
    %491 = vector.broadcast %490 : f32 to vector<16x512xf32>
    %492 = arith.addf %487, %491 : vector<16x512xf32>
    %cst_87 = arith.constant 0.000000e+00 : f32
    %493 = vector.broadcast %cst_87 : f32 to vector<16x512xf32>
    %494 = arith.maximumf %492, %493 : vector<16x512xf32>
    %c128_i32_88 = arith.constant 128 : i32
    %495 = arith.addi %c128_i32_88, %c28_i32 : i32
    %496 = arith.index_cast %495 : i32 to index
    %497 = memref.load %arg1[%496] : memref<193xf32, #tpu.memory_space<smem>>
    %498 = vector.broadcast %497 : f32 to vector<16x512xf32>
    %499 = arith.mulf %498, %494 : vector<16x512xf32>
    %500 = arith.addf %483, %499 : vector<16x512xf32>
    %c29_i32 = arith.constant 29 : i32
    %501 = arith.index_cast %c29_i32 : i32 to index
    %502 = memref.load %arg1[%501] : memref<193xf32, #tpu.memory_space<smem>>
    %503 = vector.broadcast %502 : f32 to vector<16x512xf32>
    %504 = arith.mulf %503, %6 : vector<16x512xf32>
    %c64_i32_89 = arith.constant 64 : i32
    %505 = arith.addi %c64_i32_89, %c29_i32 : i32
    %506 = arith.index_cast %505 : i32 to index
    %507 = memref.load %arg1[%506] : memref<193xf32, #tpu.memory_space<smem>>
    %508 = vector.broadcast %507 : f32 to vector<16x512xf32>
    %509 = arith.addf %504, %508 : vector<16x512xf32>
    %cst_90 = arith.constant 0.000000e+00 : f32
    %510 = vector.broadcast %cst_90 : f32 to vector<16x512xf32>
    %511 = arith.maximumf %509, %510 : vector<16x512xf32>
    %c128_i32_91 = arith.constant 128 : i32
    %512 = arith.addi %c128_i32_91, %c29_i32 : i32
    %513 = arith.index_cast %512 : i32 to index
    %514 = memref.load %arg1[%513] : memref<193xf32, #tpu.memory_space<smem>>
    %515 = vector.broadcast %514 : f32 to vector<16x512xf32>
    %516 = arith.mulf %515, %511 : vector<16x512xf32>
    %517 = arith.addf %500, %516 : vector<16x512xf32>
    %c30_i32 = arith.constant 30 : i32
    %518 = arith.index_cast %c30_i32 : i32 to index
    %519 = memref.load %arg1[%518] : memref<193xf32, #tpu.memory_space<smem>>
    %520 = vector.broadcast %519 : f32 to vector<16x512xf32>
    %521 = arith.mulf %520, %6 : vector<16x512xf32>
    %c64_i32_92 = arith.constant 64 : i32
    %522 = arith.addi %c64_i32_92, %c30_i32 : i32
    %523 = arith.index_cast %522 : i32 to index
    %524 = memref.load %arg1[%523] : memref<193xf32, #tpu.memory_space<smem>>
    %525 = vector.broadcast %524 : f32 to vector<16x512xf32>
    %526 = arith.addf %521, %525 : vector<16x512xf32>
    %cst_93 = arith.constant 0.000000e+00 : f32
    %527 = vector.broadcast %cst_93 : f32 to vector<16x512xf32>
    %528 = arith.maximumf %526, %527 : vector<16x512xf32>
    %c128_i32_94 = arith.constant 128 : i32
    %529 = arith.addi %c128_i32_94, %c30_i32 : i32
    %530 = arith.index_cast %529 : i32 to index
    %531 = memref.load %arg1[%530] : memref<193xf32, #tpu.memory_space<smem>>
    %532 = vector.broadcast %531 : f32 to vector<16x512xf32>
    %533 = arith.mulf %532, %528 : vector<16x512xf32>
    %534 = arith.addf %517, %533 : vector<16x512xf32>
    %c31_i32 = arith.constant 31 : i32
    %535 = arith.index_cast %c31_i32 : i32 to index
    %536 = memref.load %arg1[%535] : memref<193xf32, #tpu.memory_space<smem>>
    %537 = vector.broadcast %536 : f32 to vector<16x512xf32>
    %538 = arith.mulf %537, %6 : vector<16x512xf32>
    %c64_i32_95 = arith.constant 64 : i32
    %539 = arith.addi %c64_i32_95, %c31_i32 : i32
    %540 = arith.index_cast %539 : i32 to index
    %541 = memref.load %arg1[%540] : memref<193xf32, #tpu.memory_space<smem>>
    %542 = vector.broadcast %541 : f32 to vector<16x512xf32>
    %543 = arith.addf %538, %542 : vector<16x512xf32>
    %cst_96 = arith.constant 0.000000e+00 : f32
    %544 = vector.broadcast %cst_96 : f32 to vector<16x512xf32>
    %545 = arith.maximumf %543, %544 : vector<16x512xf32>
    %c128_i32_97 = arith.constant 128 : i32
    %546 = arith.addi %c128_i32_97, %c31_i32 : i32
    %547 = arith.index_cast %546 : i32 to index
    %548 = memref.load %arg1[%547] : memref<193xf32, #tpu.memory_space<smem>>
    %549 = vector.broadcast %548 : f32 to vector<16x512xf32>
    %550 = arith.mulf %549, %545 : vector<16x512xf32>
    %551 = arith.addf %534, %550 : vector<16x512xf32>
    %c32_i32 = arith.constant 32 : i32
    %552 = arith.index_cast %c32_i32 : i32 to index
    %553 = memref.load %arg1[%552] : memref<193xf32, #tpu.memory_space<smem>>
    %554 = vector.broadcast %553 : f32 to vector<16x512xf32>
    %555 = arith.mulf %554, %6 : vector<16x512xf32>
    %c64_i32_98 = arith.constant 64 : i32
    %556 = arith.addi %c64_i32_98, %c32_i32 : i32
    %557 = arith.index_cast %556 : i32 to index
    %558 = memref.load %arg1[%557] : memref<193xf32, #tpu.memory_space<smem>>
    %559 = vector.broadcast %558 : f32 to vector<16x512xf32>
    %560 = arith.addf %555, %559 : vector<16x512xf32>
    %cst_99 = arith.constant 0.000000e+00 : f32
    %561 = vector.broadcast %cst_99 : f32 to vector<16x512xf32>
    %562 = arith.maximumf %560, %561 : vector<16x512xf32>
    %c128_i32_100 = arith.constant 128 : i32
    %563 = arith.addi %c128_i32_100, %c32_i32 : i32
    %564 = arith.index_cast %563 : i32 to index
    %565 = memref.load %arg1[%564] : memref<193xf32, #tpu.memory_space<smem>>
    %566 = vector.broadcast %565 : f32 to vector<16x512xf32>
    %567 = arith.mulf %566, %562 : vector<16x512xf32>
    %568 = arith.addf %551, %567 : vector<16x512xf32>
    %c33_i32 = arith.constant 33 : i32
    %569 = arith.index_cast %c33_i32 : i32 to index
    %570 = memref.load %arg1[%569] : memref<193xf32, #tpu.memory_space<smem>>
    %571 = vector.broadcast %570 : f32 to vector<16x512xf32>
    %572 = arith.mulf %571, %6 : vector<16x512xf32>
    %c64_i32_101 = arith.constant 64 : i32
    %573 = arith.addi %c64_i32_101, %c33_i32 : i32
    %574 = arith.index_cast %573 : i32 to index
    %575 = memref.load %arg1[%574] : memref<193xf32, #tpu.memory_space<smem>>
    %576 = vector.broadcast %575 : f32 to vector<16x512xf32>
    %577 = arith.addf %572, %576 : vector<16x512xf32>
    %cst_102 = arith.constant 0.000000e+00 : f32
    %578 = vector.broadcast %cst_102 : f32 to vector<16x512xf32>
    %579 = arith.maximumf %577, %578 : vector<16x512xf32>
    %c128_i32_103 = arith.constant 128 : i32
    %580 = arith.addi %c128_i32_103, %c33_i32 : i32
    %581 = arith.index_cast %580 : i32 to index
    %582 = memref.load %arg1[%581] : memref<193xf32, #tpu.memory_space<smem>>
    %583 = vector.broadcast %582 : f32 to vector<16x512xf32>
    %584 = arith.mulf %583, %579 : vector<16x512xf32>
    %585 = arith.addf %568, %584 : vector<16x512xf32>
    %c34_i32 = arith.constant 34 : i32
    %586 = arith.index_cast %c34_i32 : i32 to index
    %587 = memref.load %arg1[%586] : memref<193xf32, #tpu.memory_space<smem>>
    %588 = vector.broadcast %587 : f32 to vector<16x512xf32>
    %589 = arith.mulf %588, %6 : vector<16x512xf32>
    %c64_i32_104 = arith.constant 64 : i32
    %590 = arith.addi %c64_i32_104, %c34_i32 : i32
    %591 = arith.index_cast %590 : i32 to index
    %592 = memref.load %arg1[%591] : memref<193xf32, #tpu.memory_space<smem>>
    %593 = vector.broadcast %592 : f32 to vector<16x512xf32>
    %594 = arith.addf %589, %593 : vector<16x512xf32>
    %cst_105 = arith.constant 0.000000e+00 : f32
    %595 = vector.broadcast %cst_105 : f32 to vector<16x512xf32>
    %596 = arith.maximumf %594, %595 : vector<16x512xf32>
    %c128_i32_106 = arith.constant 128 : i32
    %597 = arith.addi %c128_i32_106, %c34_i32 : i32
    %598 = arith.index_cast %597 : i32 to index
    %599 = memref.load %arg1[%598] : memref<193xf32, #tpu.memory_space<smem>>
    %600 = vector.broadcast %599 : f32 to vector<16x512xf32>
    %601 = arith.mulf %600, %596 : vector<16x512xf32>
    %602 = arith.addf %585, %601 : vector<16x512xf32>
    %c35_i32 = arith.constant 35 : i32
    %603 = arith.index_cast %c35_i32 : i32 to index
    %604 = memref.load %arg1[%603] : memref<193xf32, #tpu.memory_space<smem>>
    %605 = vector.broadcast %604 : f32 to vector<16x512xf32>
    %606 = arith.mulf %605, %6 : vector<16x512xf32>
    %c64_i32_107 = arith.constant 64 : i32
    %607 = arith.addi %c64_i32_107, %c35_i32 : i32
    %608 = arith.index_cast %607 : i32 to index
    %609 = memref.load %arg1[%608] : memref<193xf32, #tpu.memory_space<smem>>
    %610 = vector.broadcast %609 : f32 to vector<16x512xf32>
    %611 = arith.addf %606, %610 : vector<16x512xf32>
    %cst_108 = arith.constant 0.000000e+00 : f32
    %612 = vector.broadcast %cst_108 : f32 to vector<16x512xf32>
    %613 = arith.maximumf %611, %612 : vector<16x512xf32>
    %c128_i32_109 = arith.constant 128 : i32
    %614 = arith.addi %c128_i32_109, %c35_i32 : i32
    %615 = arith.index_cast %614 : i32 to index
    %616 = memref.load %arg1[%615] : memref<193xf32, #tpu.memory_space<smem>>
    %617 = vector.broadcast %616 : f32 to vector<16x512xf32>
    %618 = arith.mulf %617, %613 : vector<16x512xf32>
    %619 = arith.addf %602, %618 : vector<16x512xf32>
    %c36_i32 = arith.constant 36 : i32
    %620 = arith.index_cast %c36_i32 : i32 to index
    %621 = memref.load %arg1[%620] : memref<193xf32, #tpu.memory_space<smem>>
    %622 = vector.broadcast %621 : f32 to vector<16x512xf32>
    %623 = arith.mulf %622, %6 : vector<16x512xf32>
    %c64_i32_110 = arith.constant 64 : i32
    %624 = arith.addi %c64_i32_110, %c36_i32 : i32
    %625 = arith.index_cast %624 : i32 to index
    %626 = memref.load %arg1[%625] : memref<193xf32, #tpu.memory_space<smem>>
    %627 = vector.broadcast %626 : f32 to vector<16x512xf32>
    %628 = arith.addf %623, %627 : vector<16x512xf32>
    %cst_111 = arith.constant 0.000000e+00 : f32
    %629 = vector.broadcast %cst_111 : f32 to vector<16x512xf32>
    %630 = arith.maximumf %628, %629 : vector<16x512xf32>
    %c128_i32_112 = arith.constant 128 : i32
    %631 = arith.addi %c128_i32_112, %c36_i32 : i32
    %632 = arith.index_cast %631 : i32 to index
    %633 = memref.load %arg1[%632] : memref<193xf32, #tpu.memory_space<smem>>
    %634 = vector.broadcast %633 : f32 to vector<16x512xf32>
    %635 = arith.mulf %634, %630 : vector<16x512xf32>
    %636 = arith.addf %619, %635 : vector<16x512xf32>
    %c37_i32 = arith.constant 37 : i32
    %637 = arith.index_cast %c37_i32 : i32 to index
    %638 = memref.load %arg1[%637] : memref<193xf32, #tpu.memory_space<smem>>
    %639 = vector.broadcast %638 : f32 to vector<16x512xf32>
    %640 = arith.mulf %639, %6 : vector<16x512xf32>
    %c64_i32_113 = arith.constant 64 : i32
    %641 = arith.addi %c64_i32_113, %c37_i32 : i32
    %642 = arith.index_cast %641 : i32 to index
    %643 = memref.load %arg1[%642] : memref<193xf32, #tpu.memory_space<smem>>
    %644 = vector.broadcast %643 : f32 to vector<16x512xf32>
    %645 = arith.addf %640, %644 : vector<16x512xf32>
    %cst_114 = arith.constant 0.000000e+00 : f32
    %646 = vector.broadcast %cst_114 : f32 to vector<16x512xf32>
    %647 = arith.maximumf %645, %646 : vector<16x512xf32>
    %c128_i32_115 = arith.constant 128 : i32
    %648 = arith.addi %c128_i32_115, %c37_i32 : i32
    %649 = arith.index_cast %648 : i32 to index
    %650 = memref.load %arg1[%649] : memref<193xf32, #tpu.memory_space<smem>>
    %651 = vector.broadcast %650 : f32 to vector<16x512xf32>
    %652 = arith.mulf %651, %647 : vector<16x512xf32>
    %653 = arith.addf %636, %652 : vector<16x512xf32>
    %c38_i32 = arith.constant 38 : i32
    %654 = arith.index_cast %c38_i32 : i32 to index
    %655 = memref.load %arg1[%654] : memref<193xf32, #tpu.memory_space<smem>>
    %656 = vector.broadcast %655 : f32 to vector<16x512xf32>
    %657 = arith.mulf %656, %6 : vector<16x512xf32>
    %c64_i32_116 = arith.constant 64 : i32
    %658 = arith.addi %c64_i32_116, %c38_i32 : i32
    %659 = arith.index_cast %658 : i32 to index
    %660 = memref.load %arg1[%659] : memref<193xf32, #tpu.memory_space<smem>>
    %661 = vector.broadcast %660 : f32 to vector<16x512xf32>
    %662 = arith.addf %657, %661 : vector<16x512xf32>
    %cst_117 = arith.constant 0.000000e+00 : f32
    %663 = vector.broadcast %cst_117 : f32 to vector<16x512xf32>
    %664 = arith.maximumf %662, %663 : vector<16x512xf32>
    %c128_i32_118 = arith.constant 128 : i32
    %665 = arith.addi %c128_i32_118, %c38_i32 : i32
    %666 = arith.index_cast %665 : i32 to index
    %667 = memref.load %arg1[%666] : memref<193xf32, #tpu.memory_space<smem>>
    %668 = vector.broadcast %667 : f32 to vector<16x512xf32>
    %669 = arith.mulf %668, %664 : vector<16x512xf32>
    %670 = arith.addf %653, %669 : vector<16x512xf32>
    %c39_i32 = arith.constant 39 : i32
    %671 = arith.index_cast %c39_i32 : i32 to index
    %672 = memref.load %arg1[%671] : memref<193xf32, #tpu.memory_space<smem>>
    %673 = vector.broadcast %672 : f32 to vector<16x512xf32>
    %674 = arith.mulf %673, %6 : vector<16x512xf32>
    %c64_i32_119 = arith.constant 64 : i32
    %675 = arith.addi %c64_i32_119, %c39_i32 : i32
    %676 = arith.index_cast %675 : i32 to index
    %677 = memref.load %arg1[%676] : memref<193xf32, #tpu.memory_space<smem>>
    %678 = vector.broadcast %677 : f32 to vector<16x512xf32>
    %679 = arith.addf %674, %678 : vector<16x512xf32>
    %cst_120 = arith.constant 0.000000e+00 : f32
    %680 = vector.broadcast %cst_120 : f32 to vector<16x512xf32>
    %681 = arith.maximumf %679, %680 : vector<16x512xf32>
    %c128_i32_121 = arith.constant 128 : i32
    %682 = arith.addi %c128_i32_121, %c39_i32 : i32
    %683 = arith.index_cast %682 : i32 to index
    %684 = memref.load %arg1[%683] : memref<193xf32, #tpu.memory_space<smem>>
    %685 = vector.broadcast %684 : f32 to vector<16x512xf32>
    %686 = arith.mulf %685, %681 : vector<16x512xf32>
    %687 = arith.addf %670, %686 : vector<16x512xf32>
    %c40_i32 = arith.constant 40 : i32
    %688 = arith.index_cast %c40_i32 : i32 to index
    %689 = memref.load %arg1[%688] : memref<193xf32, #tpu.memory_space<smem>>
    %690 = vector.broadcast %689 : f32 to vector<16x512xf32>
    %691 = arith.mulf %690, %6 : vector<16x512xf32>
    %c64_i32_122 = arith.constant 64 : i32
    %692 = arith.addi %c64_i32_122, %c40_i32 : i32
    %693 = arith.index_cast %692 : i32 to index
    %694 = memref.load %arg1[%693] : memref<193xf32, #tpu.memory_space<smem>>
    %695 = vector.broadcast %694 : f32 to vector<16x512xf32>
    %696 = arith.addf %691, %695 : vector<16x512xf32>
    %cst_123 = arith.constant 0.000000e+00 : f32
    %697 = vector.broadcast %cst_123 : f32 to vector<16x512xf32>
    %698 = arith.maximumf %696, %697 : vector<16x512xf32>
    %c128_i32_124 = arith.constant 128 : i32
    %699 = arith.addi %c128_i32_124, %c40_i32 : i32
    %700 = arith.index_cast %699 : i32 to index
    %701 = memref.load %arg1[%700] : memref<193xf32, #tpu.memory_space<smem>>
    %702 = vector.broadcast %701 : f32 to vector<16x512xf32>
    %703 = arith.mulf %702, %698 : vector<16x512xf32>
    %704 = arith.addf %687, %703 : vector<16x512xf32>
    %c41_i32 = arith.constant 41 : i32
    %705 = arith.index_cast %c41_i32 : i32 to index
    %706 = memref.load %arg1[%705] : memref<193xf32, #tpu.memory_space<smem>>
    %707 = vector.broadcast %706 : f32 to vector<16x512xf32>
    %708 = arith.mulf %707, %6 : vector<16x512xf32>
    %c64_i32_125 = arith.constant 64 : i32
    %709 = arith.addi %c64_i32_125, %c41_i32 : i32
    %710 = arith.index_cast %709 : i32 to index
    %711 = memref.load %arg1[%710] : memref<193xf32, #tpu.memory_space<smem>>
    %712 = vector.broadcast %711 : f32 to vector<16x512xf32>
    %713 = arith.addf %708, %712 : vector<16x512xf32>
    %cst_126 = arith.constant 0.000000e+00 : f32
    %714 = vector.broadcast %cst_126 : f32 to vector<16x512xf32>
    %715 = arith.maximumf %713, %714 : vector<16x512xf32>
    %c128_i32_127 = arith.constant 128 : i32
    %716 = arith.addi %c128_i32_127, %c41_i32 : i32
    %717 = arith.index_cast %716 : i32 to index
    %718 = memref.load %arg1[%717] : memref<193xf32, #tpu.memory_space<smem>>
    %719 = vector.broadcast %718 : f32 to vector<16x512xf32>
    %720 = arith.mulf %719, %715 : vector<16x512xf32>
    %721 = arith.addf %704, %720 : vector<16x512xf32>
    %c42_i32 = arith.constant 42 : i32
    %722 = arith.index_cast %c42_i32 : i32 to index
    %723 = memref.load %arg1[%722] : memref<193xf32, #tpu.memory_space<smem>>
    %724 = vector.broadcast %723 : f32 to vector<16x512xf32>
    %725 = arith.mulf %724, %6 : vector<16x512xf32>
    %c64_i32_128 = arith.constant 64 : i32
    %726 = arith.addi %c64_i32_128, %c42_i32 : i32
    %727 = arith.index_cast %726 : i32 to index
    %728 = memref.load %arg1[%727] : memref<193xf32, #tpu.memory_space<smem>>
    %729 = vector.broadcast %728 : f32 to vector<16x512xf32>
    %730 = arith.addf %725, %729 : vector<16x512xf32>
    %cst_129 = arith.constant 0.000000e+00 : f32
    %731 = vector.broadcast %cst_129 : f32 to vector<16x512xf32>
    %732 = arith.maximumf %730, %731 : vector<16x512xf32>
    %c128_i32_130 = arith.constant 128 : i32
    %733 = arith.addi %c128_i32_130, %c42_i32 : i32
    %734 = arith.index_cast %733 : i32 to index
    %735 = memref.load %arg1[%734] : memref<193xf32, #tpu.memory_space<smem>>
    %736 = vector.broadcast %735 : f32 to vector<16x512xf32>
    %737 = arith.mulf %736, %732 : vector<16x512xf32>
    %738 = arith.addf %721, %737 : vector<16x512xf32>
    %c43_i32 = arith.constant 43 : i32
    %739 = arith.index_cast %c43_i32 : i32 to index
    %740 = memref.load %arg1[%739] : memref<193xf32, #tpu.memory_space<smem>>
    %741 = vector.broadcast %740 : f32 to vector<16x512xf32>
    %742 = arith.mulf %741, %6 : vector<16x512xf32>
    %c64_i32_131 = arith.constant 64 : i32
    %743 = arith.addi %c64_i32_131, %c43_i32 : i32
    %744 = arith.index_cast %743 : i32 to index
    %745 = memref.load %arg1[%744] : memref<193xf32, #tpu.memory_space<smem>>
    %746 = vector.broadcast %745 : f32 to vector<16x512xf32>
    %747 = arith.addf %742, %746 : vector<16x512xf32>
    %cst_132 = arith.constant 0.000000e+00 : f32
    %748 = vector.broadcast %cst_132 : f32 to vector<16x512xf32>
    %749 = arith.maximumf %747, %748 : vector<16x512xf32>
    %c128_i32_133 = arith.constant 128 : i32
    %750 = arith.addi %c128_i32_133, %c43_i32 : i32
    %751 = arith.index_cast %750 : i32 to index
    %752 = memref.load %arg1[%751] : memref<193xf32, #tpu.memory_space<smem>>
    %753 = vector.broadcast %752 : f32 to vector<16x512xf32>
    %754 = arith.mulf %753, %749 : vector<16x512xf32>
    %755 = arith.addf %738, %754 : vector<16x512xf32>
    %c44_i32 = arith.constant 44 : i32
    %756 = arith.index_cast %c44_i32 : i32 to index
    %757 = memref.load %arg1[%756] : memref<193xf32, #tpu.memory_space<smem>>
    %758 = vector.broadcast %757 : f32 to vector<16x512xf32>
    %759 = arith.mulf %758, %6 : vector<16x512xf32>
    %c64_i32_134 = arith.constant 64 : i32
    %760 = arith.addi %c64_i32_134, %c44_i32 : i32
    %761 = arith.index_cast %760 : i32 to index
    %762 = memref.load %arg1[%761] : memref<193xf32, #tpu.memory_space<smem>>
    %763 = vector.broadcast %762 : f32 to vector<16x512xf32>
    %764 = arith.addf %759, %763 : vector<16x512xf32>
    %cst_135 = arith.constant 0.000000e+00 : f32
    %765 = vector.broadcast %cst_135 : f32 to vector<16x512xf32>
    %766 = arith.maximumf %764, %765 : vector<16x512xf32>
    %c128_i32_136 = arith.constant 128 : i32
    %767 = arith.addi %c128_i32_136, %c44_i32 : i32
    %768 = arith.index_cast %767 : i32 to index
    %769 = memref.load %arg1[%768] : memref<193xf32, #tpu.memory_space<smem>>
    %770 = vector.broadcast %769 : f32 to vector<16x512xf32>
    %771 = arith.mulf %770, %766 : vector<16x512xf32>
    %772 = arith.addf %755, %771 : vector<16x512xf32>
    %c45_i32 = arith.constant 45 : i32
    %773 = arith.index_cast %c45_i32 : i32 to index
    %774 = memref.load %arg1[%773] : memref<193xf32, #tpu.memory_space<smem>>
    %775 = vector.broadcast %774 : f32 to vector<16x512xf32>
    %776 = arith.mulf %775, %6 : vector<16x512xf32>
    %c64_i32_137 = arith.constant 64 : i32
    %777 = arith.addi %c64_i32_137, %c45_i32 : i32
    %778 = arith.index_cast %777 : i32 to index
    %779 = memref.load %arg1[%778] : memref<193xf32, #tpu.memory_space<smem>>
    %780 = vector.broadcast %779 : f32 to vector<16x512xf32>
    %781 = arith.addf %776, %780 : vector<16x512xf32>
    %cst_138 = arith.constant 0.000000e+00 : f32
    %782 = vector.broadcast %cst_138 : f32 to vector<16x512xf32>
    %783 = arith.maximumf %781, %782 : vector<16x512xf32>
    %c128_i32_139 = arith.constant 128 : i32
    %784 = arith.addi %c128_i32_139, %c45_i32 : i32
    %785 = arith.index_cast %784 : i32 to index
    %786 = memref.load %arg1[%785] : memref<193xf32, #tpu.memory_space<smem>>
    %787 = vector.broadcast %786 : f32 to vector<16x512xf32>
    %788 = arith.mulf %787, %783 : vector<16x512xf32>
    %789 = arith.addf %772, %788 : vector<16x512xf32>
    %c46_i32 = arith.constant 46 : i32
    %790 = arith.index_cast %c46_i32 : i32 to index
    %791 = memref.load %arg1[%790] : memref<193xf32, #tpu.memory_space<smem>>
    %792 = vector.broadcast %791 : f32 to vector<16x512xf32>
    %793 = arith.mulf %792, %6 : vector<16x512xf32>
    %c64_i32_140 = arith.constant 64 : i32
    %794 = arith.addi %c64_i32_140, %c46_i32 : i32
    %795 = arith.index_cast %794 : i32 to index
    %796 = memref.load %arg1[%795] : memref<193xf32, #tpu.memory_space<smem>>
    %797 = vector.broadcast %796 : f32 to vector<16x512xf32>
    %798 = arith.addf %793, %797 : vector<16x512xf32>
    %cst_141 = arith.constant 0.000000e+00 : f32
    %799 = vector.broadcast %cst_141 : f32 to vector<16x512xf32>
    %800 = arith.maximumf %798, %799 : vector<16x512xf32>
    %c128_i32_142 = arith.constant 128 : i32
    %801 = arith.addi %c128_i32_142, %c46_i32 : i32
    %802 = arith.index_cast %801 : i32 to index
    %803 = memref.load %arg1[%802] : memref<193xf32, #tpu.memory_space<smem>>
    %804 = vector.broadcast %803 : f32 to vector<16x512xf32>
    %805 = arith.mulf %804, %800 : vector<16x512xf32>
    %806 = arith.addf %789, %805 : vector<16x512xf32>
    %c47_i32 = arith.constant 47 : i32
    %807 = arith.index_cast %c47_i32 : i32 to index
    %808 = memref.load %arg1[%807] : memref<193xf32, #tpu.memory_space<smem>>
    %809 = vector.broadcast %808 : f32 to vector<16x512xf32>
    %810 = arith.mulf %809, %6 : vector<16x512xf32>
    %c64_i32_143 = arith.constant 64 : i32
    %811 = arith.addi %c64_i32_143, %c47_i32 : i32
    %812 = arith.index_cast %811 : i32 to index
    %813 = memref.load %arg1[%812] : memref<193xf32, #tpu.memory_space<smem>>
    %814 = vector.broadcast %813 : f32 to vector<16x512xf32>
    %815 = arith.addf %810, %814 : vector<16x512xf32>
    %cst_144 = arith.constant 0.000000e+00 : f32
    %816 = vector.broadcast %cst_144 : f32 to vector<16x512xf32>
    %817 = arith.maximumf %815, %816 : vector<16x512xf32>
    %c128_i32_145 = arith.constant 128 : i32
    %818 = arith.addi %c128_i32_145, %c47_i32 : i32
    %819 = arith.index_cast %818 : i32 to index
    %820 = memref.load %arg1[%819] : memref<193xf32, #tpu.memory_space<smem>>
    %821 = vector.broadcast %820 : f32 to vector<16x512xf32>
    %822 = arith.mulf %821, %817 : vector<16x512xf32>
    %823 = arith.addf %806, %822 : vector<16x512xf32>
    %c48_i32 = arith.constant 48 : i32
    %824 = arith.index_cast %c48_i32 : i32 to index
    %825 = memref.load %arg1[%824] : memref<193xf32, #tpu.memory_space<smem>>
    %826 = vector.broadcast %825 : f32 to vector<16x512xf32>
    %827 = arith.mulf %826, %6 : vector<16x512xf32>
    %c64_i32_146 = arith.constant 64 : i32
    %828 = arith.addi %c64_i32_146, %c48_i32 : i32
    %829 = arith.index_cast %828 : i32 to index
    %830 = memref.load %arg1[%829] : memref<193xf32, #tpu.memory_space<smem>>
    %831 = vector.broadcast %830 : f32 to vector<16x512xf32>
    %832 = arith.addf %827, %831 : vector<16x512xf32>
    %cst_147 = arith.constant 0.000000e+00 : f32
    %833 = vector.broadcast %cst_147 : f32 to vector<16x512xf32>
    %834 = arith.maximumf %832, %833 : vector<16x512xf32>
    %c128_i32_148 = arith.constant 128 : i32
    %835 = arith.addi %c128_i32_148, %c48_i32 : i32
    %836 = arith.index_cast %835 : i32 to index
    %837 = memref.load %arg1[%836] : memref<193xf32, #tpu.memory_space<smem>>
    %838 = vector.broadcast %837 : f32 to vector<16x512xf32>
    %839 = arith.mulf %838, %834 : vector<16x512xf32>
    %840 = arith.addf %823, %839 : vector<16x512xf32>
    %c49_i32 = arith.constant 49 : i32
    %841 = arith.index_cast %c49_i32 : i32 to index
    %842 = memref.load %arg1[%841] : memref<193xf32, #tpu.memory_space<smem>>
    %843 = vector.broadcast %842 : f32 to vector<16x512xf32>
    %844 = arith.mulf %843, %6 : vector<16x512xf32>
    %c64_i32_149 = arith.constant 64 : i32
    %845 = arith.addi %c64_i32_149, %c49_i32 : i32
    %846 = arith.index_cast %845 : i32 to index
    %847 = memref.load %arg1[%846] : memref<193xf32, #tpu.memory_space<smem>>
    %848 = vector.broadcast %847 : f32 to vector<16x512xf32>
    %849 = arith.addf %844, %848 : vector<16x512xf32>
    %cst_150 = arith.constant 0.000000e+00 : f32
    %850 = vector.broadcast %cst_150 : f32 to vector<16x512xf32>
    %851 = arith.maximumf %849, %850 : vector<16x512xf32>
    %c128_i32_151 = arith.constant 128 : i32
    %852 = arith.addi %c128_i32_151, %c49_i32 : i32
    %853 = arith.index_cast %852 : i32 to index
    %854 = memref.load %arg1[%853] : memref<193xf32, #tpu.memory_space<smem>>
    %855 = vector.broadcast %854 : f32 to vector<16x512xf32>
    %856 = arith.mulf %855, %851 : vector<16x512xf32>
    %857 = arith.addf %840, %856 : vector<16x512xf32>
    %c50_i32 = arith.constant 50 : i32
    %858 = arith.index_cast %c50_i32 : i32 to index
    %859 = memref.load %arg1[%858] : memref<193xf32, #tpu.memory_space<smem>>
    %860 = vector.broadcast %859 : f32 to vector<16x512xf32>
    %861 = arith.mulf %860, %6 : vector<16x512xf32>
    %c64_i32_152 = arith.constant 64 : i32
    %862 = arith.addi %c64_i32_152, %c50_i32 : i32
    %863 = arith.index_cast %862 : i32 to index
    %864 = memref.load %arg1[%863] : memref<193xf32, #tpu.memory_space<smem>>
    %865 = vector.broadcast %864 : f32 to vector<16x512xf32>
    %866 = arith.addf %861, %865 : vector<16x512xf32>
    %cst_153 = arith.constant 0.000000e+00 : f32
    %867 = vector.broadcast %cst_153 : f32 to vector<16x512xf32>
    %868 = arith.maximumf %866, %867 : vector<16x512xf32>
    %c128_i32_154 = arith.constant 128 : i32
    %869 = arith.addi %c128_i32_154, %c50_i32 : i32
    %870 = arith.index_cast %869 : i32 to index
    %871 = memref.load %arg1[%870] : memref<193xf32, #tpu.memory_space<smem>>
    %872 = vector.broadcast %871 : f32 to vector<16x512xf32>
    %873 = arith.mulf %872, %868 : vector<16x512xf32>
    %874 = arith.addf %857, %873 : vector<16x512xf32>
    %c51_i32 = arith.constant 51 : i32
    %875 = arith.index_cast %c51_i32 : i32 to index
    %876 = memref.load %arg1[%875] : memref<193xf32, #tpu.memory_space<smem>>
    %877 = vector.broadcast %876 : f32 to vector<16x512xf32>
    %878 = arith.mulf %877, %6 : vector<16x512xf32>
    %c64_i32_155 = arith.constant 64 : i32
    %879 = arith.addi %c64_i32_155, %c51_i32 : i32
    %880 = arith.index_cast %879 : i32 to index
    %881 = memref.load %arg1[%880] : memref<193xf32, #tpu.memory_space<smem>>
    %882 = vector.broadcast %881 : f32 to vector<16x512xf32>
    %883 = arith.addf %878, %882 : vector<16x512xf32>
    %cst_156 = arith.constant 0.000000e+00 : f32
    %884 = vector.broadcast %cst_156 : f32 to vector<16x512xf32>
    %885 = arith.maximumf %883, %884 : vector<16x512xf32>
    %c128_i32_157 = arith.constant 128 : i32
    %886 = arith.addi %c128_i32_157, %c51_i32 : i32
    %887 = arith.index_cast %886 : i32 to index
    %888 = memref.load %arg1[%887] : memref<193xf32, #tpu.memory_space<smem>>
    %889 = vector.broadcast %888 : f32 to vector<16x512xf32>
    %890 = arith.mulf %889, %885 : vector<16x512xf32>
    %891 = arith.addf %874, %890 : vector<16x512xf32>
    %c52_i32 = arith.constant 52 : i32
    %892 = arith.index_cast %c52_i32 : i32 to index
    %893 = memref.load %arg1[%892] : memref<193xf32, #tpu.memory_space<smem>>
    %894 = vector.broadcast %893 : f32 to vector<16x512xf32>
    %895 = arith.mulf %894, %6 : vector<16x512xf32>
    %c64_i32_158 = arith.constant 64 : i32
    %896 = arith.addi %c64_i32_158, %c52_i32 : i32
    %897 = arith.index_cast %896 : i32 to index
    %898 = memref.load %arg1[%897] : memref<193xf32, #tpu.memory_space<smem>>
    %899 = vector.broadcast %898 : f32 to vector<16x512xf32>
    %900 = arith.addf %895, %899 : vector<16x512xf32>
    %cst_159 = arith.constant 0.000000e+00 : f32
    %901 = vector.broadcast %cst_159 : f32 to vector<16x512xf32>
    %902 = arith.maximumf %900, %901 : vector<16x512xf32>
    %c128_i32_160 = arith.constant 128 : i32
    %903 = arith.addi %c128_i32_160, %c52_i32 : i32
    %904 = arith.index_cast %903 : i32 to index
    %905 = memref.load %arg1[%904] : memref<193xf32, #tpu.memory_space<smem>>
    %906 = vector.broadcast %905 : f32 to vector<16x512xf32>
    %907 = arith.mulf %906, %902 : vector<16x512xf32>
    %908 = arith.addf %891, %907 : vector<16x512xf32>
    %c53_i32 = arith.constant 53 : i32
    %909 = arith.index_cast %c53_i32 : i32 to index
    %910 = memref.load %arg1[%909] : memref<193xf32, #tpu.memory_space<smem>>
    %911 = vector.broadcast %910 : f32 to vector<16x512xf32>
    %912 = arith.mulf %911, %6 : vector<16x512xf32>
    %c64_i32_161 = arith.constant 64 : i32
    %913 = arith.addi %c64_i32_161, %c53_i32 : i32
    %914 = arith.index_cast %913 : i32 to index
    %915 = memref.load %arg1[%914] : memref<193xf32, #tpu.memory_space<smem>>
    %916 = vector.broadcast %915 : f32 to vector<16x512xf32>
    %917 = arith.addf %912, %916 : vector<16x512xf32>
    %cst_162 = arith.constant 0.000000e+00 : f32
    %918 = vector.broadcast %cst_162 : f32 to vector<16x512xf32>
    %919 = arith.maximumf %917, %918 : vector<16x512xf32>
    %c128_i32_163 = arith.constant 128 : i32
    %920 = arith.addi %c128_i32_163, %c53_i32 : i32
    %921 = arith.index_cast %920 : i32 to index
    %922 = memref.load %arg1[%921] : memref<193xf32, #tpu.memory_space<smem>>
    %923 = vector.broadcast %922 : f32 to vector<16x512xf32>
    %924 = arith.mulf %923, %919 : vector<16x512xf32>
    %925 = arith.addf %908, %924 : vector<16x512xf32>
    %c54_i32 = arith.constant 54 : i32
    %926 = arith.index_cast %c54_i32 : i32 to index
    %927 = memref.load %arg1[%926] : memref<193xf32, #tpu.memory_space<smem>>
    %928 = vector.broadcast %927 : f32 to vector<16x512xf32>
    %929 = arith.mulf %928, %6 : vector<16x512xf32>
    %c64_i32_164 = arith.constant 64 : i32
    %930 = arith.addi %c64_i32_164, %c54_i32 : i32
    %931 = arith.index_cast %930 : i32 to index
    %932 = memref.load %arg1[%931] : memref<193xf32, #tpu.memory_space<smem>>
    %933 = vector.broadcast %932 : f32 to vector<16x512xf32>
    %934 = arith.addf %929, %933 : vector<16x512xf32>
    %cst_165 = arith.constant 0.000000e+00 : f32
    %935 = vector.broadcast %cst_165 : f32 to vector<16x512xf32>
    %936 = arith.maximumf %934, %935 : vector<16x512xf32>
    %c128_i32_166 = arith.constant 128 : i32
    %937 = arith.addi %c128_i32_166, %c54_i32 : i32
    %938 = arith.index_cast %937 : i32 to index
    %939 = memref.load %arg1[%938] : memref<193xf32, #tpu.memory_space<smem>>
    %940 = vector.broadcast %939 : f32 to vector<16x512xf32>
    %941 = arith.mulf %940, %936 : vector<16x512xf32>
    %942 = arith.addf %925, %941 : vector<16x512xf32>
    %c55_i32 = arith.constant 55 : i32
    %943 = arith.index_cast %c55_i32 : i32 to index
    %944 = memref.load %arg1[%943] : memref<193xf32, #tpu.memory_space<smem>>
    %945 = vector.broadcast %944 : f32 to vector<16x512xf32>
    %946 = arith.mulf %945, %6 : vector<16x512xf32>
    %c64_i32_167 = arith.constant 64 : i32
    %947 = arith.addi %c64_i32_167, %c55_i32 : i32
    %948 = arith.index_cast %947 : i32 to index
    %949 = memref.load %arg1[%948] : memref<193xf32, #tpu.memory_space<smem>>
    %950 = vector.broadcast %949 : f32 to vector<16x512xf32>
    %951 = arith.addf %946, %950 : vector<16x512xf32>
    %cst_168 = arith.constant 0.000000e+00 : f32
    %952 = vector.broadcast %cst_168 : f32 to vector<16x512xf32>
    %953 = arith.maximumf %951, %952 : vector<16x512xf32>
    %c128_i32_169 = arith.constant 128 : i32
    %954 = arith.addi %c128_i32_169, %c55_i32 : i32
    %955 = arith.index_cast %954 : i32 to index
    %956 = memref.load %arg1[%955] : memref<193xf32, #tpu.memory_space<smem>>
    %957 = vector.broadcast %956 : f32 to vector<16x512xf32>
    %958 = arith.mulf %957, %953 : vector<16x512xf32>
    %959 = arith.addf %942, %958 : vector<16x512xf32>
    %c56_i32 = arith.constant 56 : i32
    %960 = arith.index_cast %c56_i32 : i32 to index
    %961 = memref.load %arg1[%960] : memref<193xf32, #tpu.memory_space<smem>>
    %962 = vector.broadcast %961 : f32 to vector<16x512xf32>
    %963 = arith.mulf %962, %6 : vector<16x512xf32>
    %c64_i32_170 = arith.constant 64 : i32
    %964 = arith.addi %c64_i32_170, %c56_i32 : i32
    %965 = arith.index_cast %964 : i32 to index
    %966 = memref.load %arg1[%965] : memref<193xf32, #tpu.memory_space<smem>>
    %967 = vector.broadcast %966 : f32 to vector<16x512xf32>
    %968 = arith.addf %963, %967 : vector<16x512xf32>
    %cst_171 = arith.constant 0.000000e+00 : f32
    %969 = vector.broadcast %cst_171 : f32 to vector<16x512xf32>
    %970 = arith.maximumf %968, %969 : vector<16x512xf32>
    %c128_i32_172 = arith.constant 128 : i32
    %971 = arith.addi %c128_i32_172, %c56_i32 : i32
    %972 = arith.index_cast %971 : i32 to index
    %973 = memref.load %arg1[%972] : memref<193xf32, #tpu.memory_space<smem>>
    %974 = vector.broadcast %973 : f32 to vector<16x512xf32>
    %975 = arith.mulf %974, %970 : vector<16x512xf32>
    %976 = arith.addf %959, %975 : vector<16x512xf32>
    %c57_i32 = arith.constant 57 : i32
    %977 = arith.index_cast %c57_i32 : i32 to index
    %978 = memref.load %arg1[%977] : memref<193xf32, #tpu.memory_space<smem>>
    %979 = vector.broadcast %978 : f32 to vector<16x512xf32>
    %980 = arith.mulf %979, %6 : vector<16x512xf32>
    %c64_i32_173 = arith.constant 64 : i32
    %981 = arith.addi %c64_i32_173, %c57_i32 : i32
    %982 = arith.index_cast %981 : i32 to index
    %983 = memref.load %arg1[%982] : memref<193xf32, #tpu.memory_space<smem>>
    %984 = vector.broadcast %983 : f32 to vector<16x512xf32>
    %985 = arith.addf %980, %984 : vector<16x512xf32>
    %cst_174 = arith.constant 0.000000e+00 : f32
    %986 = vector.broadcast %cst_174 : f32 to vector<16x512xf32>
    %987 = arith.maximumf %985, %986 : vector<16x512xf32>
    %c128_i32_175 = arith.constant 128 : i32
    %988 = arith.addi %c128_i32_175, %c57_i32 : i32
    %989 = arith.index_cast %988 : i32 to index
    %990 = memref.load %arg1[%989] : memref<193xf32, #tpu.memory_space<smem>>
    %991 = vector.broadcast %990 : f32 to vector<16x512xf32>
    %992 = arith.mulf %991, %987 : vector<16x512xf32>
    %993 = arith.addf %976, %992 : vector<16x512xf32>
    %c58_i32 = arith.constant 58 : i32
    %994 = arith.index_cast %c58_i32 : i32 to index
    %995 = memref.load %arg1[%994] : memref<193xf32, #tpu.memory_space<smem>>
    %996 = vector.broadcast %995 : f32 to vector<16x512xf32>
    %997 = arith.mulf %996, %6 : vector<16x512xf32>
    %c64_i32_176 = arith.constant 64 : i32
    %998 = arith.addi %c64_i32_176, %c58_i32 : i32
    %999 = arith.index_cast %998 : i32 to index
    %1000 = memref.load %arg1[%999] : memref<193xf32, #tpu.memory_space<smem>>
    %1001 = vector.broadcast %1000 : f32 to vector<16x512xf32>
    %1002 = arith.addf %997, %1001 : vector<16x512xf32>
    %cst_177 = arith.constant 0.000000e+00 : f32
    %1003 = vector.broadcast %cst_177 : f32 to vector<16x512xf32>
    %1004 = arith.maximumf %1002, %1003 : vector<16x512xf32>
    %c128_i32_178 = arith.constant 128 : i32
    %1005 = arith.addi %c128_i32_178, %c58_i32 : i32
    %1006 = arith.index_cast %1005 : i32 to index
    %1007 = memref.load %arg1[%1006] : memref<193xf32, #tpu.memory_space<smem>>
    %1008 = vector.broadcast %1007 : f32 to vector<16x512xf32>
    %1009 = arith.mulf %1008, %1004 : vector<16x512xf32>
    %1010 = arith.addf %993, %1009 : vector<16x512xf32>
    %c59_i32 = arith.constant 59 : i32
    %1011 = arith.index_cast %c59_i32 : i32 to index
    %1012 = memref.load %arg1[%1011] : memref<193xf32, #tpu.memory_space<smem>>
    %1013 = vector.broadcast %1012 : f32 to vector<16x512xf32>
    %1014 = arith.mulf %1013, %6 : vector<16x512xf32>
    %c64_i32_179 = arith.constant 64 : i32
    %1015 = arith.addi %c64_i32_179, %c59_i32 : i32
    %1016 = arith.index_cast %1015 : i32 to index
    %1017 = memref.load %arg1[%1016] : memref<193xf32, #tpu.memory_space<smem>>
    %1018 = vector.broadcast %1017 : f32 to vector<16x512xf32>
    %1019 = arith.addf %1014, %1018 : vector<16x512xf32>
    %cst_180 = arith.constant 0.000000e+00 : f32
    %1020 = vector.broadcast %cst_180 : f32 to vector<16x512xf32>
    %1021 = arith.maximumf %1019, %1020 : vector<16x512xf32>
    %c128_i32_181 = arith.constant 128 : i32
    %1022 = arith.addi %c128_i32_181, %c59_i32 : i32
    %1023 = arith.index_cast %1022 : i32 to index
    %1024 = memref.load %arg1[%1023] : memref<193xf32, #tpu.memory_space<smem>>
    %1025 = vector.broadcast %1024 : f32 to vector<16x512xf32>
    %1026 = arith.mulf %1025, %1021 : vector<16x512xf32>
    %1027 = arith.addf %1010, %1026 : vector<16x512xf32>
    %c60_i32 = arith.constant 60 : i32
    %1028 = arith.index_cast %c60_i32 : i32 to index
    %1029 = memref.load %arg1[%1028] : memref<193xf32, #tpu.memory_space<smem>>
    %1030 = vector.broadcast %1029 : f32 to vector<16x512xf32>
    %1031 = arith.mulf %1030, %6 : vector<16x512xf32>
    %c64_i32_182 = arith.constant 64 : i32
    %1032 = arith.addi %c64_i32_182, %c60_i32 : i32
    %1033 = arith.index_cast %1032 : i32 to index
    %1034 = memref.load %arg1[%1033] : memref<193xf32, #tpu.memory_space<smem>>
    %1035 = vector.broadcast %1034 : f32 to vector<16x512xf32>
    %1036 = arith.addf %1031, %1035 : vector<16x512xf32>
    %cst_183 = arith.constant 0.000000e+00 : f32
    %1037 = vector.broadcast %cst_183 : f32 to vector<16x512xf32>
    %1038 = arith.maximumf %1036, %1037 : vector<16x512xf32>
    %c128_i32_184 = arith.constant 128 : i32
    %1039 = arith.addi %c128_i32_184, %c60_i32 : i32
    %1040 = arith.index_cast %1039 : i32 to index
    %1041 = memref.load %arg1[%1040] : memref<193xf32, #tpu.memory_space<smem>>
    %1042 = vector.broadcast %1041 : f32 to vector<16x512xf32>
    %1043 = arith.mulf %1042, %1038 : vector<16x512xf32>
    %1044 = arith.addf %1027, %1043 : vector<16x512xf32>
    %c61_i32 = arith.constant 61 : i32
    %1045 = arith.index_cast %c61_i32 : i32 to index
    %1046 = memref.load %arg1[%1045] : memref<193xf32, #tpu.memory_space<smem>>
    %1047 = vector.broadcast %1046 : f32 to vector<16x512xf32>
    %1048 = arith.mulf %1047, %6 : vector<16x512xf32>
    %c64_i32_185 = arith.constant 64 : i32
    %1049 = arith.addi %c64_i32_185, %c61_i32 : i32
    %1050 = arith.index_cast %1049 : i32 to index
    %1051 = memref.load %arg1[%1050] : memref<193xf32, #tpu.memory_space<smem>>
    %1052 = vector.broadcast %1051 : f32 to vector<16x512xf32>
    %1053 = arith.addf %1048, %1052 : vector<16x512xf32>
    %cst_186 = arith.constant 0.000000e+00 : f32
    %1054 = vector.broadcast %cst_186 : f32 to vector<16x512xf32>
    %1055 = arith.maximumf %1053, %1054 : vector<16x512xf32>
    %c128_i32_187 = arith.constant 128 : i32
    %1056 = arith.addi %c128_i32_187, %c61_i32 : i32
    %1057 = arith.index_cast %1056 : i32 to index
    %1058 = memref.load %arg1[%1057] : memref<193xf32, #tpu.memory_space<smem>>
    %1059 = vector.broadcast %1058 : f32 to vector<16x512xf32>
    %1060 = arith.mulf %1059, %1055 : vector<16x512xf32>
    %1061 = arith.addf %1044, %1060 : vector<16x512xf32>
    %c62_i32 = arith.constant 62 : i32
    %1062 = arith.index_cast %c62_i32 : i32 to index
    %1063 = memref.load %arg1[%1062] : memref<193xf32, #tpu.memory_space<smem>>
    %1064 = vector.broadcast %1063 : f32 to vector<16x512xf32>
    %1065 = arith.mulf %1064, %6 : vector<16x512xf32>
    %c64_i32_188 = arith.constant 64 : i32
    %1066 = arith.addi %c64_i32_188, %c62_i32 : i32
    %1067 = arith.index_cast %1066 : i32 to index
    %1068 = memref.load %arg1[%1067] : memref<193xf32, #tpu.memory_space<smem>>
    %1069 = vector.broadcast %1068 : f32 to vector<16x512xf32>
    %1070 = arith.addf %1065, %1069 : vector<16x512xf32>
    %cst_189 = arith.constant 0.000000e+00 : f32
    %1071 = vector.broadcast %cst_189 : f32 to vector<16x512xf32>
    %1072 = arith.maximumf %1070, %1071 : vector<16x512xf32>
    %c128_i32_190 = arith.constant 128 : i32
    %1073 = arith.addi %c128_i32_190, %c62_i32 : i32
    %1074 = arith.index_cast %1073 : i32 to index
    %1075 = memref.load %arg1[%1074] : memref<193xf32, #tpu.memory_space<smem>>
    %1076 = vector.broadcast %1075 : f32 to vector<16x512xf32>
    %1077 = arith.mulf %1076, %1072 : vector<16x512xf32>
    %1078 = arith.addf %1061, %1077 : vector<16x512xf32>
    %c63_i32 = arith.constant 63 : i32
    %1079 = arith.index_cast %c63_i32 : i32 to index
    %1080 = memref.load %arg1[%1079] : memref<193xf32, #tpu.memory_space<smem>>
    %1081 = vector.broadcast %1080 : f32 to vector<16x512xf32>
    %1082 = arith.mulf %1081, %6 : vector<16x512xf32>
    %c64_i32_191 = arith.constant 64 : i32
    %1083 = arith.addi %c64_i32_191, %c63_i32 : i32
    %1084 = arith.index_cast %1083 : i32 to index
    %1085 = memref.load %arg1[%1084] : memref<193xf32, #tpu.memory_space<smem>>
    %1086 = vector.broadcast %1085 : f32 to vector<16x512xf32>
    %1087 = arith.addf %1082, %1086 : vector<16x512xf32>
    %cst_192 = arith.constant 0.000000e+00 : f32
    %1088 = vector.broadcast %cst_192 : f32 to vector<16x512xf32>
    %1089 = arith.maximumf %1087, %1088 : vector<16x512xf32>
    %c128_i32_193 = arith.constant 128 : i32
    %1090 = arith.addi %c128_i32_193, %c63_i32 : i32
    %1091 = arith.index_cast %1090 : i32 to index
    %1092 = memref.load %arg1[%1091] : memref<193xf32, #tpu.memory_space<smem>>
    %1093 = vector.broadcast %1092 : f32 to vector<16x512xf32>
    %1094 = arith.mulf %1093, %1089 : vector<16x512xf32>
    %1095 = arith.addf %1078, %1094 : vector<16x512xf32>
    %c64_i32_194 = arith.constant 64 : i32
    %1096 = vector.broadcast %0 : f32 to vector<16x512xf32>
    %1097 = arith.addf %1095, %1096 : vector<16x512xf32>
    %1098 = arith.index_cast %4 : i32 to index
    %c0_195 = arith.constant 0 : index
    %1099 = vector.load %arg3[%1098, %c0_195] : memref<16x512xf32, #tpu.memory_space<vmem>>, vector<16x512xf32>
    tpu.vector_store %arg3[%1098, %c0_195], %1097 {strides = array<i32>} : memref<16x512xf32, #tpu.memory_space<vmem>>, vector<16x512xf32>,
    %c1_i32_196 = arith.constant 1 : i32
    return
  }
  func.func @transform_0(%arg0: i32, %arg1: memref<193xf32, #tpu.memory_space<smem>>) -> (i32, i32) {
    %c0_i32 = arith.constant 0 : i32
    %c0_i32_0 = arith.constant 0 : i32
    return %arg0, %c0_i32 : i32, i32
  }
  func.func @transform_1(%arg0: i32, %arg1: memref<193xf32, #tpu.memory_space<smem>>) -> (i32, i32) {
    %c0_i32 = arith.constant 0 : i32
    %c0_i32_0 = arith.constant 0 : i32
    return %arg0, %c0_i32 : i32, i32
  }
}

</mosaic_0001>

<llo_original>
// kernel: tpu_custom_call.1
$region0: #{tpu_custom_call.1}
  #allocation0 [shape = 'u32[]', space=smem, size = 0x4, offset = 0x4, fixed_abs, tag = 'smem constant byte address 0x4 - core index']
  #allocation1 [shape = 'u32[72,128]{1,0:T(1,128)}', space=vmem, size = 0x9000, scoped, tag = 'internal scratch']
  #allocation2 [shape = 's32[1]{0}', space=sflag, size = 0x4, scoped, tag = 'scoped memory for tpu_custom_call.1']
  #allocation3 [shape = 'u8[1024]{0}', space=smem, size = 0x400, scoped, tag = 'prefetched SMEM operand 0']
  %s0 = inlined_call_operand.hbm [shape: f32[193], index: 0, kind: input, shape index: {}]
  %s1 = inlined_call_operand.hbm [shape: f32[16,512], index: 1, kind: input, shape index: {}]
  %s2 = inlined_call_operand.hbm [shape: f32[16,512], index: 2, kind: output, shape index: {}]
  %s3 = sld [smem:[#allocation0]]
  $region18: #{tpu_custom_call.1} parent=0
    _
  %s5 = ssub.s32 1, %s3
  %s6 = scalar_select 0, %s5, %s3
  %s8 = sshll.u32 %s0, 4
  %s9 = int_to_ptr.hbm [resolvable:$true] %s8
  %11 = dma.hbm_to_smem %s9, 32, [#allocation3], [#allocation2]
  %13 = dma.done [#allocation2], 32
  %14 = sfence
  $region1: #{tpu_custom_call.1} parent=0
    #allocation4 [shape = 'u8[32768]{0}', space=vmem, size = 0x8000, scoped, tag = 'input window, operand 1, single buffered']
    #allocation5 [shape = 's32[1]{0}', space=sflag, size = 0x4, scoped, tag = 'scoped memory for tpu_custom_call.1']
    #allocation6 [shape = 's32[1]{0}', space=sflag, size = 0x4, scoped, tag = 'scoped memory for tpu_custom_call.1']
    #allocation7 [shape = 'u8[32768]{0}', space=vmem, size = 0x8000, scoped, tag = 'output window, operand 0, single buffered']
    %15 = vsyncpa [#allocation5], 0
    %16 = vsyncpa [#allocation6], 0
    // Predicated region
    $region2: #{tpu_custom_call.1} parent=1 // pred_check
      _
    $region3: #{tpu_custom_call.1} parent=1 // pred_check_branch
      %18 = sbr.rel (0) target = $region5
    $region4: #{tpu_custom_call.1} parent=1 // pred_region
      %20 = vsyncadd [#allocation5], 0
      %s21 = sshll.u32 %s1, 4
      %s22 = int_to_ptr.hbm [resolvable:$true] %s21
      %s23 = sshll.u32 [#allocation4], 4
      %s24 = int_to_ptr.vmem [resolvable:$true] %s23
      %29 = dma.hbm_to_vmem [thread:$0]  %s22, 1024, %s24, [#allocation5], 512, 512, 32
    $region5: #{tpu_custom_call.1} parent=1 // pred_fallthru
      _
    // Predicated region
    $region6: #{tpu_custom_call.1} parent=1 // pred_check
      _
    $region7: #{tpu_custom_call.1} parent=1 // pred_check_branch
      %31 = sbr.rel (0) target = $region9
    $region8: #{tpu_custom_call.1} parent=1 // pred_region
      %33 = dma.done [#allocation5], 1024
    $region9: #{tpu_custom_call.1} parent=1 // pred_fallthru
      _
    %s34 = sld [smem:[#allocation3 + $0xc0]]
    %s35 = smul.u32 0, 4
    %s36 = smul.addr %s35, 8
    %s37 = scalar_lea.vmem [#allocation4], %s36
    %v38 = vld [vmem:[%s37] sm:$0xff]
    %v39 = vld [vmem:[%s37 + $0x8] sm:$0xff]
    %v40 = vld [vmem:[%s37 + $0x10] sm:$0xff]
    %v41 = vld [vmem:[%s37 + $0x18] sm:$0xff]
    %v42 = vld [vmem:[%s37 + $0x20] sm:$0xff]
    %v43 = vld [vmem:[%s37 + $0x28] sm:$0xff]
    %v44 = vld [vmem:[%s37 + $0x30] sm:$0xff]
    %v45 = vld [vmem:[%s37 + $0x38] sm:$0xff]
    %s46 = sld [smem:[#allocation3]]
    %v47 = vstv %s46
    %v48 = vmul.f32 %v47, %v38
    %v49 = vmul.f32 %v47, %v39
    %v50 = vmul.f32 %v47, %v40
    %v51 = vmul.f32 %v47, %v41
    %v52 = vmul.f32 %v47, %v42
    %v53 = vmul.f32 %v47, %v43
    %v54 = vmul.f32 %v47, %v44
    %v55 = vmul.f32 %v47, %v45
    %s56 = sld [smem:[#allocation3 + $0x40]]
    %v57 = vstv %s56
    %v58 = vadd.f32 %v48, %v57
    %v59 = vadd.f32 %v49, %v57
    %v60 = vadd.f32 %v50, %v57
    %v61 = vadd.f32 %v51, %v57
    %v62 = vadd.f32 %v52, %v57
    %v63 = vadd.f32 %v53, %v57
    %v64 = vadd.f32 %v54, %v57
    %v65 = vadd.f32 %v55, %v57
    %v66 = vmax.f32 %v58, 0.0
    %v67 = vmax.f32 %v59, 0.0
    %v68 = vmax.f32 %v60, 0.0
    %v69 = vmax.f32 %v61, 0.0
    %v70 = vmax.f32 %v62, 0.0
    %v71 = vmax.f32 %v63, 0.0
    %v72 = vmax.f32 %v64, 0.0
    %v73 = vmax.f32 %v65, 0.0
    %s74 = sld [smem:[#allocation3 + $0x80]]
    %v75 = vstv %s74
    %v76 = vmul.f32 %v75, %v66
    %v77 = vmul.f32 %v75, %v67
    %v78 = vmul.f32 %v75, %v68
    %v79 = vmul.f32 %v75, %v69
    %v80 = vmul.f32 %v75, %v70
    %v81 = vmul.f32 %v75, %v71
    %v82 = vmul.f32 %v75, %v72
    %v83 = vmul.f32 %v75, %v73
    %v84 = vadd.f32 %v76, 0.0
    %v85 = vadd.f32 %v77, 0.0
    %v86 = vadd.f32 %v78, 0.0
    %v87 = vadd.f32 %v79, 0.0
    %v88 = vadd.f32 %v80, 0.0
    %v89 = vadd.f32 %v81, 0.0
    %v90 = vadd.f32 %v82, 0.0
    %v91 = vadd.f32 %v83, 0.0
    %s92 = sld [smem:[#allocation3 + $0x1]]
    %v93 = vstv %s92
    %v94 = vmul.f32 %v93, %v38
    %v95 = vmul.f32 %v93, %v39
    %v96 = vmul.f32 %v93, %v40
    %v97 = vmul.f32 %v93, %v41
    %v98 = vmul.f32 %v93, %v42
    %v99 = vmul.f32 %v93, %v43
    %v100 = vmul.f32 %v93, %v44
    %v101 = vmul.f32 %v93, %v45
    %s102 = sld [smem:[#allocation3 + $0x41]]
    %v103 = vstv %s102
    %v104 = vadd.f32 %v94, %v103
    %v105 = vadd.f32 %v95, %v103
    %v106 = vadd.f32 %v96, %v103
    %v107 = vadd.f32 %v97, %v103
    %v108 = vadd.f32 %v98, %v103
    %v109 = vadd.f32 %v99, %v103
    %v110 = vadd.f32 %v100, %v103
    %v111 = vadd.f32 %v101, %v103
    %v112 = vmax.f32 %v104, 0.0
    %v113 = vmax.f32 %v105, 0.0
    %v114 = vmax.f32 %v106, 0.0
    %v115 = vmax.f32 %v107, 0.0
    %v116 = vmax.f32 %v108, 0.0
    %v117 = vmax.f32 %v109, 0.0
    %v118 = vmax.f32 %v110, 0.0
    %v119 = vmax.f32 %v111, 0.0
    %s120 = sld [smem:[#allocation3 + $0x81]]
    %v121 = vstv %s120
    %v122 = vmul.f32 %v121, %v112
    %v123 = vmul.f32 %v121, %v113
    %v124 = vmul.f32 %v121, %v114
    %v125 = vmul.f32 %v121, %v115
    %v126 = vmul.f32 %v121, %v116
    %v127 = vmul.f32 %v121, %v117
    %v128 = vmul.f32 %v121, %v118
    %v129 = vmul.f32 %v121, %v119
    %v130 = vadd.f32 %v84, %v122
    %v131 = vadd.f32 %v85, %v123
    %v132 = vadd.f32 %v86, %v124
    %v133 = vadd.f32 %v87, %v125
    %v134 = vadd.f32 %v88, %v126
    %v135 = vadd.f32 %v89, %v127
    %v136 = vadd.f32 %v90, %v128
    %v137 = vadd.f32 %v91, %v129
    %s138 = sld [smem:[#allocation3 + $0x2]]
    %v139 = vstv %s138
    %v140 = vmul.f32 %v139, %v38
    %v141 = vmul.f32 %v139, %v39
    %v142 = vmul.f32 %v139, %v40
    %v143 = vmul.f32 %v139, %v41
    %v144 = vmul.f32 %v139, %v42
    %v145 = vmul.f32 %v139, %v43
    %v146 = vmul.f32 %v139, %v44
    %v147 = vmul.f32 %v139, %v45
    %s148 = sld [smem:[#allocation3 + $0x42]]
    %v149 = vstv %s148
    %v150 = vadd.f32 %v140, %v149
    %v151 = vadd.f32 %v141, %v149
    %v152 = vadd.f32 %v142, %v149
    %v153 = vadd.f32 %v143, %v149
    %v154 = vadd.f32 %v144, %v149
    %v155 = vadd.f32 %v145, %v149
    %v156 = vadd.f32 %v146, %v149
    %v157 = vadd.f32 %v147, %v149
    %v158 = vmax.f32 %v150, 0.0
    %v159 = vmax.f32 %v151, 0.0
    %v160 = vmax.f32 %v152, 0.0
    %v161 = vmax.f32 %v153, 0.0
    %v162 = vmax.f32 %v154, 0.0
    %v163 = vmax.f32 %v155, 0.0
    %v164 = vmax.f32 %v156, 0.0
    %v165 = vmax.f32 %v157, 0.0
    %s166 = sld [smem:[#allocation3 + $0x82]]
    %v167 = vstv %s166
    %v168 = vmul.f32 %v167, %v158
    %v169 = vmul.f32 %v167, %v159
    %v170 = vmul.f32 %v167, %v160
    %v171 = vmul.f32 %v167, %v161
    %v172 = vmul.f32 %v167, %v162
    %v173 = vmul.f32 %v167, %v163
    %v174 = vmul.f32 %v167, %v164
    %v175 = vmul.f32 %v167, %v165
    %v176 = vadd.f32 %v130, %v168
    %v177 = vadd.f32 %v131, %v169
    %v178 = vadd.f32 %v132, %v170
    %v179 = vadd.f32 %v133, %v171
    %v180 = vadd.f32 %v134, %v172
    %v181 = vadd.f32 %v135, %v173
    %v182 = vadd.f32 %v136, %v174
    %v183 = vadd.f32 %v137, %v175
    %s184 = sld [smem:[#allocation3 + $0x3]]
    %v185 = vstv %s184
    %v186 = vmul.f32 %v185, %v38
    %v187 = vmul.f32 %v185, %v39
    %v188 = vmul.f32 %v185, %v40
    %v189 = vmul.f32 %v185, %v41
    %v190 = vmul.f32 %v185, %v42
    %v191 = vmul.f32 %v185, %v43
    %v192 = vmul.f32 %v185, %v44
    %v193 = vmul.f32 %v185, %v45
    %s194 = sld [smem:[#allocation3 + $0x43]]
    %v195 = vstv %s194
    %v196 = vadd.f32 %v186, %v195
    %v197 = vadd.f32 %v187, %v195
    %v198 = vadd.f32 %v188, %v195
    %v199 = vadd.f32 %v189, %v195
    %v200 = vadd.f32 %v190, %v195
    %v201 = vadd.f32 %v191, %v195
    %v202 = vadd.f32 %v192, %v195
    %v203 = vadd.f32 %v193, %v195
    %v204 = vmax.f32 %v196, 0.0
    %v205 = vmax.f32 %v197, 0.0
    %v206 = vmax.f32 %v198, 0.0
    %v207 = vmax.f32 %v199, 0.0
    %v208 = vmax.f32 %v200, 0.0
    %v209 = vmax.f32 %v201, 0.0
    %v210 = vmax.f32 %v202, 0.0
    %v211 = vmax.f32 %v203, 0.0
    %s212 = sld [smem:[#allocation3 + $0x83]]
    %v213 = vstv %s212
    %v214 = vmul.f32 %v213, %v204
    %v215 = vmul.f32 %v213, %v205
    %v216 = vmul.f32 %v213, %v206
    %v217 = vmul.f32 %v213, %v207
    %v218 = vmul.f32 %v213, %v208
    %v219 = vmul.f32 %v213, %v209
    %v220 = vmul.f32 %v213, %v210
    %v221 = vmul.f32 %v213, %v211
    %v222 = vadd.f32 %v176, %v214
    %v223 = vadd.f32 %v177, %v215
    %v224 = vadd.f32 %v178, %v216
    %v225 = vadd.f32 %v179, %v217
    %v226 = vadd.f32 %v180, %v218
    %v227 = vadd.f32 %v181, %v219
    %v228 = vadd.f32 %v182, %v220
    %v229 = vadd.f32 %v183, %v221
    %s230 = sld [smem:[#allocation3 + $0x4]]
    %v231 = vstv %s230
    %v232 = vmul.f32 %v231, %v38
    %v233 = vmul.f32 %v231, %v39
    %v234 = vmul.f32 %v231, %v40
    %v235 = vmul.f32 %v231, %v41
    %v236 = vmul.f32 %v231, %v42
    %v237 = vmul.f32 %v231, %v43
    %v238 = vmul.f32 %v231, %v44
    %v239 = vmul.f32 %v231, %v45
    %s240 = sld [smem:[#allocation3 + $0x44]]
    %v241 = vstv %s240
    %v242 = vadd.f32 %v232, %v241
    %v243 = vadd.f32 %v233, %v241
    %v244 = vadd.f32 %v234, %v241
    %v245 = vadd.f32 %v235, %v241
    %v246 = vadd.f32 %v236, %v241
    %v247 = vadd.f32 %v237, %v241
    %v248 = vadd.f32 %v238, %v241
    %v249 = vadd.f32 %v239, %v241
    %v250 = vmax.f32 %v242, 0.0
    %v251 = vmax.f32 %v243, 0.0
    %v252 = vmax.f32 %v244, 0.0
    %v253 = vmax.f32 %v245, 0.0
    %v254 = vmax.f32 %v246, 0.0
    %v255 = vmax.f32 %v247, 0.0
    %v256 = vmax.f32 %v248, 0.0
    %v257 = vmax.f32 %v249, 0.0
    %s258 = sld [smem:[#allocation3 + $0x84]]
    %v259 = vstv %s258
    %v260 = vmul.f32 %v259, %v250
    %v261 = vmul.f32 %v259, %v251
    %v262 = vmul.f32 %v259, %v252
    %v263 = vmul.f32 %v259, %v253
    %v264 = vmul.f32 %v259, %v254
    %v265 = vmul.f32 %v259, %v255
    %v266 = vmul.f32 %v259, %v256
    %v267 = vmul.f32 %v259, %v257
    %v268 = vadd.f32 %v222, %v260
    %v269 = vadd.f32 %v223, %v261
    %v270 = vadd.f32 %v224, %v262
    %v271 = vadd.f32 %v225, %v263
    %v272 = vadd.f32 %v226, %v264
    %v273 = vadd.f32 %v227, %v265
    %v274 = vadd.f32 %v228, %v266
    %v275 = vadd.f32 %v229, %v267
    %s276 = sld [smem:[#allocation3 + $0x5]]
    %v277 = vstv %s276
    %v278 = vmul.f32 %v277, %v38
    %v279 = vmul.f32 %v277, %v39
    %v280 = vmul.f32 %v277, %v40
    %v281 = vmul.f32 %v277, %v41
    %v282 = vmul.f32 %v277, %v42
    %v283 = vmul.f32 %v277, %v43
    %v284 = vmul.f32 %v277, %v44
    %v285 = vmul.f32 %v277, %v45
    %s286 = sld [smem:[#allocation3 + $0x45]]
    %v287 = vstv %s286
    %v288 = vadd.f32 %v278, %v287
    %v289 = vadd.f32 %v279, %v287
    %v290 = vadd.f32 %v280, %v287
    %v291 = vadd.f32 %v281, %v287
    %v292 = vadd.f32 %v282, %v287
    %v293 = vadd.f32 %v283, %v287
    %v294 = vadd.f32 %v284, %v287
    %v295 = vadd.f32 %v285, %v287
    %v296 = vmax.f32 %v288, 0.0
    %v297 = vmax.f32 %v289, 0.0
    %v298 = vmax.f32 %v290, 0.0
    %v299 = vmax.f32 %v291, 0.0
    %v300 = vmax.f32 %v292, 0.0
    %v301 = vmax.f32 %v293, 0.0
    %v302 = vmax.f32 %v294, 0.0
    %v303 = vmax.f32 %v295, 0.0
    %s304 = sld [smem:[#allocation3 + $0x85]]
    %v305 = vstv %s304
    %v306 = vmul.f32 %v305, %v296
    %v307 = vmul.f32 %v305, %v297
    %v308 = vmul.f32 %v305, %v298
    %v309 = vmul.f32 %v305, %v299
    %v310 = vmul.f32 %v305, %v300
    %v311 = vmul.f32 %v305, %v301
    %v312 = vmul.f32 %v305, %v302
    %v313 = vmul.f32 %v305, %v303
    %v314 = vadd.f32 %v268, %v306
    %v315 = vadd.f32 %v269, %v307
    %v316 = vadd.f32 %v270, %v308
    %v317 = vadd.f32 %v271, %v309
    %v318 = vadd.f32 %v272, %v310
    %v319 = vadd.f32 %v273, %v311
    %v320 = vadd.f32 %v274, %v312
    %v321 = vadd.f32 %v275, %v313
    %s322 = sld [smem:[#allocation3 + $0x6]]
    %v323 = vstv %s322
    %v324 = vmul.f32 %v323, %v38
    %v325 = vmul.f32 %v323, %v39
    %v326 = vmul.f32 %v323, %v40
    %v327 = vmul.f32 %v323, %v41
    %v328 = vmul.f32 %v323, %v42
    %v329 = vmul.f32 %v323, %v43
    %v330 = vmul.f32 %v323, %v44
    %v331 = vmul.f32 %v323, %v45
    %s332 = sld [smem:[#allocation3 + $0x46]]
    %v333 = vstv %s332
    %v334 = vadd.f32 %v324, %v333
    %v335 = vadd.f32 %v325, %v333
    %v336 = vadd.f32 %v326, %v333
    %v337 = vadd.f32 %v327, %v333
    %v338 = vadd.f32 %v328, %v333
    %v339 = vadd.f32 %v329, %v333
    %v340 = vadd.f32 %v330, %v333
    %v341 = vadd.f32 %v331, %v333
    %v342 = vmax.f32 %v334, 0.0
    %v343 = vmax.f32 %v335, 0.0
    %v344 = vmax.f32 %v336, 0.0
    %v345 = vmax.f32 %v337, 0.0
    %v346 = vmax.f32 %v338, 0.0
    %v347 = vmax.f32 %v339, 0.0
    %v348 = vmax.f32 %v340, 0.0
    %v349 = vmax.f32 %v341, 0.0
    %s350 = sld [smem:[#allocation3 + $0x86]]
    %v351 = vstv %s350
    %v352 = vmul.f32 %v351, %v342
    %v353 = vmul.f32 %v351, %v343
    %v354 = vmul.f32 %v351, %v344
    %v355 = vmul.f32 %v351, %v345
    %v356 = vmul.f32 %v351, %v346
    %v357 = vmul.f32 %v351, %v347
    %v358 = vmul.f32 %v351, %v348
    %v359 = vmul.f32 %v351, %v349
    %v360 = vadd.f32 %v314, %v352
    %v361 = vadd.f32 %v315, %v353
    %v362 = vadd.f32 %v316, %v354
    %v363 = vadd.f32 %v317, %v355
    %v364 = vadd.f32 %v318, %v356
    %v365 = vadd.f32 %v319, %v357
    %v366 = vadd.f32 %v320, %v358
    %v367 = vadd.f32 %v321, %v359
    %s368 = sld [smem:[#allocation3 + $0x7]]
    %v369 = vstv %s368
    %v370 = vmul.f32 %v369, %v38
    %v371 = vmul.f32 %v369, %v39
    %v372 = vmul.f32 %v369, %v40
    %v373 = vmul.f32 %v369, %v41
    %v374 = vmul.f32 %v369, %v42
    %v375 = vmul.f32 %v369, %v43
    %v376 = vmul.f32 %v369, %v44
    %v377 = vmul.f32 %v369, %v45
    %s378 = sld [smem:[#allocation3 + $0x47]]
    %v379 = vstv %s378
    %v380 = vadd.f32 %v370, %v379
    %v381 = vadd.f32 %v371, %v379
    %v382 = vadd.f32 %v372, %v379
    %v383 = vadd.f32 %v373, %v379
    %v384 = vadd.f32 %v374, %v379
    %v385 = vadd.f32 %v375, %v379
    %v386 = vadd.f32 %v376, %v379
    %v387 = vadd.f32 %v377, %v379
    %v388 = vmax.f32 %v380, 0.0
    %v389 = vmax.f32 %v381, 0.0
    %v390 = vmax.f32 %v382, 0.0
    %v391 = vmax.f32 %v383, 0.0
    %v392 = vmax.f32 %v384, 0.0
    %v393 = vmax.f32 %v385, 0.0
    %v394 = vmax.f32 %v386, 0.0
    %v395 = vmax.f32 %v387, 0.0
    %s396 = sld [smem:[#allocation3 + $0x87]]
    %v397 = vstv %s396
    %v398 = vmul.f32 %v397, %v388
    %v399 = vmul.f32 %v397, %v389
    %v400 = vmul.f32 %v397, %v390
    %v401 = vmul.f32 %v397, %v391
    %v402 = vmul.f32 %v397, %v392
    %v403 = vmul.f32 %v397, %v393
    %v404 = vmul.f32 %v397, %v394
    %v405 = vmul.f32 %v397, %v395
    %v406 = vadd.f32 %v360, %v398
    %v407 = vadd.f32 %v361, %v399
    %v408 = vadd.f32 %v362, %v400
    %v409 = vadd.f32 %v363, %v401
    %v410 = vadd.f32 %v364, %v402
    %v411 = vadd.f32 %v365, %v403
    %v412 = vadd.f32 %v366, %v404
    %v413 = vadd.f32 %v367, %v405
    %s414 = sld [smem:[#allocation3 + $0x8]]
    %v415 = vstv %s414
    %v416 = vmul.f32 %v415, %v38
    %v417 = vmul.f32 %v415, %v39
    %v418 = vmul.f32 %v415, %v40
    %v419 = vmul.f32 %v415, %v41
    %v420 = vmul.f32 %v415, %v42
    %v421 = vmul.f32 %v415, %v43
    %v422 = vmul.f32 %v415, %v44
    %v423 = vmul.f32 %v415, %v45
    %s424 = sld [smem:[#allocation3 + $0x48]]
    %v425 = vstv %s424
    %v426 = vadd.f32 %v416, %v425
    %v427 = vadd.f32 %v417, %v425
    %v428 = vadd.f32 %v418, %v425
    %v429 = vadd.f32 %v419, %v425
    %v430 = vadd.f32 %v420, %v425
    %v431 = vadd.f32 %v421, %v425
    %v432 = vadd.f32 %v422, %v425
    %v433 = vadd.f32 %v423, %v425
    %v434 = vmax.f32 %v426, 0.0
    %v435 = vmax.f32 %v427, 0.0
    %v436 = vmax.f32 %v428, 0.0
    %v437 = vmax.f32 %v429, 0.0
    %v438 = vmax.f32 %v430, 0.0
    %v439 = vmax.f32 %v431, 0.0
    %v440 = vmax.f32 %v432, 0.0
    %v441 = vmax.f32 %v433, 0.0
    %s442 = sld [smem:[#allocation3 + $0x88]]
    %v443 = vstv %s442
    %v444 = vmul.f32 %v443, %v434
    %v445 = vmul.f32 %v443, %v435
    %v446 = vmul.f32 %v443, %v436
    %v447 = vmul.f32 %v443, %v437
    %v448 = vmul.f32 %v443, %v438
    %v449 = vmul.f32 %v443, %v439
    %v450 = vmul.f32 %v443, %v440
    %v451 = vmul.f32 %v443, %v441
    %v452 = vadd.f32 %v406, %v444
    %v453 = vadd.f32 %v407, %v445
    %v454 = vadd.f32 %v408, %v446
    %v455 = vadd.f32 %v409, %v447
    %v456 = vadd.f32 %v410, %v448
    %v457 = vadd.f32 %v411, %v449
    %v458 = vadd.f32 %v412, %v450
    %v459 = vadd.f32 %v413, %v451
    %s460 = sld [smem:[#allocation3 + $0x9]]
    %v461 = vstv %s460
    %v462 = vmul.f32 %v461, %v38
    %v463 = vmul.f32 %v461, %v39
    %v464 = vmul.f32 %v461, %v40
    %v465 = vmul.f32 %v461, %v41
    %v466 = vmul.f32 %v461, %v42
    %v467 = vmul.f32 %v461, %v43
    %v468 = vmul.f32 %v461, %v44
    %v469 = vmul.f32 %v461, %v45
    %s470 = sld [smem:[#allocation3 + $0x49]]
    %v471 = vstv %s470
    %v472 = vadd.f32 %v462, %v471
    %v473 = vadd.f32 %v463, %v471
    %v474 = vadd.f32 %v464, %v471
    %v475 = vadd.f32 %v465, %v471
    %v476 = vadd.f32 %v466, %v471
    %v477 = vadd.f32 %v467, %v471
    %v478 = vadd.f32 %v468, %v471
    %v479 = vadd.f32 %v469, %v471
    %v480 = vmax.f32 %v472, 0.0
    %v481 = vmax.f32 %v473, 0.0
    %v482 = vmax.f32 %v474, 0.0
    %v483 = vmax.f32 %v475, 0.0
    %v484 = vmax.f32 %v476, 0.0
    %v485 = vmax.f32 %v477, 0.0
    %v486 = vmax.f32 %v478, 0.0
    %v487 = vmax.f32 %v479, 0.0
    %s488 = sld [smem:[#allocation3 + $0x89]]
    %v489 = vstv %s488
    %v490 = vmul.f32 %v489, %v480
    %v491 = vmul.f32 %v489, %v481
    %v492 = vmul.f32 %v489, %v482
    %v493 = vmul.f32 %v489, %v483
    %v494 = vmul.f32 %v489, %v484
    %v495 = vmul.f32 %v489, %v485
    %v496 = vmul.f32 %v489, %v486
    %v497 = vmul.f32 %v489, %v487
    %v498 = vadd.f32 %v452, %v490
    %v499 = vadd.f32 %v453, %v491
    %v500 = vadd.f32 %v454, %v492
    %v501 = vadd.f32 %v455, %v493
    %v502 = vadd.f32 %v456, %v494
    %v503 = vadd.f32 %v457, %v495
    %v504 = vadd.f32 %v458, %v496
    %v505 = vadd.f32 %v459, %v497
    %s506 = sld [smem:[#allocation3 + $0xa]]
    %v507 = vstv %s506
    %v508 = vmul.f32 %v507, %v38
    %v509 = vmul.f32 %v507, %v39
    %v510 = vmul.f32 %v507, %v40
    %v511 = vmul.f32 %v507, %v41
    %v512 = vmul.f32 %v507, %v42
    %v513 = vmul.f32 %v507, %v43
    %v514 = vmul.f32 %v507, %v44
    %v515 = vmul.f32 %v507, %v45
    %s516 = sld [smem:[#allocation3 + $0x4a]]
    %v517 = vstv %s516
    %v518 = vadd.f32 %v508, %v517
    %v519 = vadd.f32 %v509, %v517
    %v520 = vadd.f32 %v510, %v517
    %v521 = vadd.f32 %v511, %v517
    %v522 = vadd.f32 %v512, %v517
    %v523 = vadd.f32 %v513, %v517
    %v524 = vadd.f32 %v514, %v517
    %v525 = vadd.f32 %v515, %v517
    %v526 = vmax.f32 %v518, 0.0
    %v527 = vmax.f32 %v519, 0.0
    %v528 = vmax.f32 %v520, 0.0
    %v529 = vmax.f32 %v521, 0.0
    %v530 = vmax.f32 %v522, 0.0
    %v531 = vmax.f32 %v523, 0.0
    %v532 = vmax.f32 %v524, 0.0
    %v533 = vmax.f32 %v525, 0.0
    %s534 = sld [smem:[#allocation3 + $0x8a]]
    %v535 = vstv %s534
    %v536 = vmul.f32 %v535, %v526
    %v537 = vmul.f32 %v535, %v527
    %v538 = vmul.f32 %v535, %v528
    %v539 = vmul.f32 %v535, %v529
    %v540 = vmul.f32 %v535, %v530
    %v541 = vmul.f32 %v535, %v531
    %v542 = vmul.f32 %v535, %v532
    %v543 = vmul.f32 %v535, %v533
    %v544 = vadd.f32 %v498, %v536
    %v545 = vadd.f32 %v499, %v537
    %v546 = vadd.f32 %v500, %v538
    %v547 = vadd.f32 %v501, %v539
    %v548 = vadd.f32 %v502, %v540
    %v549 = vadd.f32 %v503, %v541
    %v550 = vadd.f32 %v504, %v542
    %v551 = vadd.f32 %v505, %v543
    %s552 = sld [smem:[#allocation3 + $0xb]]
    %v553 = vstv %s552
    %v554 = vmul.f32 %v553, %v38
    %v555 = vmul.f32 %v553, %v39
    %v556 = vmul.f32 %v553, %v40
    %v557 = vmul.f32 %v553, %v41
    %v558 = vmul.f32 %v553, %v42
    %v559 = vmul.f32 %v553, %v43
    %v560 = vmul.f32 %v553, %v44
    %v561 = vmul.f32 %v553, %v45
    %s562 = sld [smem:[#allocation3 + $0x4b]]
    %v563 = vstv %s562
    %v564 = vadd.f32 %v554, %v563
    %v565 = vadd.f32 %v555, %v563
    %v566 = vadd.f32 %v556, %v563
    %v567 = vadd.f32 %v557, %v563
    %v568 = vadd.f32 %v558, %v563
    %v569 = vadd.f32 %v559, %v563
    %v570 = vadd.f32 %v560, %v563
    %v571 = vadd.f32 %v561, %v563
    %v572 = vmax.f32 %v564, 0.0
    %v573 = vmax.f32 %v565, 0.0
    %v574 = vmax.f32 %v566, 0.0
    %v575 = vmax.f32 %v567, 0.0
    %v576 = vmax.f32 %v568, 0.0
    %v577 = vmax.f32 %v569, 0.0
    %v578 = vmax.f32 %v570, 0.0
    %v579 = vmax.f32 %v571, 0.0
    %s580 = sld [smem:[#allocation3 + $0x8b]]
    %v581 = vstv %s580
    %v582 = vmul.f32 %v581, %v572
    %v583 = vmul.f32 %v581, %v573
    %v584 = vmul.f32 %v581, %v574
    %v585 = vmul.f32 %v581, %v575
    %v586 = vmul.f32 %v581, %v576
    %v587 = vmul.f32 %v581, %v577
    %v588 = vmul.f32 %v581, %v578
    %v589 = vmul.f32 %v581, %v579
    %v590 = vadd.f32 %v544, %v582
    %v591 = vadd.f32 %v545, %v583
    %v592 = vadd.f32 %v546, %v584
    %v593 = vadd.f32 %v547, %v585
    %v594 = vadd.f32 %v548, %v586
    %v595 = vadd.f32 %v549, %v587
    %v596 = vadd.f32 %v550, %v588
    %v597 = vadd.f32 %v551, %v589
    %s598 = sld [smem:[#allocation3 + $0xc]]
    %v599 = vstv %s598
    %v600 = vmul.f32 %v599, %v38
    %v601 = vmul.f32 %v599, %v39
    %v602 = vmul.f32 %v599, %v40
    %v603 = vmul.f32 %v599, %v41
    %v604 = vmul.f32 %v599, %v42
    %v605 = vmul.f32 %v599, %v43
    %v606 = vmul.f32 %v599, %v44
    %v607 = vmul.f32 %v599, %v45
    %s608 = sld [smem:[#allocation3 + $0x4c]]
    %v609 = vstv %s608
    %v610 = vadd.f32 %v600, %v609
    %v611 = vadd.f32 %v601, %v609
    %v612 = vadd.f32 %v602, %v609
    %v613 = vadd.f32 %v603, %v609
    %v614 = vadd.f32 %v604, %v609
    %v615 = vadd.f32 %v605, %v609
    %v616 = vadd.f32 %v606, %v609
    %v617 = vadd.f32 %v607, %v609
    %v618 = vmax.f32 %v610, 0.0
    %v619 = vmax.f32 %v611, 0.0
    %v620 = vmax.f32 %v612, 0.0
    %v621 = vmax.f32 %v613, 0.0
    %v622 = vmax.f32 %v614, 0.0
    %v623 = vmax.f32 %v615, 0.0
    %v624 = vmax.f32 %v616, 0.0
    %v625 = vmax.f32 %v617, 0.0
    %s626 = sld [smem:[#allocation3 + $0x8c]]
    %v627 = vstv %s626
    %v628 = vmul.f32 %v627, %v618
    %v629 = vmul.f32 %v627, %v619
    %v630 = vmul.f32 %v627, %v620
    %v631 = vmul.f32 %v627, %v621
    %v632 = vmul.f32 %v627, %v622
    %v633 = vmul.f32 %v627, %v623
    %v634 = vmul.f32 %v627, %v624
    %v635 = vmul.f32 %v627, %v625
    %v636 = vadd.f32 %v590, %v628
    %v637 = vadd.f32 %v591, %v629
    %v638 = vadd.f32 %v592, %v630
    %v639 = vadd.f32 %v593, %v631
    %v640 = vadd.f32 %v594, %v632
    %v641 = vadd.f32 %v595, %v633
    %v642 = vadd.f32 %v596, %v634
    %v643 = vadd.f32 %v597, %v635
    %s644 = sld [smem:[#allocation3 + $0xd]]
    %v645 = vstv %s644
    %v646 = vmul.f32 %v645, %v38
    %v647 = vmul.f32 %v645, %v39
    %v648 = vmul.f32 %v645, %v40
    %v649 = vmul.f32 %v645, %v41
    %v650 = vmul.f32 %v645, %v42
    %v651 = vmul.f32 %v645, %v43
    %v652 = vmul.f32 %v645, %v44
    %v653 = vmul.f32 %v645, %v45
    %s654 = sld [smem:[#allocation3 + $0x4d]]
    %v655 = vstv %s654
    %v656 = vadd.f32 %v646, %v655
    %v657 = vadd.f32 %v647, %v655
    %v658 = vadd.f32 %v648, %v655
    %v659 = vadd.f32 %v649, %v655
    %v660 = vadd.f32 %v650, %v655
    %v661 = vadd.f32 %v651, %v655
    %v662 = vadd.f32 %v652, %v655
    %v663 = vadd.f32 %v653, %v655
    %v664 = vmax.f32 %v656, 0.0
    %v665 = vmax.f32 %v657, 0.0
    %v666 = vmax.f32 %v658, 0.0
    %v667 = vmax.f32 %v659, 0.0
    %v668 = vmax.f32 %v660, 0.0
    %v669 = vmax.f32 %v661, 0.0
    %v670 = vmax.f32 %v662, 0.0
    %v671 = vmax.f32 %v663, 0.0
    %s672 = sld [smem:[#allocation3 + $0x8d]]
    %v673 = vstv %s672
    %v674 = vmul.f32 %v673, %v664
    %v675 = vmul.f32 %v673, %v665
    %v676 = vmul.f32 %v673, %v666
    %v677 = vmul.f32 %v673, %v667
    %v678 = vmul.f32 %v673, %v668
    %v679 = vmul.f32 %v673, %v669
    %v680 = vmul.f32 %v673, %v670
    %v681 = vmul.f32 %v673, %v671
    %v682 = vadd.f32 %v636, %v674
    %v683 = vadd.f32 %v637, %v675
    %v684 = vadd.f32 %v638, %v676
    %v685 = vadd.f32 %v639, %v677
    %v686 = vadd.f32 %v640, %v678
    %v687 = vadd.f32 %v641, %v679
    %v688 = vadd.f32 %v642, %v680
    %v689 = vadd.f32 %v643, %v681
    %s690 = sld [smem:[#allocation3 + $0xe]]
    %v691 = vstv %s690
    %v692 = vmul.f32 %v691, %v38
    %v693 = vmul.f32 %v691, %v39
    %v694 = vmul.f32 %v691, %v40
    %v695 = vmul.f32 %v691, %v41
    %v696 = vmul.f32 %v691, %v42
    %v697 = vmul.f32 %v691, %v43
    %v698 = vmul.f32 %v691, %v44
    %v699 = vmul.f32 %v691, %v45
    %s700 = sld [smem:[#allocation3 + $0x4e]]
    %v701 = vstv %s700
    %v702 = vadd.f32 %v692, %v701
    %v703 = vadd.f32 %v693, %v701
    %v704 = vadd.f32 %v694, %v701
    %v705 = vadd.f32 %v695, %v701
    %v706 = vadd.f32 %v696, %v701
    %v707 = vadd.f32 %v697, %v701
    %v708 = vadd.f32 %v698, %v701
    %v709 = vadd.f32 %v699, %v701
    %v710 = vmax.f32 %v702, 0.0
    %v711 = vmax.f32 %v703, 0.0
    %v712 = vmax.f32 %v704, 0.0
    %v713 = vmax.f32 %v705, 0.0
    %v714 = vmax.f32 %v706, 0.0
    %v715 = vmax.f32 %v707, 0.0
    %v716 = vmax.f32 %v708, 0.0
    %v717 = vmax.f32 %v709, 0.0
    %s718 = sld [smem:[#allocation3 + $0x8e]]
    %v719 = vstv %s718
    %v720 = vmul.f32 %v719, %v710
    %v721 = vmul.f32 %v719, %v711
    %v722 = vmul.f32 %v719, %v712
    %v723 = vmul.f32 %v719, %v713
    %v724 = vmul.f32 %v719, %v714
    %v725 = vmul.f32 %v719, %v715
    %v726 = vmul.f32 %v719, %v716
    %v727 = vmul.f32 %v719, %v717
    %v728 = vadd.f32 %v682, %v720
    %v729 = vadd.f32 %v683, %v721
    %v730 = vadd.f32 %v684, %v722
    %v731 = vadd.f32 %v685, %v723
    %v732 = vadd.f32 %v686, %v724
    %v733 = vadd.f32 %v687, %v725
    %v734 = vadd.f32 %v688, %v726
    %v735 = vadd.f32 %v689, %v727
    %s736 = sld [smem:[#allocation3 + $0xf]]
    %v737 = vstv %s736
    %v738 = vmul.f32 %v737, %v38
    %v739 = vmul.f32 %v737, %v39
    %v740 = vmul.f32 %v737, %v40
    %v741 = vmul.f32 %v737, %v41
    %v742 = vmul.f32 %v737, %v42
    %v743 = vmul.f32 %v737, %v43
    %v744 = vmul.f32 %v737, %v44
    %v745 = vmul.f32 %v737, %v45
    %s746 = sld [smem:[#allocation3 + $0x4f]]
    %v747 = vstv %s746
    %v748 = vadd.f32 %v738, %v747
    %v749 = vadd.f32 %v739, %v747
    %v750 = vadd.f32 %v740, %v747
    %v751 = vadd.f32 %v741, %v747
    %v752 = vadd.f32 %v742, %v747
    %v753 = vadd.f32 %v743, %v747
    %v754 = vadd.f32 %v744, %v747
    %v755 = vadd.f32 %v745, %v747
    %v756 = vmax.f32 %v748, 0.0
    %v757 = vmax.f32 %v749, 0.0
    %v758 = vmax.f32 %v750, 0.0
    %v759 = vmax.f32 %v751, 0.0
    %v760 = vmax.f32 %v752, 0.0
    %v761 = vmax.f32 %v753, 0.0
    %v762 = vmax.f32 %v754, 0.0
    %v763 = vmax.f32 %v755, 0.0
    %s764 = sld [smem:[#allocation3 + $0x8f]]
    %v765 = vstv %s764
    %v766 = vmul.f32 %v765, %v756
    %v767 = vmul.f32 %v765, %v757
    %v768 = vmul.f32 %v765, %v758
    %v769 = vmul.f32 %v765, %v759
    %v770 = vmul.f32 %v765, %v760
    %v771 = vmul.f32 %v765, %v761
    %v772 = vmul.f32 %v765, %v762
    %v773 = vmul.f32 %v765, %v763
    %v774 = vadd.f32 %v728, %v766
    %v775 = vadd.f32 %v729, %v767
    %v776 = vadd.f32 %v730, %v768
    %v777 = vadd.f32 %v731, %v769
    %v778 = vadd.f32 %v732, %v770
    %v779 = vadd.f32 %v733, %v771
    %v780 = vadd.f32 %v734, %v772
    %v781 = vadd.f32 %v735, %v773
    %s782 = sld [smem:[#allocation3 + $0x10]]
    %v783 = vstv %s782
    %v784 = vmul.f32 %v783, %v38
    %v785 = vmul.f32 %v783, %v39
    %v786 = vmul.f32 %v783, %v40
    %v787 = vmul.f32 %v783, %v41
    %v788 = vmul.f32 %v783, %v42
    %v789 = vmul.f32 %v783, %v43
    %v790 = vmul.f32 %v783, %v44
    %v791 = vmul.f32 %v783, %v45
    %s792 = sld [smem:[#allocation3 + $0x50]]
    %v793 = vstv %s792
    %v794 = vadd.f32 %v784, %v793
    %v795 = vadd.f32 %v785, %v793
    %v796 = vadd.f32 %v786, %v793
    %v797 = vadd.f32 %v787, %v793
    %v798 = vadd.f32 %v788, %v793
    %v799 = vadd.f32 %v789, %v793
    %v800 = vadd.f32 %v790, %v793
    %v801 = vadd.f32 %v791, %v793
    %v802 = vmax.f32 %v794, 0.0
    %v803 = vmax.f32 %v795, 0.0
    %v804 = vmax.f32 %v796, 0.0
    %v805 = vmax.f32 %v797, 0.0
    %v806 = vmax.f32 %v798, 0.0
    %v807 = vmax.f32 %v799, 0.0
    %v808 = vmax.f32 %v800, 0.0
    %v809 = vmax.f32 %v801, 0.0
    %s810 = sld [smem:[#allocation3 + $0x90]]
    %v811 = vstv %s810
    %v812 = vmul.f32 %v811, %v802
    %v813 = vmul.f32 %v811, %v803
    %v814 = vmul.f32 %v811, %v804
    %v815 = vmul.f32 %v811, %v805
    %v816 = vmul.f32 %v811, %v806
    %v817 = vmul.f32 %v811, %v807
    %v818 = vmul.f32 %v811, %v808
    %v819 = vmul.f32 %v811, %v809
    %v820 = vadd.f32 %v774, %v812
    %v821 = vadd.f32 %v775, %v813
    %v822 = vadd.f32 %v776, %v814
    %v823 = vadd.f32 %v777, %v815
    %v824 = vadd.f32 %v778, %v816
    %v825 = vadd.f32 %v779, %v817
    %v826 = vadd.f32 %v780, %v818
    %v827 = vadd.f32 %v781, %v819
    %s828 = sld [smem:[#allocation3 + $0x11]]
    %v829 = vstv %s828
    %v830 = vmul.f32 %v829, %v38
    %v831 = vmul.f32 %v829, %v39
    %v832 = vmul.f32 %v829, %v40
    %v833 = vmul.f32 %v829, %v41
    %v834 = vmul.f32 %v829, %v42
    %v835 = vmul.f32 %v829, %v43
    %v836 = vmul.f32 %v829, %v44
    %v837 = vmul.f32 %v829, %v45
    %s838 = sld [smem:[#allocation3 + $0x51]]
    %v839 = vstv %s838
    %v840 = vadd.f32 %v830, %v839
    %v841 = vadd.f32 %v831, %v839
    %v842 = vadd.f32 %v832, %v839
    %v843 = vadd.f32 %v833, %v839
    %v844 = vadd.f32 %v834, %v839
    %v845 = vadd.f32 %v835, %v839
    %v846 = vadd.f32 %v836, %v839
    %v847 = vadd.f32 %v837, %v839
    %v848 = vmax.f32 %v840, 0.0
    %v849 = vmax.f32 %v841, 0.0
    %v850 = vmax.f32 %v842, 0.0
    %v851 = vmax.f32 %v843, 0.0
    %v852 = vmax.f32 %v844, 0.0
    %v853 = vmax.f32 %v845, 0.0
    %v854 = vmax.f32 %v846, 0.0
    %v855 = vmax.f32 %v847, 0.0
    %s856 = sld [smem:[#allocation3 + $0x91]]
    %v857 = vstv %s856
    %v858 = vmul.f32 %v857, %v848
    %v859 = vmul.f32 %v857, %v849
    %v860 = vmul.f32 %v857, %v850
    %v861 = vmul.f32 %v857, %v851
    %v862 = vmul.f32 %v857, %v852
    %v863 = vmul.f32 %v857, %v853
    %v864 = vmul.f32 %v857, %v854
    %v865 = vmul.f32 %v857, %v855
    %v866 = vadd.f32 %v820, %v858
    %v867 = vadd.f32 %v821, %v859
    %v868 = vadd.f32 %v822, %v860
    %v869 = vadd.f32 %v823, %v861
    %v870 = vadd.f32 %v824, %v862
    %v871 = vadd.f32 %v825, %v863
    %v872 = vadd.f32 %v826, %v864
    %v873 = vadd.f32 %v827, %v865
    %s874 = sld [smem:[#allocation3 + $0x12]]
    %v875 = vstv %s874
    %v876 = vmul.f32 %v875, %v38
    %v877 = vmul.f32 %v875, %v39
    %v878 = vmul.f32 %v875, %v40
    %v879 = vmul.f32 %v875, %v41
    %v880 = vmul.f32 %v875, %v42
    %v881 = vmul.f32 %v875, %v43
    %v882 = vmul.f32 %v875, %v44
    %v883 = vmul.f32 %v875, %v45
    %s884 = sld [smem:[#allocation3 + $0x52]]
    %v885 = vstv %s884
    %v886 = vadd.f32 %v876, %v885
    %v887 = vadd.f32 %v877, %v885
    %v888 = vadd.f32 %v878, %v885
    %v889 = vadd.f32 %v879, %v885
    %v890 = vadd.f32 %v880, %v885
    %v891 = vadd.f32 %v881, %v885
    %v892 = vadd.f32 %v882, %v885
    %v893 = vadd.f32 %v883, %v885
    %v894 = vmax.f32 %v886, 0.0
    %v895 = vmax.f32 %v887, 0.0
    %v896 = vmax.f32 %v888, 0.0
    %v897 = vmax.f32 %v889, 0.0
    %v898 = vmax.f32 %v890, 0.0
    %v899 = vmax.f32 %v891, 0.0
    %v900 = vmax.f32 %v892, 0.0
    %v901 = vmax.f32 %v893, 0.0
    %s902 = sld [smem:[#allocation3 + $0x92]]
    %v903 = vstv %s902
    %v904 = vmul.f32 %v903, %v894
    %v905 = vmul.f32 %v903, %v895
    %v906 = vmul.f32 %v903, %v896
    %v907 = vmul.f32 %v903, %v897
    %v908 = vmul.f32 %v903, %v898
    %v909 = vmul.f32 %v903, %v899
    %v910 = vmul.f32 %v903, %v900
    %v911 = vmul.f32 %v903, %v901
    %v912 = vadd.f32 %v866, %v904
    %v913 = vadd.f32 %v867, %v905
    %v914 = vadd.f32 %v868, %v906
    %v915 = vadd.f32 %v869, %v907
    %v916 = vadd.f32 %v870, %v908
    %v917 = vadd.f32 %v871, %v909
    %v918 = vadd.f32 %v872, %v910
    %v919 = vadd.f32 %v873, %v911
    %s920 = sld [smem:[#allocation3 + $0x13]]
    %v921 = vstv %s920
    %v922 = vmul.f32 %v921, %v38
    %v923 = vmul.f32 %v921, %v39
    %v924 = vmul.f32 %v921, %v40
    %v925 = vmul.f32 %v921, %v41
    %v926 = vmul.f32 %v921, %v42
    %v927 = vmul.f32 %v921, %v43
    %v928 = vmul.f32 %v921, %v44
    %v929 = vmul.f32 %v921, %v45
    %s930 = sld [smem:[#allocation3 + $0x53]]
    %v931 = vstv %s930
    %v932 = vadd.f32 %v922, %v931
    %v933 = vadd.f32 %v923, %v931
    %v934 = vadd.f32 %v924, %v931
    %v935 = vadd.f32 %v925, %v931
    %v936 = vadd.f32 %v926, %v931
    %v937 = vadd.f32 %v927, %v931
    %v938 = vadd.f32 %v928, %v931
    %v939 = vadd.f32 %v929, %v931
    %v940 = vmax.f32 %v932, 0.0
    %v941 = vmax.f32 %v933, 0.0
    %v942 = vmax.f32 %v934, 0.0
    %v943 = vmax.f32 %v935, 0.0
    %v944 = vmax.f32 %v936, 0.0
    %v945 = vmax.f32 %v937, 0.0
    %v946 = vmax.f32 %v938, 0.0
    %v947 = vmax.f32 %v939, 0.0
    %s948 = sld [smem:[#allocation3 + $0x93]]
    %v949 = vstv %s948
    %v950 = vmul.f32 %v949, %v940
    %v951 = vmul.f32 %v949, %v941
    %v952 = vmul.f32 %v949, %v942
    %v953 = vmul.f32 %v949, %v943
    %v954 = vmul.f32 %v949, %v944
    %v955 = vmul.f32 %v949, %v945
    %v956 = vmul.f32 %v949, %v946
    %v957 = vmul.f32 %v949, %v947
    %v958 = vadd.f32 %v912, %v950
    %v959 = vadd.f32 %v913, %v951
    %v960 = vadd.f32 %v914, %v952
    %v961 = vadd.f32 %v915, %v953
    %v962 = vadd.f32 %v916, %v954
    %v963 = vadd.f32 %v917, %v955
    %v964 = vadd.f32 %v918, %v956
    %v965 = vadd.f32 %v919, %v957
    %s966 = sld [smem:[#allocation3 + $0x14]]
    %v967 = vstv %s966
    %v968 = vmul.f32 %v967, %v38
    %v969 = vmul.f32 %v967, %v39
    %v970 = vmul.f32 %v967, %v40
    %v971 = vmul.f32 %v967, %v41
    %v972 = vmul.f32 %v967, %v42
    %v973 = vmul.f32 %v967, %v43
    %v974 = vmul.f32 %v967, %v44
    %v975 = vmul.f32 %v967, %v45
    %s976 = sld [smem:[#allocation3 + $0x54]]
    %v977 = vstv %s976
    %v978 = vadd.f32 %v968, %v977
    %v979 = vadd.f32 %v969, %v977
    %v980 = vadd.f32 %v970, %v977
    %v981 = vadd.f32 %v971, %v977
    %v982 = vadd.f32 %v972, %v977
    %v983 = vadd.f32 %v973, %v977
    %v984 = vadd.f32 %v974, %v977
    %v985 = vadd.f32 %v975, %v977
    %v986 = vmax.f32 %v978, 0.0
    %v987 = vmax.f32 %v979, 0.0
    %v988 = vmax.f32 %v980, 0.0
    %v989 = vmax.f32 %v981, 0.0
    %v990 = vmax.f32 %v982, 0.0
    %v991 = vmax.f32 %v983, 0.0
    %v992 = vmax.f32 %v984, 0.0
    %v993 = vmax.f32 %v985, 0.0
    %s994 = sld [smem:[#allocation3 + $0x94]]
    %v995 = vstv %s994
    %v996 = vmul.f32 %v995, %v986
    %v997 = vmul.f32 %v995, %v987
    %v998 = vmul.f32 %v995, %v988
    %v999 = vmul.f32 %v995, %v989
    %v1000 = vmul.f32 %v995, %v990
    %v1001 = vmul.f32 %v995, %v991
    %v1002 = vmul.f32 %v995, %v992
    %v1003 = vmul.f32 %v995, %v993
    %v1004 = vadd.f32 %v958, %v996
    %v1005 = vadd.f32 %v959, %v997
    %v1006 = vadd.f32 %v960, %v998
    %v1007 = vadd.f32 %v961, %v999
    %v1008 = vadd.f32 %v962, %v1000
    %v1009 = vadd.f32 %v963, %v1001
    %v1010 = vadd.f32 %v964, %v1002
    %v1011 = vadd.f32 %v965, %v1003
    %s1012 = sld [smem:[#allocation3 + $0x15]]
    %v1013 = vstv %s1012
    %v1014 = vmul.f32 %v1013, %v38
    %v1015 = vmul.f32 %v1013, %v39
    %v1016 = vmul.f32 %v1013, %v40
    %v1017 = vmul.f32 %v1013, %v41
    %v1018 = vmul.f32 %v1013, %v42
    %v1019 = vmul.f32 %v1013, %v43
    %v1020 = vmul.f32 %v1013, %v44
    %v1021 = vmul.f32 %v1013, %v45
    %s1022 = sld [smem:[#allocation3 + $0x55]]
    %v1023 = vstv %s1022
    %v1024 = vadd.f32 %v1014, %v1023
    %v1025 = vadd.f32 %v1015, %v1023
    %v1026 = vadd.f32 %v1016, %v1023
    %v1027 = vadd.f32 %v1017, %v1023
    %v1028 = vadd.f32 %v1018, %v1023
    %v1029 = vadd.f32 %v1019, %v1023
    %v1030 = vadd.f32 %v1020, %v1023
    %v1031 = vadd.f32 %v1021, %v1023
    %v1032 = vmax.f32 %v1024, 0.0
    %v1033 = vmax.f32 %v1025, 0.0
    %v1034 = vmax.f32 %v1026, 0.0
    %v1035 = vmax.f32 %v1027, 0.0
    %v1036 = vmax.f32 %v1028, 0.0
    %v1037 = vmax.f32 %v1029, 0.0
    %v1038 = vmax.f32 %v1030, 0.0
    %v1039 = vmax.f32 %v1031, 0.0
    %s1040 = sld [smem:[#allocation3 + $0x95]]
    %v1041 = vstv %s1040
    %v1042 = vmul.f32 %v1041, %v1032
    %v1043 = vmul.f32 %v1041, %v1033
    %v1044 = vmul.f32 %v1041, %v1034
    %v1045 = vmul.f32 %v1041, %v1035
    %v1046 = vmul.f32 %v1041, %v1036
    %v1047 = vmul.f32 %v1041, %v1037
    %v1048 = vmul.f32 %v1041, %v1038
    %v1049 = vmul.f32 %v1041, %v1039
    %v1050 = vadd.f32 %v1004, %v1042
    %v1051 = vadd.f32 %v1005, %v1043
    %v1052 = vadd.f32 %v1006, %v1044
    %v1053 = vadd.f32 %v1007, %v1045
    %v1054 = vadd.f32 %v1008, %v1046
    %v1055 = vadd.f32 %v1009, %v1047
    %v1056 = vadd.f32 %v1010, %v1048
    %v1057 = vadd.f32 %v1011, %v1049
    %s1058 = sld [smem:[#allocation3 + $0x16]]
    %v1059 = vstv %s1058
    %v1060 = vmul.f32 %v1059, %v38
    %v1061 = vmul.f32 %v1059, %v39
    %v1062 = vmul.f32 %v1059, %v40
    %v1063 = vmul.f32 %v1059, %v41
    %v1064 = vmul.f32 %v1059, %v42
    %v1065 = vmul.f32 %v1059, %v43
    %v1066 = vmul.f32 %v1059, %v44
    %v1067 = vmul.f32 %v1059, %v45
    %s1068 = sld [smem:[#allocation3 + $0x56]]
    %v1069 = vstv %s1068
    %v1070 = vadd.f32 %v1060, %v1069
    %v1071 = vadd.f32 %v1061, %v1069
    %v1072 = vadd.f32 %v1062, %v1069
    %v1073 = vadd.f32 %v1063, %v1069
    %v1074 = vadd.f32 %v1064, %v1069
    %v1075 = vadd.f32 %v1065, %v1069
    %v1076 = vadd.f32 %v1066, %v1069
    %v1077 = vadd.f32 %v1067, %v1069
    %v1078 = vmax.f32 %v1070, 0.0
    %v1079 = vmax.f32 %v1071, 0.0
    %v1080 = vmax.f32 %v1072, 0.0
    %v1081 = vmax.f32 %v1073, 0.0
    %v1082 = vmax.f32 %v1074, 0.0
    %v1083 = vmax.f32 %v1075, 0.0
    %v1084 = vmax.f32 %v1076, 0.0
    %v1085 = vmax.f32 %v1077, 0.0
    %s1086 = sld [smem:[#allocation3 + $0x96]]
    %v1087 = vstv %s1086
    %v1088 = vmul.f32 %v1087, %v1078
    %v1089 = vmul.f32 %v1087, %v1079
    %v1090 = vmul.f32 %v1087, %v1080
    %v1091 = vmul.f32 %v1087, %v1081
    %v1092 = vmul.f32 %v1087, %v1082
    %v1093 = vmul.f32 %v1087, %v1083
    %v1094 = vmul.f32 %v1087, %v1084
    %v1095 = vmul.f32 %v1087, %v1085
    %v1096 = vadd.f32 %v1050, %v1088
    %v1097 = vadd.f32 %v1051, %v1089
    %v1098 = vadd.f32 %v1052, %v1090
    %v1099 = vadd.f32 %v1053, %v1091
    %v1100 = vadd.f32 %v1054, %v1092
    %v1101 = vadd.f32 %v1055, %v1093
    %v1102 = vadd.f32 %v1056, %v1094
    %v1103 = vadd.f32 %v1057, %v1095
    %s1104 = sld [smem:[#allocation3 + $0x17]]
    %v1105 = vstv %s1104
    %v1106 = vmul.f32 %v1105, %v38
    %v1107 = vmul.f32 %v1105, %v39
    %v1108 = vmul.f32 %v1105, %v40
    %v1109 = vmul.f32 %v1105, %v41
    %v1110 = vmul.f32 %v1105, %v42
    %v1111 = vmul.f32 %v1105, %v43
    %v1112 = vmul.f32 %v1105, %v44
    %v1113 = vmul.f32 %v1105, %v45
    %s1114 = sld [smem:[#allocation3 + $0x57]]
    %v1115 = vstv %s1114
    %v1116 = vadd.f32 %v1106, %v1115
    %v1117 = vadd.f32 %v1107, %v1115
    %v1118 = vadd.f32 %v1108, %v1115
    %v1119 = vadd.f32 %v1109, %v1115
    %v1120 = vadd.f32 %v1110, %v1115
    %v1121 = vadd.f32 %v1111, %v1115
    %v1122 = vadd.f32 %v1112, %v1115
    %v1123 = vadd.f32 %v1113, %v1115
    %v1124 = vmax.f32 %v1116, 0.0
    %v1125 = vmax.f32 %v1117, 0.0
    %v1126 = vmax.f32 %v1118, 0.0
    %v1127 = vmax.f32 %v1119, 0.0
    %v1128 = vmax.f32 %v1120, 0.0
    %v1129 = vmax.f32 %v1121, 0.0
    %v1130 = vmax.f32 %v1122, 0.0
    %v1131 = vmax.f32 %v1123, 0.0
    %s1132 = sld [smem:[#allocation3 + $0x97]]
    %v1133 = vstv %s1132
    %v1134 = vmul.f32 %v1133, %v1124
    %v1135 = vmul.f32 %v1133, %v1125
    %v1136 = vmul.f32 %v1133, %v1126
    %v1137 = vmul.f32 %v1133, %v1127
    %v1138 = vmul.f32 %v1133, %v1128
    %v1139 = vmul.f32 %v1133, %v1129
    %v1140 = vmul.f32 %v1133, %v1130
    %v1141 = vmul.f32 %v1133, %v1131
    %v1142 = vadd.f32 %v1096, %v1134
    %v1143 = vadd.f32 %v1097, %v1135
    %v1144 = vadd.f32 %v1098, %v1136
    %v1145 = vadd.f32 %v1099, %v1137
    %v1146 = vadd.f32 %v1100, %v1138
    %v1147 = vadd.f32 %v1101, %v1139
    %v1148 = vadd.f32 %v1102, %v1140
    %v1149 = vadd.f32 %v1103, %v1141
    %s1150 = sld [smem:[#allocation3 + $0x18]]
    %v1151 = vstv %s1150
    %v1152 = vmul.f32 %v1151, %v38
    %v1153 = vmul.f32 %v1151, %v39
    %v1154 = vmul.f32 %v1151, %v40
    %v1155 = vmul.f32 %v1151, %v41
    %v1156 = vmul.f32 %v1151, %v42
    %v1157 = vmul.f32 %v1151, %v43
    %v1158 = vmul.f32 %v1151, %v44
    %v1159 = vmul.f32 %v1151, %v45
    %s1160 = sld [smem:[#allocation3 + $0x58]]
    %v1161 = vstv %s1160
    %v1162 = vadd.f32 %v1152, %v1161
    %v1163 = vadd.f32 %v1153, %v1161
    %v1164 = vadd.f32 %v1154, %v1161
    %v1165 = vadd.f32 %v1155, %v1161
    %v1166 = vadd.f32 %v1156, %v1161
    %v1167 = vadd.f32 %v1157, %v1161
    %v1168 = vadd.f32 %v1158, %v1161
    %v1169 = vadd.f32 %v1159, %v1161
    %v1170 = vmax.f32 %v1162, 0.0
    %v1171 = vmax.f32 %v1163, 0.0
    %v1172 = vmax.f32 %v1164, 0.0
    %v1173 = vmax.f32 %v1165, 0.0
    %v1174 = vmax.f32 %v1166, 0.0
    %v1175 = vmax.f32 %v1167, 0.0
    %v1176 = vmax.f32 %v1168, 0.0
    %v1177 = vmax.f32 %v1169, 0.0
    %s1178 = sld [smem:[#allocation3 + $0x98]]
    %v1179 = vstv %s1178
    %v1180 = vmul.f32 %v1179, %v1170
    %v1181 = vmul.f32 %v1179, %v1171
    %v1182 = vmul.f32 %v1179, %v1172
    %v1183 = vmul.f32 %v1179, %v1173
    %v1184 = vmul.f32 %v1179, %v1174
    %v1185 = vmul.f32 %v1179, %v1175
    %v1186 = vmul.f32 %v1179, %v1176
    %v1187 = vmul.f32 %v1179, %v1177
    %v1188 = vadd.f32 %v1142, %v1180
    %v1189 = vadd.f32 %v1143, %v1181
    %v1190 = vadd.f32 %v1144, %v1182
    %v1191 = vadd.f32 %v1145, %v1183
    %v1192 = vadd.f32 %v1146, %v1184
    %v1193 = vadd.f32 %v1147, %v1185
    %v1194 = vadd.f32 %v1148, %v1186
    %v1195 = vadd.f32 %v1149, %v1187
    %s1196 = sld [smem:[#allocation3 + $0x19]]
    %v1197 = vstv %s1196
    %v1198 = vmul.f32 %v1197, %v38
    %v1199 = vmul.f32 %v1197, %v39
    %v1200 = vmul.f32 %v1197, %v40
    %v1201 = vmul.f32 %v1197, %v41
    %v1202 = vmul.f32 %v1197, %v42
    %v1203 = vmul.f32 %v1197, %v43
    %v1204 = vmul.f32 %v1197, %v44
    %v1205 = vmul.f32 %v1197, %v45
    %s1206 = sld [smem:[#allocation3 + $0x59]]
    %v1207 = vstv %s1206
    %v1208 = vadd.f32 %v1198, %v1207
    %v1209 = vadd.f32 %v1199, %v1207
    %v1210 = vadd.f32 %v1200, %v1207
    %v1211 = vadd.f32 %v1201, %v1207
    %v1212 = vadd.f32 %v1202, %v1207
    %v1213 = vadd.f32 %v1203, %v1207
    %v1214 = vadd.f32 %v1204, %v1207
    %v1215 = vadd.f32 %v1205, %v1207
    %v1216 = vmax.f32 %v1208, 0.0
    %v1217 = vmax.f32 %v1209, 0.0
    %v1218 = vmax.f32 %v1210, 0.0
    %v1219 = vmax.f32 %v1211, 0.0
    %v1220 = vmax.f32 %v1212, 0.0
    %v1221 = vmax.f32 %v1213, 0.0
    %v1222 = vmax.f32 %v1214, 0.0
    %v1223 = vmax.f32 %v1215, 0.0
    %s1224 = sld [smem:[#allocation3 + $0x99]]
    %v1225 = vstv %s1224
    %v1226 = vmul.f32 %v1225, %v1216
    %v1227 = vmul.f32 %v1225, %v1217
    %v1228 = vmul.f32 %v1225, %v1218
    %v1229 = vmul.f32 %v1225, %v1219
    %v1230 = vmul.f32 %v1225, %v1220
    %v1231 = vmul.f32 %v1225, %v1221
    %v1232 = vmul.f32 %v1225, %v1222
    %v1233 = vmul.f32 %v1225, %v1223
    %v1234 = vadd.f32 %v1188, %v1226
    %v1235 = vadd.f32 %v1189, %v1227
    %v1236 = vadd.f32 %v1190, %v1228
    %v1237 = vadd.f32 %v1191, %v1229
    %v1238 = vadd.f32 %v1192, %v1230
    %v1239 = vadd.f32 %v1193, %v1231
    %v1240 = vadd.f32 %v1194, %v1232
    %v1241 = vadd.f32 %v1195, %v1233
    %s1242 = sld [smem:[#allocation3 + $0x1a]]
    %v1243 = vstv %s1242
    %v1244 = vmul.f32 %v1243, %v38
    %v1245 = vmul.f32 %v1243, %v39
    %v1246 = vmul.f32 %v1243, %v40
    %v1247 = vmul.f32 %v1243, %v41
    %v1248 = vmul.f32 %v1243, %v42
    %v1249 = vmul.f32 %v1243, %v43
    %v1250 = vmul.f32 %v1243, %v44
    %v1251 = vmul.f32 %v1243, %v45
    %s1252 = sld [smem:[#allocation3 + $0x5a]]
    %v1253 = vstv %s1252
    %v1254 = vadd.f32 %v1244, %v1253
    %v1255 = vadd.f32 %v1245, %v1253
    %v1256 = vadd.f32 %v1246, %v1253
    %v1257 = vadd.f32 %v1247, %v1253
    %v1258 = vadd.f32 %v1248, %v1253
    %v1259 = vadd.f32 %v1249, %v1253
    %v1260 = vadd.f32 %v1250, %v1253
    %v1261 = vadd.f32 %v1251, %v1253
    %v1262 = vmax.f32 %v1254, 0.0
    %v1263 = vmax.f32 %v1255, 0.0
    %v1264 = vmax.f32 %v1256, 0.0
    %v1265 = vmax.f32 %v1257, 0.0
    %v1266 = vmax.f32 %v1258, 0.0
    %v1267 = vmax.f32 %v1259, 0.0
    %v1268 = vmax.f32 %v1260, 0.0
    %v1269 = vmax.f32 %v1261, 0.0
    %s1270 = sld [smem:[#allocation3 + $0x9a]]
    %v1271 = vstv %s1270
    %v1272 = vmul.f32 %v1271, %v1262
    %v1273 = vmul.f32 %v1271, %v1263
    %v1274 = vmul.f32 %v1271, %v1264
    %v1275 = vmul.f32 %v1271, %v1265
    %v1276 = vmul.f32 %v1271, %v1266
    %v1277 = vmul.f32 %v1271, %v1267
    %v1278 = vmul.f32 %v1271, %v1268
    %v1279 = vmul.f32 %v1271, %v1269
    %v1280 = vadd.f32 %v1234, %v1272
    %v1281 = vadd.f32 %v1235, %v1273
    %v1282 = vadd.f32 %v1236, %v1274
    %v1283 = vadd.f32 %v1237, %v1275
    %v1284 = vadd.f32 %v1238, %v1276
    %v1285 = vadd.f32 %v1239, %v1277
    %v1286 = vadd.f32 %v1240, %v1278
    %v1287 = vadd.f32 %v1241, %v1279
    %s1288 = sld [smem:[#allocation3 + $0x1b]]
    %v1289 = vstv %s1288
    %v1290 = vmul.f32 %v1289, %v38
    %v1291 = vmul.f32 %v1289, %v39
    %v1292 = vmul.f32 %v1289, %v40
    %v1293 = vmul.f32 %v1289, %v41
    %v1294 = vmul.f32 %v1289, %v42
    %v1295 = vmul.f32 %v1289, %v43
    %v1296 = vmul.f32 %v1289, %v44
    %v1297 = vmul.f32 %v1289, %v45
    %s1298 = sld [smem:[#allocation3 + $0x5b]]
    %v1299 = vstv %s1298
    %v1300 = vadd.f32 %v1290, %v1299
    %v1301 = vadd.f32 %v1291, %v1299
    %v1302 = vadd.f32 %v1292, %v1299
    %v1303 = vadd.f32 %v1293, %v1299
    %v1304 = vadd.f32 %v1294, %v1299
    %v1305 = vadd.f32 %v1295, %v1299
    %v1306 = vadd.f32 %v1296, %v1299
    %v1307 = vadd.f32 %v1297, %v1299
    %v1308 = vmax.f32 %v1300, 0.0
    %v1309 = vmax.f32 %v1301, 0.0
    %v1310 = vmax.f32 %v1302, 0.0
    %v1311 = vmax.f32 %v1303, 0.0
    %v1312 = vmax.f32 %v1304, 0.0
    %v1313 = vmax.f32 %v1305, 0.0
    %v1314 = vmax.f32 %v1306, 0.0
    %v1315 = vmax.f32 %v1307, 0.0
    %s1316 = sld [smem:[#allocation3 + $0x9b]]
    %v1317 = vstv %s1316
    %v1318 = vmul.f32 %v1317, %v1308
    %v1319 = vmul.f32 %v1317, %v1309
    %v1320 = vmul.f32 %v1317, %v1310
    %v1321 = vmul.f32 %v1317, %v1311
    %v1322 = vmul.f32 %v1317, %v1312
    %v1323 = vmul.f32 %v1317, %v1313
    %v1324 = vmul.f32 %v1317, %v1314
    %v1325 = vmul.f32 %v1317, %v1315
    %v1326 = vadd.f32 %v1280, %v1318
    %v1327 = vadd.f32 %v1281, %v1319
    %v1328 = vadd.f32 %v1282, %v1320
    %v1329 = vadd.f32 %v1283, %v1321
    %v1330 = vadd.f32 %v1284, %v1322
    %v1331 = vadd.f32 %v1285, %v1323
    %v1332 = vadd.f32 %v1286, %v1324
    %v1333 = vadd.f32 %v1287, %v1325
    %s1334 = sld [smem:[#allocation3 + $0x1c]]
    %v1335 = vstv %s1334
    %v1336 = vmul.f32 %v1335, %v38
    %v1337 = vmul.f32 %v1335, %v39
    %v1338 = vmul.f32 %v1335, %v40
    %v1339 = vmul.f32 %v1335, %v41
    %v1340 = vmul.f32 %v1335, %v42
    %v1341 = vmul.f32 %v1335, %v43
    %v1342 = vmul.f32 %v1335, %v44
    %v1343 = vmul.f32 %v1335, %v45
    %s1344 = sld [smem:[#allocation3 + $0x5c]]
    %v1345 = vstv %s1344
    %v1346 = vadd.f32 %v1336, %v1345
    %v1347 = vadd.f32 %v1337, %v1345
    %v1348 = vadd.f32 %v1338, %v1345
    %v1349 = vadd.f32 %v1339, %v1345
    %v1350 = vadd.f32 %v1340, %v1345
    %v1351 = vadd.f32 %v1341, %v1345
    %v1352 = vadd.f32 %v1342, %v1345
    %v1353 = vadd.f32 %v1343, %v1345
    %v1354 = vmax.f32 %v1346, 0.0
    %v1355 = vmax.f32 %v1347, 0.0
    %v1356 = vmax.f32 %v1348, 0.0
    %v1357 = vmax.f32 %v1349, 0.0
    %v1358 = vmax.f32 %v1350, 0.0
    %v1359 = vmax.f32 %v1351, 0.0
    %v1360 = vmax.f32 %v1352, 0.0
    %v1361 = vmax.f32 %v1353, 0.0
    %s1362 = sld [smem:[#allocation3 + $0x9c]]
    %v1363 = vstv %s1362
    %v1364 = vmul.f32 %v1363, %v1354
    %v1365 = vmul.f32 %v1363, %v1355
    %v1366 = vmul.f32 %v1363, %v1356
    %v1367 = vmul.f32 %v1363, %v1357
    %v1368 = vmul.f32 %v1363, %v1358
    %v1369 = vmul.f32 %v1363, %v1359
    %v1370 = vmul.f32 %v1363, %v1360
    %v1371 = vmul.f32 %v1363, %v1361
    %v1372 = vadd.f32 %v1326, %v1364
    %v1373 = vadd.f32 %v1327, %v1365
    %v1374 = vadd.f32 %v1328, %v1366
    %v1375 = vadd.f32 %v1329, %v1367
    %v1376 = vadd.f32 %v1330, %v1368
    %v1377 = vadd.f32 %v1331, %v1369
    %v1378 = vadd.f32 %v1332, %v1370
    %v1379 = vadd.f32 %v1333, %v1371
    %s1380 = sld [smem:[#allocation3 + $0x1d]]
    %v1381 = vstv %s1380
    %v1382 = vmul.f32 %v1381, %v38
    %v1383 = vmul.f32 %v1381, %v39
    %v1384 = vmul.f32 %v1381, %v40
    %v1385 = vmul.f32 %v1381, %v41
    %v1386 = vmul.f32 %v1381, %v42
    %v1387 = vmul.f32 %v1381, %v43
    %v1388 = vmul.f32 %v1381, %v44
    %v1389 = vmul.f32 %v1381, %v45
    %s1390 = sld [smem:[#allocation3 + $0x5d]]
    %v1391 = vstv %s1390
    %v1392 = vadd.f32 %v1382, %v1391
    %v1393 = vadd.f32 %v1383, %v1391
    %v1394 = vadd.f32 %v1384, %v1391
    %v1395 = vadd.f32 %v1385, %v1391
    %v1396 = vadd.f32 %v1386, %v1391
    %v1397 = vadd.f32 %v1387, %v1391
    %v1398 = vadd.f32 %v1388, %v1391
    %v1399 = vadd.f32 %v1389, %v1391
    %v1400 = vmax.f32 %v1392, 0.0
    %v1401 = vmax.f32 %v1393, 0.0
    %v1402 = vmax.f32 %v1394, 0.0
    %v1403 = vmax.f32 %v1395, 0.0
    %v1404 = vmax.f32 %v1396, 0.0
    %v1405 = vmax.f32 %v1397, 0.0
    %v1406 = vmax.f32 %v1398, 0.0
    %v1407 = vmax.f32 %v1399, 0.0
    %s1408 = sld [smem:[#allocation3 + $0x9d]]
    %v1409 = vstv %s1408
    %v1410 = vmul.f32 %v1409, %v1400
    %v1411 = vmul.f32 %v1409, %v1401
    %v1412 = vmul.f32 %v1409, %v1402
    %v1413 = vmul.f32 %v1409, %v1403
    %v1414 = vmul.f32 %v1409, %v1404
    %v1415 = vmul.f32 %v1409, %v1405
    %v1416 = vmul.f32 %v1409, %v1406
    %v1417 = vmul.f32 %v1409, %v1407
    %v1418 = vadd.f32 %v1372, %v1410
    %v1419 = vadd.f32 %v1373, %v1411
    %v1420 = vadd.f32 %v1374, %v1412
    %v1421 = vadd.f32 %v1375, %v1413
    %v1422 = vadd.f32 %v1376, %v1414
    %v1423 = vadd.f32 %v1377, %v1415
    %v1424 = vadd.f32 %v1378, %v1416
    %v1425 = vadd.f32 %v1379, %v1417
    %s1426 = sld [smem:[#allocation3 + $0x1e]]
    %v1427 = vstv %s1426
    %v1428 = vmul.f32 %v1427, %v38
    %v1429 = vmul.f32 %v1427, %v39
    %v1430 = vmul.f32 %v1427, %v40
    %v1431 = vmul.f32 %v1427, %v41
    %v1432 = vmul.f32 %v1427, %v42
    %v1433 = vmul.f32 %v1427, %v43
    %v1434 = vmul.f32 %v1427, %v44
    %v1435 = vmul.f32 %v1427, %v45
    %s1436 = sld [smem:[#allocation3 + $0x5e]]
    %v1437 = vstv %s1436
    %v1438 = vadd.f32 %v1428, %v1437
    %v1439 = vadd.f32 %v1429, %v1437
    %v1440 = vadd.f32 %v1430, %v1437
    %v1441 = vadd.f32 %v1431, %v1437
    %v1442 = vadd.f32 %v1432, %v1437
    %v1443 = vadd.f32 %v1433, %v1437
    %v1444 = vadd.f32 %v1434, %v1437
    %v1445 = vadd.f32 %v1435, %v1437
    %v1446 = vmax.f32 %v1438, 0.0
    %v1447 = vmax.f32 %v1439, 0.0
    %v1448 = vmax.f32 %v1440, 0.0
    %v1449 = vmax.f32 %v1441, 0.0
    %v1450 = vmax.f32 %v1442, 0.0
    %v1451 = vmax.f32 %v1443, 0.0
    %v1452 = vmax.f32 %v1444, 0.0
    %v1453 = vmax.f32 %v1445, 0.0
    %s1454 = sld [smem:[#allocation3 + $0x9e]]
    %v1455 = vstv %s1454
    %v1456 = vmul.f32 %v1455, %v1446
    %v1457 = vmul.f32 %v1455, %v1447
    %v1458 = vmul.f32 %v1455, %v1448
    %v1459 = vmul.f32 %v1455, %v1449
    %v1460 = vmul.f32 %v1455, %v1450
    %v1461 = vmul.f32 %v1455, %v1451
    %v1462 = vmul.f32 %v1455, %v1452
    %v1463 = vmul.f32 %v1455, %v1453
    %v1464 = vadd.f32 %v1418, %v1456
    %v1465 = vadd.f32 %v1419, %v1457
    %v1466 = vadd.f32 %v1420, %v1458
    %v1467 = vadd.f32 %v1421, %v1459
    %v1468 = vadd.f32 %v1422, %v1460
    %v1469 = vadd.f32 %v1423, %v1461
    %v1470 = vadd.f32 %v1424, %v1462
    %v1471 = vadd.f32 %v1425, %v1463
    %s1472 = sld [smem:[#allocation3 + $0x1f]]
    %v1473 = vstv %s1472
    %v1474 = vmul.f32 %v1473, %v38
    %v1475 = vmul.f32 %v1473, %v39
    %v1476 = vmul.f32 %v1473, %v40
    %v1477 = vmul.f32 %v1473, %v41
    %v1478 = vmul.f32 %v1473, %v42
    %v1479 = vmul.f32 %v1473, %v43
    %v1480 = vmul.f32 %v1473, %v44
    %v1481 = vmul.f32 %v1473, %v45
    %s1482 = sld [smem:[#allocation3 + $0x5f]]
    %v1483 = vstv %s1482
    %v1484 = vadd.f32 %v1474, %v1483
    %v1485 = vadd.f32 %v1475, %v1483
    %v1486 = vadd.f32 %v1476, %v1483
    %v1487 = vadd.f32 %v1477, %v1483
    %v1488 = vadd.f32 %v1478, %v1483
    %v1489 = vadd.f32 %v1479, %v1483
    %v1490 = vadd.f32 %v1480, %v1483
    %v1491 = vadd.f32 %v1481, %v1483
    %v1492 = vmax.f32 %v1484, 0.0
    %v1493 = vmax.f32 %v1485, 0.0
    %v1494 = vmax.f32 %v1486, 0.0
    %v1495 = vmax.f32 %v1487, 0.0
    %v1496 = vmax.f32 %v1488, 0.0
    %v1497 = vmax.f32 %v1489, 0.0
    %v1498 = vmax.f32 %v1490, 0.0
    %v1499 = vmax.f32 %v1491, 0.0
    %s1500 = sld [smem:[#allocation3 + $0x9f]]
    %v1501 = vstv %s1500
    %v1502 = vmul.f32 %v1501, %v1492
    %v1503 = vmul.f32 %v1501, %v1493
    %v1504 = vmul.f32 %v1501, %v1494
    %v1505 = vmul.f32 %v1501, %v1495
    %v1506 = vmul.f32 %v1501, %v1496
    %v1507 = vmul.f32 %v1501, %v1497
    %v1508 = vmul.f32 %v1501, %v1498
    %v1509 = vmul.f32 %v1501, %v1499
    %v1510 = vadd.f32 %v1464, %v1502
    %v1511 = vadd.f32 %v1465, %v1503
    %v1512 = vadd.f32 %v1466, %v1504
    %v1513 = vadd.f32 %v1467, %v1505
    %v1514 = vadd.f32 %v1468, %v1506
    %v1515 = vadd.f32 %v1469, %v1507
    %v1516 = vadd.f32 %v1470, %v1508
    %v1517 = vadd.f32 %v1471, %v1509
    %s1518 = sld [smem:[#allocation3 + $0x20]]
    %v1519 = vstv %s1518
    %v1520 = vmul.f32 %v1519, %v38
    %v1521 = vmul.f32 %v1519, %v39
    %v1522 = vmul.f32 %v1519, %v40
    %v1523 = vmul.f32 %v1519, %v41
    %v1524 = vmul.f32 %v1519, %v42
    %v1525 = vmul.f32 %v1519, %v43
    %v1526 = vmul.f32 %v1519, %v44
    %v1527 = vmul.f32 %v1519, %v45
    %s1528 = sld [smem:[#allocation3 + $0x60]]
    %v1529 = vstv %s1528
    %v1530 = vadd.f32 %v1520, %v1529
    %v1531 = vadd.f32 %v1521, %v1529
    %v1532 = vadd.f32 %v1522, %v1529
    %v1533 = vadd.f32 %v1523, %v1529
    %v1534 = vadd.f32 %v1524, %v1529
    %v1535 = vadd.f32 %v1525, %v1529
    %v1536 = vadd.f32 %v1526, %v1529
    %v1537 = vadd.f32 %v1527, %v1529
    %v1538 = vmax.f32 %v1530, 0.0
    %v1539 = vmax.f32 %v1531, 0.0
    %v1540 = vmax.f32 %v1532, 0.0
    %v1541 = vmax.f32 %v1533, 0.0
    %v1542 = vmax.f32 %v1534, 0.0
    %v1543 = vmax.f32 %v1535, 0.0
    %v1544 = vmax.f32 %v1536, 0.0
    %v1545 = vmax.f32 %v1537, 0.0
    %s1546 = sld [smem:[#allocation3 + $0xa0]]
    %v1547 = vstv %s1546
    %v1548 = vmul.f32 %v1547, %v1538
    %v1549 = vmul.f32 %v1547, %v1539
    %v1550 = vmul.f32 %v1547, %v1540
    %v1551 = vmul.f32 %v1547, %v1541
    %v1552 = vmul.f32 %v1547, %v1542
    %v1553 = vmul.f32 %v1547, %v1543
    %v1554 = vmul.f32 %v1547, %v1544
    %v1555 = vmul.f32 %v1547, %v1545
    %v1556 = vadd.f32 %v1510, %v1548
    %v1557 = vadd.f32 %v1511, %v1549
    %v1558 = vadd.f32 %v1512, %v1550
    %v1559 = vadd.f32 %v1513, %v1551
    %v1560 = vadd.f32 %v1514, %v1552
    %v1561 = vadd.f32 %v1515, %v1553
    %v1562 = vadd.f32 %v1516, %v1554
    %v1563 = vadd.f32 %v1517, %v1555
    %s1564 = sld [smem:[#allocation3 + $0x21]]
    %v1565 = vstv %s1564
    %v1566 = vmul.f32 %v1565, %v38
    %v1567 = vmul.f32 %v1565, %v39
    %v1568 = vmul.f32 %v1565, %v40
    %v1569 = vmul.f32 %v1565, %v41
    %v1570 = vmul.f32 %v1565, %v42
    %v1571 = vmul.f32 %v1565, %v43
    %v1572 = vmul.f32 %v1565, %v44
    %v1573 = vmul.f32 %v1565, %v45
    %s1574 = sld [smem:[#allocation3 + $0x61]]
    %v1575 = vstv %s1574
    %v1576 = vadd.f32 %v1566, %v1575
    %v1577 = vadd.f32 %v1567, %v1575
    %v1578 = vadd.f32 %v1568, %v1575
    %v1579 = vadd.f32 %v1569, %v1575
    %v1580 = vadd.f32 %v1570, %v1575
    %v1581 = vadd.f32 %v1571, %v1575
    %v1582 = vadd.f32 %v1572, %v1575
    %v1583 = vadd.f32 %v1573, %v1575
    %v1584 = vmax.f32 %v1576, 0.0
    %v1585 = vmax.f32 %v1577, 0.0
    %v1586 = vmax.f32 %v1578, 0.0
    %v1587 = vmax.f32 %v1579, 0.0
    %v1588 = vmax.f32 %v1580, 0.0
    %v1589 = vmax.f32 %v1581, 0.0
    %v1590 = vmax.f32 %v1582, 0.0
    %v1591 = vmax.f32 %v1583, 0.0
    %s1592 = sld [smem:[#allocation3 + $0xa1]]
    %v1593 = vstv %s1592
    %v1594 = vmul.f32 %v1593, %v1584
    %v1595 = vmul.f32 %v1593, %v1585
    %v1596 = vmul.f32 %v1593, %v1586
    %v1597 = vmul.f32 %v1593, %v1587
    %v1598 = vmul.f32 %v1593, %v1588
    %v1599 = vmul.f32 %v1593, %v1589
    %v1600 = vmul.f32 %v1593, %v1590
    %v1601 = vmul.f32 %v1593, %v1591
    %v1602 = vadd.f32 %v1556, %v1594
    %v1603 = vadd.f32 %v1557, %v1595
    %v1604 = vadd.f32 %v1558, %v1596
    %v1605 = vadd.f32 %v1559, %v1597
    %v1606 = vadd.f32 %v1560, %v1598
    %v1607 = vadd.f32 %v1561, %v1599
    %v1608 = vadd.f32 %v1562, %v1600
    %v1609 = vadd.f32 %v1563, %v1601
    %s1610 = sld [smem:[#allocation3 + $0x22]]
    %v1611 = vstv %s1610
    %v1612 = vmul.f32 %v1611, %v38
    %v1613 = vmul.f32 %v1611, %v39
    %v1614 = vmul.f32 %v1611, %v40
    %v1615 = vmul.f32 %v1611, %v41
    %v1616 = vmul.f32 %v1611, %v42
    %v1617 = vmul.f32 %v1611, %v43
    %v1618 = vmul.f32 %v1611, %v44
    %v1619 = vmul.f32 %v1611, %v45
    %s1620 = sld [smem:[#allocation3 + $0x62]]
    %v1621 = vstv %s1620
    %v1622 = vadd.f32 %v1612, %v1621
    %v1623 = vadd.f32 %v1613, %v1621
    %v1624 = vadd.f32 %v1614, %v1621
    %v1625 = vadd.f32 %v1615, %v1621
    %v1626 = vadd.f32 %v1616, %v1621
    %v1627 = vadd.f32 %v1617, %v1621
    %v1628 = vadd.f32 %v1618, %v1621
    %v1629 = vadd.f32 %v1619, %v1621
    %v1630 = vmax.f32 %v1622, 0.0
    %v1631 = vmax.f32 %v1623, 0.0
    %v1632 = vmax.f32 %v1624, 0.0
    %v1633 = vmax.f32 %v1625, 0.0
    %v1634 = vmax.f32 %v1626, 0.0
    %v1635 = vmax.f32 %v1627, 0.0
    %v1636 = vmax.f32 %v1628, 0.0
    %v1637 = vmax.f32 %v1629, 0.0
    %s1638 = sld [smem:[#allocation3 + $0xa2]]
    %v1639 = vstv %s1638
    %v1640 = vmul.f32 %v1639, %v1630
    %v1641 = vmul.f32 %v1639, %v1631
    %v1642 = vmul.f32 %v1639, %v1632
    %v1643 = vmul.f32 %v1639, %v1633
    %v1644 = vmul.f32 %v1639, %v1634
    %v1645 = vmul.f32 %v1639, %v1635
    %v1646 = vmul.f32 %v1639, %v1636
    %v1647 = vmul.f32 %v1639, %v1637
    %v1648 = vadd.f32 %v1602, %v1640
    %v1649 = vadd.f32 %v1603, %v1641
    %v1650 = vadd.f32 %v1604, %v1642
    %v1651 = vadd.f32 %v1605, %v1643
    %v1652 = vadd.f32 %v1606, %v1644
    %v1653 = vadd.f32 %v1607, %v1645
    %v1654 = vadd.f32 %v1608, %v1646
    %v1655 = vadd.f32 %v1609, %v1647
    %s1656 = sld [smem:[#allocation3 + $0x23]]
    %v1657 = vstv %s1656
    %v1658 = vmul.f32 %v1657, %v38
    %v1659 = vmul.f32 %v1657, %v39
    %v1660 = vmul.f32 %v1657, %v40
    %v1661 = vmul.f32 %v1657, %v41
    %v1662 = vmul.f32 %v1657, %v42
    %v1663 = vmul.f32 %v1657, %v43
    %v1664 = vmul.f32 %v1657, %v44
    %v1665 = vmul.f32 %v1657, %v45
    %s1666 = sld [smem:[#allocation3 + $0x63]]
    %v1667 = vstv %s1666
    %v1668 = vadd.f32 %v1658, %v1667
    %v1669 = vadd.f32 %v1659, %v1667
    %v1670 = vadd.f32 %v1660, %v1667
    %v1671 = vadd.f32 %v1661, %v1667
    %v1672 = vadd.f32 %v1662, %v1667
    %v1673 = vadd.f32 %v1663, %v1667
    %v1674 = vadd.f32 %v1664, %v1667
    %v1675 = vadd.f32 %v1665, %v1667
    %v1676 = vmax.f32 %v1668, 0.0
    %v1677 = vmax.f32 %v1669, 0.0
    %v1678 = vmax.f32 %v1670, 0.0
    %v1679 = vmax.f32 %v1671, 0.0
    %v1680 = vmax.f32 %v1672, 0.0
    %v1681 = vmax.f32 %v1673, 0.0
    %v1682 = vmax.f32 %v1674, 0.0
    %v1683 = vmax.f32 %v1675, 0.0
    %s1684 = sld [smem:[#allocation3 + $0xa3]]
    %v1685 = vstv %s1684
    %v1686 = vmul.f32 %v1685, %v1676
    %v1687 = vmul.f32 %v1685, %v1677
    %v1688 = vmul.f32 %v1685, %v1678
    %v1689 = vmul.f32 %v1685, %v1679
    %v1690 = vmul.f32 %v1685, %v1680
    %v1691 = vmul.f32 %v1685, %v1681
    %v1692 = vmul.f32 %v1685, %v1682
    %v1693 = vmul.f32 %v1685, %v1683
    %v1694 = vadd.f32 %v1648, %v1686
    %v1695 = vadd.f32 %v1649, %v1687
    %v1696 = vadd.f32 %v1650, %v1688
    %v1697 = vadd.f32 %v1651, %v1689
    %v1698 = vadd.f32 %v1652, %v1690
    %v1699 = vadd.f32 %v1653, %v1691
    %v1700 = vadd.f32 %v1654, %v1692
    %v1701 = vadd.f32 %v1655, %v1693
    %s1702 = sld [smem:[#allocation3 + $0x24]]
    %v1703 = vstv %s1702
    %v1704 = vmul.f32 %v1703, %v38
    %v1705 = vmul.f32 %v1703, %v39
    %v1706 = vmul.f32 %v1703, %v40
    %v1707 = vmul.f32 %v1703, %v41
    %v1708 = vmul.f32 %v1703, %v42
    %v1709 = vmul.f32 %v1703, %v43
    %v1710 = vmul.f32 %v1703, %v44
    %v1711 = vmul.f32 %v1703, %v45
    %s1712 = sld [smem:[#allocation3 + $0x64]]
    %v1713 = vstv %s1712
    %v1714 = vadd.f32 %v1704, %v1713
    %v1715 = vadd.f32 %v1705, %v1713
    %v1716 = vadd.f32 %v1706, %v1713
    %v1717 = vadd.f32 %v1707, %v1713
    %v1718 = vadd.f32 %v1708, %v1713
    %v1719 = vadd.f32 %v1709, %v1713
    %v1720 = vadd.f32 %v1710, %v1713
    %v1721 = vadd.f32 %v1711, %v1713
    %v1722 = vmax.f32 %v1714, 0.0
    %v1723 = vmax.f32 %v1715, 0.0
    %v1724 = vmax.f32 %v1716, 0.0
    %v1725 = vmax.f32 %v1717, 0.0
    %v1726 = vmax.f32 %v1718, 0.0
    %v1727 = vmax.f32 %v1719, 0.0
    %v1728 = vmax.f32 %v1720, 0.0
    %v1729 = vmax.f32 %v1721, 0.0
    %s1730 = sld [smem:[#allocation3 + $0xa4]]
    %v1731 = vstv %s1730
    %v1732 = vmul.f32 %v1731, %v1722
    %v1733 = vmul.f32 %v1731, %v1723
    %v1734 = vmul.f32 %v1731, %v1724
    %v1735 = vmul.f32 %v1731, %v1725
    %v1736 = vmul.f32 %v1731, %v1726
    %v1737 = vmul.f32 %v1731, %v1727
    %v1738 = vmul.f32 %v1731, %v1728
    %v1739 = vmul.f32 %v1731, %v1729
    %v1740 = vadd.f32 %v1694, %v1732
    %v1741 = vadd.f32 %v1695, %v1733
    %v1742 = vadd.f32 %v1696, %v1734
    %v1743 = vadd.f32 %v1697, %v1735
    %v1744 = vadd.f32 %v1698, %v1736
    %v1745 = vadd.f32 %v1699, %v1737
    %v1746 = vadd.f32 %v1700, %v1738
    %v1747 = vadd.f32 %v1701, %v1739
    %s1748 = sld [smem:[#allocation3 + $0x25]]
    %v1749 = vstv %s1748
    %v1750 = vmul.f32 %v1749, %v38
    %v1751 = vmul.f32 %v1749, %v39
    %v1752 = vmul.f32 %v1749, %v40
    %v1753 = vmul.f32 %v1749, %v41
    %v1754 = vmul.f32 %v1749, %v42
    %v1755 = vmul.f32 %v1749, %v43
    %v1756 = vmul.f32 %v1749, %v44
    %v1757 = vmul.f32 %v1749, %v45
    %s1758 = sld [smem:[#allocation3 + $0x65]]
    %v1759 = vstv %s1758
    %v1760 = vadd.f32 %v1750, %v1759
    %v1761 = vadd.f32 %v1751, %v1759
    %v1762 = vadd.f32 %v1752, %v1759
    %v1763 = vadd.f32 %v1753, %v1759
    %v1764 = vadd.f32 %v1754, %v1759
    %v1765 = vadd.f32 %v1755, %v1759
    %v1766 = vadd.f32 %v1756, %v1759
    %v1767 = vadd.f32 %v1757, %v1759
    %v1768 = vmax.f32 %v1760, 0.0
    %v1769 = vmax.f32 %v1761, 0.0
    %v1770 = vmax.f32 %v1762, 0.0
    %v1771 = vmax.f32 %v1763, 0.0
    %v1772 = vmax.f32 %v1764, 0.0
    %v1773 = vmax.f32 %v1765, 0.0
    %v1774 = vmax.f32 %v1766, 0.0
    %v1775 = vmax.f32 %v1767, 0.0
    %s1776 = sld [smem:[#allocation3 + $0xa5]]
    %v1777 = vstv %s1776
    %v1778 = vmul.f32 %v1777, %v1768
    %v1779 = vmul.f32 %v1777, %v1769
    %v1780 = vmul.f32 %v1777, %v1770
    %v1781 = vmul.f32 %v1777, %v1771
    %v1782 = vmul.f32 %v1777, %v1772
    %v1783 = vmul.f32 %v1777, %v1773
    %v1784 = vmul.f32 %v1777, %v1774
    %v1785 = vmul.f32 %v1777, %v1775
    %v1786 = vadd.f32 %v1740, %v1778
    %v1787 = vadd.f32 %v1741, %v1779
    %v1788 = vadd.f32 %v1742, %v1780
    %v1789 = vadd.f32 %v1743, %v1781
    %v1790 = vadd.f32 %v1744, %v1782
    %v1791 = vadd.f32 %v1745, %v1783
    %v1792 = vadd.f32 %v1746, %v1784
    %v1793 = vadd.f32 %v1747, %v1785
    %s1794 = sld [smem:[#allocation3 + $0x26]]
    %v1795 = vstv %s1794
    %v1796 = vmul.f32 %v1795, %v38
    %v1797 = vmul.f32 %v1795, %v39
    %v1798 = vmul.f32 %v1795, %v40
    %v1799 = vmul.f32 %v1795, %v41
    %v1800 = vmul.f32 %v1795, %v42
    %v1801 = vmul.f32 %v1795, %v43
    %v1802 = vmul.f32 %v1795, %v44
    %v1803 = vmul.f32 %v1795, %v45
    %s1804 = sld [smem:[#allocation3 + $0x66]]
    %v1805 = vstv %s1804
    %v1806 = vadd.f32 %v1796, %v1805
    %v1807 = vadd.f32 %v1797, %v1805
    %v1808 = vadd.f32 %v1798, %v1805
    %v1809 = vadd.f32 %v1799, %v1805
    %v1810 = vadd.f32 %v1800, %v1805
    %v1811 = vadd.f32 %v1801, %v1805
    %v1812 = vadd.f32 %v1802, %v1805
    %v1813 = vadd.f32 %v1803, %v1805
    %v1814 = vmax.f32 %v1806, 0.0
    %v1815 = vmax.f32 %v1807, 0.0
    %v1816 = vmax.f32 %v1808, 0.0
    %v1817 = vmax.f32 %v1809, 0.0
    %v1818 = vmax.f32 %v1810, 0.0
    %v1819 = vmax.f32 %v1811, 0.0
    %v1820 = vmax.f32 %v1812, 0.0
    %v1821 = vmax.f32 %v1813, 0.0
    %s1822 = sld [smem:[#allocation3 + $0xa6]]
    %v1823 = vstv %s1822
    %v1824 = vmul.f32 %v1823, %v1814
    %v1825 = vmul.f32 %v1823, %v1815
    %v1826 = vmul.f32 %v1823, %v1816
    %v1827 = vmul.f32 %v1823, %v1817
    %v1828 = vmul.f32 %v1823, %v1818
    %v1829 = vmul.f32 %v1823, %v1819
    %v1830 = vmul.f32 %v1823, %v1820
    %v1831 = vmul.f32 %v1823, %v1821
    %v1832 = vadd.f32 %v1786, %v1824
    %v1833 = vadd.f32 %v1787, %v1825
    %v1834 = vadd.f32 %v1788, %v1826
    %v1835 = vadd.f32 %v1789, %v1827
    %v1836 = vadd.f32 %v1790, %v1828
    %v1837 = vadd.f32 %v1791, %v1829
    %v1838 = vadd.f32 %v1792, %v1830
    %v1839 = vadd.f32 %v1793, %v1831
    %s1840 = sld [smem:[#allocation3 + $0x27]]
    %v1841 = vstv %s1840
    %v1842 = vmul.f32 %v1841, %v38
    %v1843 = vmul.f32 %v1841, %v39
    %v1844 = vmul.f32 %v1841, %v40
    %v1845 = vmul.f32 %v1841, %v41
    %v1846 = vmul.f32 %v1841, %v42
    %v1847 = vmul.f32 %v1841, %v43
    %v1848 = vmul.f32 %v1841, %v44
    %v1849 = vmul.f32 %v1841, %v45
    %s1850 = sld [smem:[#allocation3 + $0x67]]
    %v1851 = vstv %s1850
    %v1852 = vadd.f32 %v1842, %v1851
    %v1853 = vadd.f32 %v1843, %v1851
    %v1854 = vadd.f32 %v1844, %v1851
    %v1855 = vadd.f32 %v1845, %v1851
    %v1856 = vadd.f32 %v1846, %v1851
    %v1857 = vadd.f32 %v1847, %v1851
    %v1858 = vadd.f32 %v1848, %v1851
    %v1859 = vadd.f32 %v1849, %v1851
    %v1860 = vmax.f32 %v1852, 0.0
    %v1861 = vmax.f32 %v1853, 0.0
    %v1862 = vmax.f32 %v1854, 0.0
    %v1863 = vmax.f32 %v1855, 0.0
    %v1864 = vmax.f32 %v1856, 0.0
    %v1865 = vmax.f32 %v1857, 0.0
    %v1866 = vmax.f32 %v1858, 0.0
    %v1867 = vmax.f32 %v1859, 0.0
    %s1868 = sld [smem:[#allocation3 + $0xa7]]
    %v1869 = vstv %s1868
    %v1870 = vmul.f32 %v1869, %v1860
    %v1871 = vmul.f32 %v1869, %v1861
    %v1872 = vmul.f32 %v1869, %v1862
    %v1873 = vmul.f32 %v1869, %v1863
    %v1874 = vmul.f32 %v1869, %v1864
    %v1875 = vmul.f32 %v1869, %v1865
    %v1876 = vmul.f32 %v1869, %v1866
    %v1877 = vmul.f32 %v1869, %v1867
    %v1878 = vadd.f32 %v1832, %v1870
    %v1879 = vadd.f32 %v1833, %v1871
    %v1880 = vadd.f32 %v1834, %v1872
    %v1881 = vadd.f32 %v1835, %v1873
    %v1882 = vadd.f32 %v1836, %v1874
    %v1883 = vadd.f32 %v1837, %v1875
    %v1884 = vadd.f32 %v1838, %v1876
    %v1885 = vadd.f32 %v1839, %v1877
    %s1886 = sld [smem:[#allocation3 + $0x28]]
    %v1887 = vstv %s1886
    %v1888 = vmul.f32 %v1887, %v38
    %v1889 = vmul.f32 %v1887, %v39
    %v1890 = vmul.f32 %v1887, %v40
    %v1891 = vmul.f32 %v1887, %v41
    %v1892 = vmul.f32 %v1887, %v42
    %v1893 = vmul.f32 %v1887, %v43
    %v1894 = vmul.f32 %v1887, %v44
    %v1895 = vmul.f32 %v1887, %v45
    %s1896 = sld [smem:[#allocation3 + $0x68]]
    %v1897 = vstv %s1896
    %v1898 = vadd.f32 %v1888, %v1897
    %v1899 = vadd.f32 %v1889, %v1897
    %v1900 = vadd.f32 %v1890, %v1897
    %v1901 = vadd.f32 %v1891, %v1897
    %v1902 = vadd.f32 %v1892, %v1897
    %v1903 = vadd.f32 %v1893, %v1897
    %v1904 = vadd.f32 %v1894, %v1897
    %v1905 = vadd.f32 %v1895, %v1897
    %v1906 = vmax.f32 %v1898, 0.0
    %v1907 = vmax.f32 %v1899, 0.0
    %v1908 = vmax.f32 %v1900, 0.0
    %v1909 = vmax.f32 %v1901, 0.0
    %v1910 = vmax.f32 %v1902, 0.0
    %v1911 = vmax.f32 %v1903, 0.0
    %v1912 = vmax.f32 %v1904, 0.0
    %v1913 = vmax.f32 %v1905, 0.0
    %s1914 = sld [smem:[#allocation3 + $0xa8]]
    %v1915 = vstv %s1914
    %v1916 = vmul.f32 %v1915, %v1906
    %v1917 = vmul.f32 %v1915, %v1907
    %v1918 = vmul.f32 %v1915, %v1908
    %v1919 = vmul.f32 %v1915, %v1909
    %v1920 = vmul.f32 %v1915, %v1910
    %v1921 = vmul.f32 %v1915, %v1911
    %v1922 = vmul.f32 %v1915, %v1912
    %v1923 = vmul.f32 %v1915, %v1913
    %v1924 = vadd.f32 %v1878, %v1916
    %v1925 = vadd.f32 %v1879, %v1917
    %v1926 = vadd.f32 %v1880, %v1918
    %v1927 = vadd.f32 %v1881, %v1919
    %v1928 = vadd.f32 %v1882, %v1920
    %v1929 = vadd.f32 %v1883, %v1921
    %v1930 = vadd.f32 %v1884, %v1922
    %v1931 = vadd.f32 %v1885, %v1923
    %s1932 = sld [smem:[#allocation3 + $0x29]]
    %v1933 = vstv %s1932
    %v1934 = vmul.f32 %v1933, %v38
    %v1935 = vmul.f32 %v1933, %v39
    %v1936 = vmul.f32 %v1933, %v40
    %v1937 = vmul.f32 %v1933, %v41
    %v1938 = vmul.f32 %v1933, %v42
    %v1939 = vmul.f32 %v1933, %v43
    %v1940 = vmul.f32 %v1933, %v44
    %v1941 = vmul.f32 %v1933, %v45
    %s1942 = sld [smem:[#allocation3 + $0x69]]
    %v1943 = vstv %s1942
    %v1944 = vadd.f32 %v1934, %v1943
    %v1945 = vadd.f32 %v1935, %v1943
    %v1946 = vadd.f32 %v1936, %v1943
    %v1947 = vadd.f32 %v1937, %v1943
    %v1948 = vadd.f32 %v1938, %v1943
    %v1949 = vadd.f32 %v1939, %v1943
    %v1950 = vadd.f32 %v1940, %v1943
    %v1951 = vadd.f32 %v1941, %v1943
    %v1952 = vmax.f32 %v1944, 0.0
    %v1953 = vmax.f32 %v1945, 0.0
    %v1954 = vmax.f32 %v1946, 0.0
    %v1955 = vmax.f32 %v1947, 0.0
    %v1956 = vmax.f32 %v1948, 0.0
    %v1957 = vmax.f32 %v1949, 0.0
    %v1958 = vmax.f32 %v1950, 0.0
    %v1959 = vmax.f32 %v1951, 0.0
    %s1960 = sld [smem:[#allocation3 + $0xa9]]
    %v1961 = vstv %s1960
    %v1962 = vmul.f32 %v1961, %v1952
    %v1963 = vmul.f32 %v1961, %v1953
    %v1964 = vmul.f32 %v1961, %v1954
    %v1965 = vmul.f32 %v1961, %v1955
    %v1966 = vmul.f32 %v1961, %v1956
    %v1967 = vmul.f32 %v1961, %v1957
    %v1968 = vmul.f32 %v1961, %v1958
    %v1969 = vmul.f32 %v1961, %v1959
    %v1970 = vadd.f32 %v1924, %v1962
    %v1971 = vadd.f32 %v1925, %v1963
    %v1972 = vadd.f32 %v1926, %v1964
    %v1973 = vadd.f32 %v1927, %v1965
    %v1974 = vadd.f32 %v1928, %v1966
    %v1975 = vadd.f32 %v1929, %v1967
    %v1976 = vadd.f32 %v1930, %v1968
    %v1977 = vadd.f32 %v1931, %v1969
    %s1978 = sld [smem:[#allocation3 + $0x2a]]
    %v1979 = vstv %s1978
    %v1980 = vmul.f32 %v1979, %v38
    %v1981 = vmul.f32 %v1979, %v39
    %v1982 = vmul.f32 %v1979, %v40
    %v1983 = vmul.f32 %v1979, %v41
    %v1984 = vmul.f32 %v1979, %v42
    %v1985 = vmul.f32 %v1979, %v43
    %v1986 = vmul.f32 %v1979, %v44
    %v1987 = vmul.f32 %v1979, %v45
    %s1988 = sld [smem:[#allocation3 + $0x6a]]
    %v1989 = vstv %s1988
    %v1990 = vadd.f32 %v1980, %v1989
    %v1991 = vadd.f32 %v1981, %v1989
    %v1992 = vadd.f32 %v1982, %v1989
    %v1993 = vadd.f32 %v1983, %v1989
    %v1994 = vadd.f32 %v1984, %v1989
    %v1995 = vadd.f32 %v1985, %v1989
    %v1996 = vadd.f32 %v1986, %v1989
    %v1997 = vadd.f32 %v1987, %v1989
    %v1998 = vmax.f32 %v1990, 0.0
    %v1999 = vmax.f32 %v1991, 0.0
    %v2000 = vmax.f32 %v1992, 0.0
    %v2001 = vmax.f32 %v1993, 0.0
    %v2002 = vmax.f32 %v1994, 0.0
    %v2003 = vmax.f32 %v1995, 0.0
    %v2004 = vmax.f32 %v1996, 0.0
    %v2005 = vmax.f32 %v1997, 0.0
    %s2006 = sld [smem:[#allocation3 + $0xaa]]
    %v2007 = vstv %s2006
    %v2008 = vmul.f32 %v2007, %v1998
    %v2009 = vmul.f32 %v2007, %v1999
    %v2010 = vmul.f32 %v2007, %v2000
    %v2011 = vmul.f32 %v2007, %v2001
    %v2012 = vmul.f32 %v2007, %v2002
    %v2013 = vmul.f32 %v2007, %v2003
    %v2014 = vmul.f32 %v2007, %v2004
    %v2015 = vmul.f32 %v2007, %v2005
    %v2016 = vadd.f32 %v1970, %v2008
    %v2017 = vadd.f32 %v1971, %v2009
    %v2018 = vadd.f32 %v1972, %v2010
    %v2019 = vadd.f32 %v1973, %v2011
    %v2020 = vadd.f32 %v1974, %v2012
    %v2021 = vadd.f32 %v1975, %v2013
    %v2022 = vadd.f32 %v1976, %v2014
    %v2023 = vadd.f32 %v1977, %v2015
    %s2024 = sld [smem:[#allocation3 + $0x2b]]
    %v2025 = vstv %s2024
    %v2026 = vmul.f32 %v2025, %v38
    %v2027 = vmul.f32 %v2025, %v39
    %v2028 = vmul.f32 %v2025, %v40
    %v2029 = vmul.f32 %v2025, %v41
    %v2030 = vmul.f32 %v2025, %v42
    %v2031 = vmul.f32 %v2025, %v43
    %v2032 = vmul.f32 %v2025, %v44
    %v2033 = vmul.f32 %v2025, %v45
    %s2034 = sld [smem:[#allocation3 + $0x6b]]
    %v2035 = vstv %s2034
    %v2036 = vadd.f32 %v2026, %v2035
    %v2037 = vadd.f32 %v2027, %v2035
    %v2038 = vadd.f32 %v2028, %v2035
    %v2039 = vadd.f32 %v2029, %v2035
    %v2040 = vadd.f32 %v2030, %v2035
    %v2041 = vadd.f32 %v2031, %v2035
    %v2042 = vadd.f32 %v2032, %v2035
    %v2043 = vadd.f32 %v2033, %v2035
    %v2044 = vmax.f32 %v2036, 0.0
    %v2045 = vmax.f32 %v2037, 0.0
    %v2046 = vmax.f32 %v2038, 0.0
    %v2047 = vmax.f32 %v2039, 0.0
    %v2048 = vmax.f32 %v2040, 0.0
    %v2049 = vmax.f32 %v2041, 0.0
    %v2050 = vmax.f32 %v2042, 0.0
    %v2051 = vmax.f32 %v2043, 0.0
    %s2052 = sld [smem:[#allocation3 + $0xab]]
    %v2053 = vstv %s2052
    %v2054 = vmul.f32 %v2053, %v2044
    %v2055 = vmul.f32 %v2053, %v2045
    %v2056 = vmul.f32 %v2053, %v2046
    %v2057 = vmul.f32 %v2053, %v2047
    %v2058 = vmul.f32 %v2053, %v2048
    %v2059 = vmul.f32 %v2053, %v2049
    %v2060 = vmul.f32 %v2053, %v2050
    %v2061 = vmul.f32 %v2053, %v2051
    %v2062 = vadd.f32 %v2016, %v2054
    %v2063 = vadd.f32 %v2017, %v2055
    %v2064 = vadd.f32 %v2018, %v2056
    %v2065 = vadd.f32 %v2019, %v2057
    %v2066 = vadd.f32 %v2020, %v2058
    %v2067 = vadd.f32 %v2021, %v2059
    %v2068 = vadd.f32 %v2022, %v2060
    %v2069 = vadd.f32 %v2023, %v2061
    %s2070 = sld [smem:[#allocation3 + $0x2c]]
    %v2071 = vstv %s2070
    %v2072 = vmul.f32 %v2071, %v38
    %v2073 = vmul.f32 %v2071, %v39
    %v2074 = vmul.f32 %v2071, %v40
    %v2075 = vmul.f32 %v2071, %v41
    %v2076 = vmul.f32 %v2071, %v42
    %v2077 = vmul.f32 %v2071, %v43
    %v2078 = vmul.f32 %v2071, %v44
    %v2079 = vmul.f32 %v2071, %v45
    %s2080 = sld [smem:[#allocation3 + $0x6c]]
    %v2081 = vstv %s2080
    %v2082 = vadd.f32 %v2072, %v2081
    %v2083 = vadd.f32 %v2073, %v2081
    %v2084 = vadd.f32 %v2074, %v2081
    %v2085 = vadd.f32 %v2075, %v2081
    %v2086 = vadd.f32 %v2076, %v2081
    %v2087 = vadd.f32 %v2077, %v2081
    %v2088 = vadd.f32 %v2078, %v2081
    %v2089 = vadd.f32 %v2079, %v2081
    %v2090 = vmax.f32 %v2082, 0.0
    %v2091 = vmax.f32 %v2083, 0.0
    %v2092 = vmax.f32 %v2084, 0.0
    %v2093 = vmax.f32 %v2085, 0.0
    %v2094 = vmax.f32 %v2086, 0.0
    %v2095 = vmax.f32 %v2087, 0.0
    %v2096 = vmax.f32 %v2088, 0.0
    %v2097 = vmax.f32 %v2089, 0.0
    %s2098 = sld [smem:[#allocation3 + $0xac]]
    %v2099 = vstv %s2098
    %v2100 = vmul.f32 %v2099, %v2090
    %v2101 = vmul.f32 %v2099, %v2091
    %v2102 = vmul.f32 %v2099, %v2092
    %v2103 = vmul.f32 %v2099, %v2093
    %v2104 = vmul.f32 %v2099, %v2094
    %v2105 = vmul.f32 %v2099, %v2095
    %v2106 = vmul.f32 %v2099, %v2096
    %v2107 = vmul.f32 %v2099, %v2097
    %v2108 = vadd.f32 %v2062, %v2100
    %v2109 = vadd.f32 %v2063, %v2101
    %v2110 = vadd.f32 %v2064, %v2102
    %v2111 = vadd.f32 %v2065, %v2103
    %v2112 = vadd.f32 %v2066, %v2104
    %v2113 = vadd.f32 %v2067, %v2105
    %v2114 = vadd.f32 %v2068, %v2106
    %v2115 = vadd.f32 %v2069, %v2107
    %s2116 = sld [smem:[#allocation3 + $0x2d]]
    %v2117 = vstv %s2116
    %v2118 = vmul.f32 %v2117, %v38
    %v2119 = vmul.f32 %v2117, %v39
    %v2120 = vmul.f32 %v2117, %v40
    %v2121 = vmul.f32 %v2117, %v41
    %v2122 = vmul.f32 %v2117, %v42
    %v2123 = vmul.f32 %v2117, %v43
    %v2124 = vmul.f32 %v2117, %v44
    %v2125 = vmul.f32 %v2117, %v45
    %s2126 = sld [smem:[#allocation3 + $0x6d]]
    %v2127 = vstv %s2126
    %v2128 = vadd.f32 %v2118, %v2127
    %v2129 = vadd.f32 %v2119, %v2127
    %v2130 = vadd.f32 %v2120, %v2127
    %v2131 = vadd.f32 %v2121, %v2127
    %v2132 = vadd.f32 %v2122, %v2127
    %v2133 = vadd.f32 %v2123, %v2127
    %v2134 = vadd.f32 %v2124, %v2127
    %v2135 = vadd.f32 %v2125, %v2127
    %v2136 = vmax.f32 %v2128, 0.0
    %v2137 = vmax.f32 %v2129, 0.0
    %v2138 = vmax.f32 %v2130, 0.0
    %v2139 = vmax.f32 %v2131, 0.0
    %v2140 = vmax.f32 %v2132, 0.0
    %v2141 = vmax.f32 %v2133, 0.0
    %v2142 = vmax.f32 %v2134, 0.0
    %v2143 = vmax.f32 %v2135, 0.0
    %s2144 = sld [smem:[#allocation3 + $0xad]]
    %v2145 = vstv %s2144
    %v2146 = vmul.f32 %v2145, %v2136
    %v2147 = vmul.f32 %v2145, %v2137
    %v2148 = vmul.f32 %v2145, %v2138
    %v2149 = vmul.f32 %v2145, %v2139
    %v2150 = vmul.f32 %v2145, %v2140
    %v2151 = vmul.f32 %v2145, %v2141
    %v2152 = vmul.f32 %v2145, %v2142
    %v2153 = vmul.f32 %v2145, %v2143
    %v2154 = vadd.f32 %v2108, %v2146
    %v2155 = vadd.f32 %v2109, %v2147
    %v2156 = vadd.f32 %v2110, %v2148
    %v2157 = vadd.f32 %v2111, %v2149
    %v2158 = vadd.f32 %v2112, %v2150
    %v2159 = vadd.f32 %v2113, %v2151
    %v2160 = vadd.f32 %v2114, %v2152
    %v2161 = vadd.f32 %v2115, %v2153
    %s2162 = sld [smem:[#allocation3 + $0x2e]]
    %v2163 = vstv %s2162
    %v2164 = vmul.f32 %v2163, %v38
    %v2165 = vmul.f32 %v2163, %v39
    %v2166 = vmul.f32 %v2163, %v40
    %v2167 = vmul.f32 %v2163, %v41
    %v2168 = vmul.f32 %v2163, %v42
    %v2169 = vmul.f32 %v2163, %v43
    %v2170 = vmul.f32 %v2163, %v44
    %v2171 = vmul.f32 %v2163, %v45
    %s2172 = sld [smem:[#allocation3 + $0x6e]]
    %v2173 = vstv %s2172
    %v2174 = vadd.f32 %v2164, %v2173
    %v2175 = vadd.f32 %v2165, %v2173
    %v2176 = vadd.f32 %v2166, %v2173
    %v2177 = vadd.f32 %v2167, %v2173
    %v2178 = vadd.f32 %v2168, %v2173
    %v2179 = vadd.f32 %v2169, %v2173
    %v2180 = vadd.f32 %v2170, %v2173
    %v2181 = vadd.f32 %v2171, %v2173
    %v2182 = vmax.f32 %v2174, 0.0
    %v2183 = vmax.f32 %v2175, 0.0
    %v2184 = vmax.f32 %v2176, 0.0
    %v2185 = vmax.f32 %v2177, 0.0
    %v2186 = vmax.f32 %v2178, 0.0
    %v2187 = vmax.f32 %v2179, 0.0
    %v2188 = vmax.f32 %v2180, 0.0
    %v2189 = vmax.f32 %v2181, 0.0
    %s2190 = sld [smem:[#allocation3 + $0xae]]
    %v2191 = vstv %s2190
    %v2192 = vmul.f32 %v2191, %v2182
    %v2193 = vmul.f32 %v2191, %v2183
    %v2194 = vmul.f32 %v2191, %v2184
    %v2195 = vmul.f32 %v2191, %v2185
    %v2196 = vmul.f32 %v2191, %v2186
    %v2197 = vmul.f32 %v2191, %v2187
    %v2198 = vmul.f32 %v2191, %v2188
    %v2199 = vmul.f32 %v2191, %v2189
    %v2200 = vadd.f32 %v2154, %v2192
    %v2201 = vadd.f32 %v2155, %v2193
    %v2202 = vadd.f32 %v2156, %v2194
    %v2203 = vadd.f32 %v2157, %v2195
    %v2204 = vadd.f32 %v2158, %v2196
    %v2205 = vadd.f32 %v2159, %v2197
    %v2206 = vadd.f32 %v2160, %v2198
    %v2207 = vadd.f32 %v2161, %v2199
    %s2208 = sld [smem:[#allocation3 + $0x2f]]
    %v2209 = vstv %s2208
    %v2210 = vmul.f32 %v2209, %v38
    %v2211 = vmul.f32 %v2209, %v39
    %v2212 = vmul.f32 %v2209, %v40
    %v2213 = vmul.f32 %v2209, %v41
    %v2214 = vmul.f32 %v2209, %v42
    %v2215 = vmul.f32 %v2209, %v43
    %v2216 = vmul.f32 %v2209, %v44
    %v2217 = vmul.f32 %v2209, %v45
    %s2218 = sld [smem:[#allocation3 + $0x6f]]
    %v2219 = vstv %s2218
    %v2220 = vadd.f32 %v2210, %v2219
    %v2221 = vadd.f32 %v2211, %v2219
    %v2222 = vadd.f32 %v2212, %v2219
    %v2223 = vadd.f32 %v2213, %v2219
    %v2224 = vadd.f32 %v2214, %v2219
    %v2225 = vadd.f32 %v2215, %v2219
    %v2226 = vadd.f32 %v2216, %v2219
    %v2227 = vadd.f32 %v2217, %v2219
    %v2228 = vmax.f32 %v2220, 0.0
    %v2229 = vmax.f32 %v2221, 0.0
    %v2230 = vmax.f32 %v2222, 0.0
    %v2231 = vmax.f32 %v2223, 0.0
    %v2232 = vmax.f32 %v2224, 0.0
    %v2233 = vmax.f32 %v2225, 0.0
    %v2234 = vmax.f32 %v2226, 0.0
    %v2235 = vmax.f32 %v2227, 0.0
    %s2236 = sld [smem:[#allocation3 + $0xaf]]
    %v2237 = vstv %s2236
    %v2238 = vmul.f32 %v2237, %v2228
    %v2239 = vmul.f32 %v2237, %v2229
    %v2240 = vmul.f32 %v2237, %v2230
    %v2241 = vmul.f32 %v2237, %v2231
    %v2242 = vmul.f32 %v2237, %v2232
    %v2243 = vmul.f32 %v2237, %v2233
    %v2244 = vmul.f32 %v2237, %v2234
    %v2245 = vmul.f32 %v2237, %v2235
    %v2246 = vadd.f32 %v2200, %v2238
    %v2247 = vadd.f32 %v2201, %v2239
    %v2248 = vadd.f32 %v2202, %v2240
    %v2249 = vadd.f32 %v2203, %v2241
    %v2250 = vadd.f32 %v2204, %v2242
    %v2251 = vadd.f32 %v2205, %v2243
    %v2252 = vadd.f32 %v2206, %v2244
    %v2253 = vadd.f32 %v2207, %v2245
    %s2254 = sld [smem:[#allocation3 + $0x30]]
    %v2255 = vstv %s2254
    %v2256 = vmul.f32 %v2255, %v38
    %v2257 = vmul.f32 %v2255, %v39
    %v2258 = vmul.f32 %v2255, %v40
    %v2259 = vmul.f32 %v2255, %v41
    %v2260 = vmul.f32 %v2255, %v42
    %v2261 = vmul.f32 %v2255, %v43
    %v2262 = vmul.f32 %v2255, %v44
    %v2263 = vmul.f32 %v2255, %v45
    %s2264 = sld [smem:[#allocation3 + $0x70]]
    %v2265 = vstv %s2264
    %v2266 = vadd.f32 %v2256, %v2265
    %v2267 = vadd.f32 %v2257, %v2265
    %v2268 = vadd.f32 %v2258, %v2265
    %v2269 = vadd.f32 %v2259, %v2265
    %v2270 = vadd.f32 %v2260, %v2265
    %v2271 = vadd.f32 %v2261, %v2265
    %v2272 = vadd.f32 %v2262, %v2265
    %v2273 = vadd.f32 %v2263, %v2265
    %v2274 = vmax.f32 %v2266, 0.0
    %v2275 = vmax.f32 %v2267, 0.0
    %v2276 = vmax.f32 %v2268, 0.0
    %v2277 = vmax.f32 %v2269, 0.0
    %v2278 = vmax.f32 %v2270, 0.0
    %v2279 = vmax.f32 %v2271, 0.0
    %v2280 = vmax.f32 %v2272, 0.0
    %v2281 = vmax.f32 %v2273, 0.0
    %s2282 = sld [smem:[#allocation3 + $0xb0]]
    %v2283 = vstv %s2282
    %v2284 = vmul.f32 %v2283, %v2274
    %v2285 = vmul.f32 %v2283, %v2275
    %v2286 = vmul.f32 %v2283, %v2276
    %v2287 = vmul.f32 %v2283, %v2277
    %v2288 = vmul.f32 %v2283, %v2278
    %v2289 = vmul.f32 %v2283, %v2279
    %v2290 = vmul.f32 %v2283, %v2280
    %v2291 = vmul.f32 %v2283, %v2281
    %v2292 = vadd.f32 %v2246, %v2284
    %v2293 = vadd.f32 %v2247, %v2285
    %v2294 = vadd.f32 %v2248, %v2286
    %v2295 = vadd.f32 %v2249, %v2287
    %v2296 = vadd.f32 %v2250, %v2288
    %v2297 = vadd.f32 %v2251, %v2289
    %v2298 = vadd.f32 %v2252, %v2290
    %v2299 = vadd.f32 %v2253, %v2291
    %s2300 = sld [smem:[#allocation3 + $0x31]]
    %v2301 = vstv %s2300
    %v2302 = vmul.f32 %v2301, %v38
    %v2303 = vmul.f32 %v2301, %v39
    %v2304 = vmul.f32 %v2301, %v40
    %v2305 = vmul.f32 %v2301, %v41
    %v2306 = vmul.f32 %v2301, %v42
    %v2307 = vmul.f32 %v2301, %v43
    %v2308 = vmul.f32 %v2301, %v44
    %v2309 = vmul.f32 %v2301, %v45
    %s2310 = sld [smem:[#allocation3 + $0x71]]
    %v2311 = vstv %s2310
    %v2312 = vadd.f32 %v2302, %v2311
    %v2313 = vadd.f32 %v2303, %v2311
    %v2314 = vadd.f32 %v2304, %v2311
    %v2315 = vadd.f32 %v2305, %v2311
    %v2316 = vadd.f32 %v2306, %v2311
    %v2317 = vadd.f32 %v2307, %v2311
    %v2318 = vadd.f32 %v2308, %v2311
    %v2319 = vadd.f32 %v2309, %v2311
    %v2320 = vmax.f32 %v2312, 0.0
    %v2321 = vmax.f32 %v2313, 0.0
    %v2322 = vmax.f32 %v2314, 0.0
    %v2323 = vmax.f32 %v2315, 0.0
    %v2324 = vmax.f32 %v2316, 0.0
    %v2325 = vmax.f32 %v2317, 0.0
    %v2326 = vmax.f32 %v2318, 0.0
    %v2327 = vmax.f32 %v2319, 0.0
    %s2328 = sld [smem:[#allocation3 + $0xb1]]
    %v2329 = vstv %s2328
    %v2330 = vmul.f32 %v2329, %v2320
    %v2331 = vmul.f32 %v2329, %v2321
    %v2332 = vmul.f32 %v2329, %v2322
    %v2333 = vmul.f32 %v2329, %v2323
    %v2334 = vmul.f32 %v2329, %v2324
    %v2335 = vmul.f32 %v2329, %v2325
    %v2336 = vmul.f32 %v2329, %v2326
    %v2337 = vmul.f32 %v2329, %v2327
    %v2338 = vadd.f32 %v2292, %v2330
    %v2339 = vadd.f32 %v2293, %v2331
    %v2340 = vadd.f32 %v2294, %v2332
    %v2341 = vadd.f32 %v2295, %v2333
    %v2342 = vadd.f32 %v2296, %v2334
    %v2343 = vadd.f32 %v2297, %v2335
    %v2344 = vadd.f32 %v2298, %v2336
    %v2345 = vadd.f32 %v2299, %v2337
    %s2346 = sld [smem:[#allocation3 + $0x32]]
    %v2347 = vstv %s2346
    %v2348 = vmul.f32 %v2347, %v38
    %v2349 = vmul.f32 %v2347, %v39
    %v2350 = vmul.f32 %v2347, %v40
    %v2351 = vmul.f32 %v2347, %v41
    %v2352 = vmul.f32 %v2347, %v42
    %v2353 = vmul.f32 %v2347, %v43
    %v2354 = vmul.f32 %v2347, %v44
    %v2355 = vmul.f32 %v2347, %v45
    %s2356 = sld [smem:[#allocation3 + $0x72]]
    %v2357 = vstv %s2356
    %v2358 = vadd.f32 %v2348, %v2357
    %v2359 = vadd.f32 %v2349, %v2357
    %v2360 = vadd.f32 %v2350, %v2357
    %v2361 = vadd.f32 %v2351, %v2357
    %v2362 = vadd.f32 %v2352, %v2357
    %v2363 = vadd.f32 %v2353, %v2357
    %v2364 = vadd.f32 %v2354, %v2357
    %v2365 = vadd.f32 %v2355, %v2357
    %v2366 = vmax.f32 %v2358, 0.0
    %v2367 = vmax.f32 %v2359, 0.0
    %v2368 = vmax.f32 %v2360, 0.0
    %v2369 = vmax.f32 %v2361, 0.0
    %v2370 = vmax.f32 %v2362, 0.0
    %v2371 = vmax.f32 %v2363, 0.0
    %v2372 = vmax.f32 %v2364, 0.0
    %v2373 = vmax.f32 %v2365, 0.0
    %s2374 = sld [smem:[#allocation3 + $0xb2]]
    %v2375 = vstv %s2374
    %v2376 = vmul.f32 %v2375, %v2366
    %v2377 = vmul.f32 %v2375, %v2367
    %v2378 = vmul.f32 %v2375, %v2368
    %v2379 = vmul.f32 %v2375, %v2369
    %v2380 = vmul.f32 %v2375, %v2370
    %v2381 = vmul.f32 %v2375, %v2371
    %v2382 = vmul.f32 %v2375, %v2372
    %v2383 = vmul.f32 %v2375, %v2373
    %v2384 = vadd.f32 %v2338, %v2376
    %v2385 = vadd.f32 %v2339, %v2377
    %v2386 = vadd.f32 %v2340, %v2378
    %v2387 = vadd.f32 %v2341, %v2379
    %v2388 = vadd.f32 %v2342, %v2380
    %v2389 = vadd.f32 %v2343, %v2381
    %v2390 = vadd.f32 %v2344, %v2382
    %v2391 = vadd.f32 %v2345, %v2383
    %s2392 = sld [smem:[#allocation3 + $0x33]]
    %v2393 = vstv %s2392
    %v2394 = vmul.f32 %v2393, %v38
    %v2395 = vmul.f32 %v2393, %v39
    %v2396 = vmul.f32 %v2393, %v40
    %v2397 = vmul.f32 %v2393, %v41
    %v2398 = vmul.f32 %v2393, %v42
    %v2399 = vmul.f32 %v2393, %v43
    %v2400 = vmul.f32 %v2393, %v44
    %v2401 = vmul.f32 %v2393, %v45
    %s2402 = sld [smem:[#allocation3 + $0x73]]
    %v2403 = vstv %s2402
    %v2404 = vadd.f32 %v2394, %v2403
    %v2405 = vadd.f32 %v2395, %v2403
    %v2406 = vadd.f32 %v2396, %v2403
    %v2407 = vadd.f32 %v2397, %v2403
    %v2408 = vadd.f32 %v2398, %v2403
    %v2409 = vadd.f32 %v2399, %v2403
    %v2410 = vadd.f32 %v2400, %v2403
    %v2411 = vadd.f32 %v2401, %v2403
    %v2412 = vmax.f32 %v2404, 0.0
    %v2413 = vmax.f32 %v2405, 0.0
    %v2414 = vmax.f32 %v2406, 0.0
    %v2415 = vmax.f32 %v2407, 0.0
    %v2416 = vmax.f32 %v2408, 0.0
    %v2417 = vmax.f32 %v2409, 0.0
    %v2418 = vmax.f32 %v2410, 0.0
    %v2419 = vmax.f32 %v2411, 0.0
    %s2420 = sld [smem:[#allocation3 + $0xb3]]
    %v2421 = vstv %s2420
    %v2422 = vmul.f32 %v2421, %v2412
    %v2423 = vmul.f32 %v2421, %v2413
    %v2424 = vmul.f32 %v2421, %v2414
    %v2425 = vmul.f32 %v2421, %v2415
    %v2426 = vmul.f32 %v2421, %v2416
    %v2427 = vmul.f32 %v2421, %v2417
    %v2428 = vmul.f32 %v2421, %v2418
    %v2429 = vmul.f32 %v2421, %v2419
    %v2430 = vadd.f32 %v2384, %v2422
    %v2431 = vadd.f32 %v2385, %v2423
    %v2432 = vadd.f32 %v2386, %v2424
    %v2433 = vadd.f32 %v2387, %v2425
    %v2434 = vadd.f32 %v2388, %v2426
    %v2435 = vadd.f32 %v2389, %v2427
    %v2436 = vadd.f32 %v2390, %v2428
    %v2437 = vadd.f32 %v2391, %v2429
    %s2438 = sld [smem:[#allocation3 + $0x34]]
    %v2439 = vstv %s2438
    %v2440 = vmul.f32 %v2439, %v38
    %v2441 = vmul.f32 %v2439, %v39
    %v2442 = vmul.f32 %v2439, %v40
    %v2443 = vmul.f32 %v2439, %v41
    %v2444 = vmul.f32 %v2439, %v42
    %v2445 = vmul.f32 %v2439, %v43
    %v2446 = vmul.f32 %v2439, %v44
    %v2447 = vmul.f32 %v2439, %v45
    %s2448 = sld [smem:[#allocation3 + $0x74]]
    %v2449 = vstv %s2448
    %v2450 = vadd.f32 %v2440, %v2449
    %v2451 = vadd.f32 %v2441, %v2449
    %v2452 = vadd.f32 %v2442, %v2449
    %v2453 = vadd.f32 %v2443, %v2449
    %v2454 = vadd.f32 %v2444, %v2449
    %v2455 = vadd.f32 %v2445, %v2449
    %v2456 = vadd.f32 %v2446, %v2449
    %v2457 = vadd.f32 %v2447, %v2449
    %v2458 = vmax.f32 %v2450, 0.0
    %v2459 = vmax.f32 %v2451, 0.0
    %v2460 = vmax.f32 %v2452, 0.0
    %v2461 = vmax.f32 %v2453, 0.0
    %v2462 = vmax.f32 %v2454, 0.0
    %v2463 = vmax.f32 %v2455, 0.0
    %v2464 = vmax.f32 %v2456, 0.0
    %v2465 = vmax.f32 %v2457, 0.0
    %s2466 = sld [smem:[#allocation3 + $0xb4]]
    %v2467 = vstv %s2466
    %v2468 = vmul.f32 %v2467, %v2458
    %v2469 = vmul.f32 %v2467, %v2459
    %v2470 = vmul.f32 %v2467, %v2460
    %v2471 = vmul.f32 %v2467, %v2461
    %v2472 = vmul.f32 %v2467, %v2462
    %v2473 = vmul.f32 %v2467, %v2463
    %v2474 = vmul.f32 %v2467, %v2464
    %v2475 = vmul.f32 %v2467, %v2465
    %v2476 = vadd.f32 %v2430, %v2468
    %v2477 = vadd.f32 %v2431, %v2469
    %v2478 = vadd.f32 %v2432, %v2470
    %v2479 = vadd.f32 %v2433, %v2471
    %v2480 = vadd.f32 %v2434, %v2472
    %v2481 = vadd.f32 %v2435, %v2473
    %v2482 = vadd.f32 %v2436, %v2474
    %v2483 = vadd.f32 %v2437, %v2475
    %s2484 = sld [smem:[#allocation3 + $0x35]]
    %v2485 = vstv %s2484
    %v2486 = vmul.f32 %v2485, %v38
    %v2487 = vmul.f32 %v2485, %v39
    %v2488 = vmul.f32 %v2485, %v40
    %v2489 = vmul.f32 %v2485, %v41
    %v2490 = vmul.f32 %v2485, %v42
    %v2491 = vmul.f32 %v2485, %v43
    %v2492 = vmul.f32 %v2485, %v44
    %v2493 = vmul.f32 %v2485, %v45
    %s2494 = sld [smem:[#allocation3 + $0x75]]
    %v2495 = vstv %s2494
    %v2496 = vadd.f32 %v2486, %v2495
    %v2497 = vadd.f32 %v2487, %v2495
    %v2498 = vadd.f32 %v2488, %v2495
    %v2499 = vadd.f32 %v2489, %v2495
    %v2500 = vadd.f32 %v2490, %v2495
    %v2501 = vadd.f32 %v2491, %v2495
    %v2502 = vadd.f32 %v2492, %v2495
    %v2503 = vadd.f32 %v2493, %v2495
    %v2504 = vmax.f32 %v2496, 0.0
    %v2505 = vmax.f32 %v2497, 0.0
    %v2506 = vmax.f32 %v2498, 0.0
    %v2507 = vmax.f32 %v2499, 0.0
    %v2508 = vmax.f32 %v2500, 0.0
    %v2509 = vmax.f32 %v2501, 0.0
    %v2510 = vmax.f32 %v2502, 0.0
    %v2511 = vmax.f32 %v2503, 0.0
    %s2512 = sld [smem:[#allocation3 + $0xb5]]
    %v2513 = vstv %s2512
    %v2514 = vmul.f32 %v2513, %v2504
    %v2515 = vmul.f32 %v2513, %v2505
    %v2516 = vmul.f32 %v2513, %v2506
    %v2517 = vmul.f32 %v2513, %v2507
    %v2518 = vmul.f32 %v2513, %v2508
    %v2519 = vmul.f32 %v2513, %v2509
    %v2520 = vmul.f32 %v2513, %v2510
    %v2521 = vmul.f32 %v2513, %v2511
    %v2522 = vadd.f32 %v2476, %v2514
    %v2523 = vadd.f32 %v2477, %v2515
    %v2524 = vadd.f32 %v2478, %v2516
    %v2525 = vadd.f32 %v2479, %v2517
    %v2526 = vadd.f32 %v2480, %v2518
    %v2527 = vadd.f32 %v2481, %v2519
    %v2528 = vadd.f32 %v2482, %v2520
    %v2529 = vadd.f32 %v2483, %v2521
    %s2530 = sld [smem:[#allocation3 + $0x36]]
    %v2531 = vstv %s2530
    %v2532 = vmul.f32 %v2531, %v38
    %v2533 = vmul.f32 %v2531, %v39
    %v2534 = vmul.f32 %v2531, %v40
    %v2535 = vmul.f32 %v2531, %v41
    %v2536 = vmul.f32 %v2531, %v42
    %v2537 = vmul.f32 %v2531, %v43
    %v2538 = vmul.f32 %v2531, %v44
    %v2539 = vmul.f32 %v2531, %v45
    %s2540 = sld [smem:[#allocation3 + $0x76]]
    %v2541 = vstv %s2540
    %v2542 = vadd.f32 %v2532, %v2541
    %v2543 = vadd.f32 %v2533, %v2541
    %v2544 = vadd.f32 %v2534, %v2541
    %v2545 = vadd.f32 %v2535, %v2541
    %v2546 = vadd.f32 %v2536, %v2541
    %v2547 = vadd.f32 %v2537, %v2541
    %v2548 = vadd.f32 %v2538, %v2541
    %v2549 = vadd.f32 %v2539, %v2541
    %v2550 = vmax.f32 %v2542, 0.0
    %v2551 = vmax.f32 %v2543, 0.0
    %v2552 = vmax.f32 %v2544, 0.0
    %v2553 = vmax.f32 %v2545, 0.0
    %v2554 = vmax.f32 %v2546, 0.0
    %v2555 = vmax.f32 %v2547, 0.0
    %v2556 = vmax.f32 %v2548, 0.0
    %v2557 = vmax.f32 %v2549, 0.0
    %s2558 = sld [smem:[#allocation3 + $0xb6]]
    %v2559 = vstv %s2558
    %v2560 = vmul.f32 %v2559, %v2550
    %v2561 = vmul.f32 %v2559, %v2551
    %v2562 = vmul.f32 %v2559, %v2552
    %v2563 = vmul.f32 %v2559, %v2553
    %v2564 = vmul.f32 %v2559, %v2554
    %v2565 = vmul.f32 %v2559, %v2555
    %v2566 = vmul.f32 %v2559, %v2556
    %v2567 = vmul.f32 %v2559, %v2557
    %v2568 = vadd.f32 %v2522, %v2560
    %v2569 = vadd.f32 %v2523, %v2561
    %v2570 = vadd.f32 %v2524, %v2562
    %v2571 = vadd.f32 %v2525, %v2563
    %v2572 = vadd.f32 %v2526, %v2564
    %v2573 = vadd.f32 %v2527, %v2565
    %v2574 = vadd.f32 %v2528, %v2566
    %v2575 = vadd.f32 %v2529, %v2567
    %s2576 = sld [smem:[#allocation3 + $0x37]]
    %v2577 = vstv %s2576
    %v2578 = vmul.f32 %v2577, %v38
    %v2579 = vmul.f32 %v2577, %v39
    %v2580 = vmul.f32 %v2577, %v40
    %v2581 = vmul.f32 %v2577, %v41
    %v2582 = vmul.f32 %v2577, %v42
    %v2583 = vmul.f32 %v2577, %v43
    %v2584 = vmul.f32 %v2577, %v44
    %v2585 = vmul.f32 %v2577, %v45
    %s2586 = sld [smem:[#allocation3 + $0x77]]
    %v2587 = vstv %s2586
    %v2588 = vadd.f32 %v2578, %v2587
    %v2589 = vadd.f32 %v2579, %v2587
    %v2590 = vadd.f32 %v2580, %v2587
    %v2591 = vadd.f32 %v2581, %v2587
    %v2592 = vadd.f32 %v2582, %v2587
    %v2593 = vadd.f32 %v2583, %v2587
    %v2594 = vadd.f32 %v2584, %v2587
    %v2595 = vadd.f32 %v2585, %v2587
    %v2596 = vmax.f32 %v2588, 0.0
    %v2597 = vmax.f32 %v2589, 0.0
    %v2598 = vmax.f32 %v2590, 0.0
    %v2599 = vmax.f32 %v2591, 0.0
    %v2600 = vmax.f32 %v2592, 0.0
    %v2601 = vmax.f32 %v2593, 0.0
    %v2602 = vmax.f32 %v2594, 0.0
    %v2603 = vmax.f32 %v2595, 0.0
    %s2604 = sld [smem:[#allocation3 + $0xb7]]
    %v2605 = vstv %s2604
    %v2606 = vmul.f32 %v2605, %v2596
    %v2607 = vmul.f32 %v2605, %v2597
    %v2608 = vmul.f32 %v2605, %v2598
    %v2609 = vmul.f32 %v2605, %v2599
    %v2610 = vmul.f32 %v2605, %v2600
    %v2611 = vmul.f32 %v2605, %v2601
    %v2612 = vmul.f32 %v2605, %v2602
    %v2613 = vmul.f32 %v2605, %v2603
    %v2614 = vadd.f32 %v2568, %v2606
    %v2615 = vadd.f32 %v2569, %v2607
    %v2616 = vadd.f32 %v2570, %v2608
    %v2617 = vadd.f32 %v2571, %v2609
    %v2618 = vadd.f32 %v2572, %v2610
    %v2619 = vadd.f32 %v2573, %v2611
    %v2620 = vadd.f32 %v2574, %v2612
    %v2621 = vadd.f32 %v2575, %v2613
    %s2622 = sld [smem:[#allocation3 + $0x38]]
    %v2623 = vstv %s2622
    %v2624 = vmul.f32 %v2623, %v38
    %v2625 = vmul.f32 %v2623, %v39
    %v2626 = vmul.f32 %v2623, %v40
    %v2627 = vmul.f32 %v2623, %v41
    %v2628 = vmul.f32 %v2623, %v42
    %v2629 = vmul.f32 %v2623, %v43
    %v2630 = vmul.f32 %v2623, %v44
    %v2631 = vmul.f32 %v2623, %v45
    %s2632 = sld [smem:[#allocation3 + $0x78]]
    %v2633 = vstv %s2632
    %v2634 = vadd.f32 %v2624, %v2633
    %v2635 = vadd.f32 %v2625, %v2633
    %v2636 = vadd.f32 %v2626, %v2633
    %v2637 = vadd.f32 %v2627, %v2633
    %v2638 = vadd.f32 %v2628, %v2633
    %v2639 = vadd.f32 %v2629, %v2633
    %v2640 = vadd.f32 %v2630, %v2633
    %v2641 = vadd.f32 %v2631, %v2633
    %v2642 = vmax.f32 %v2634, 0.0
    %v2643 = vmax.f32 %v2635, 0.0
    %v2644 = vmax.f32 %v2636, 0.0
    %v2645 = vmax.f32 %v2637, 0.0
    %v2646 = vmax.f32 %v2638, 0.0
    %v2647 = vmax.f32 %v2639, 0.0
    %v2648 = vmax.f32 %v2640, 0.0
    %v2649 = vmax.f32 %v2641, 0.0
    %s2650 = sld [smem:[#allocation3 + $0xb8]]
    %v2651 = vstv %s2650
    %v2652 = vmul.f32 %v2651, %v2642
    %v2653 = vmul.f32 %v2651, %v2643
    %v2654 = vmul.f32 %v2651, %v2644
    %v2655 = vmul.f32 %v2651, %v2645
    %v2656 = vmul.f32 %v2651, %v2646
    %v2657 = vmul.f32 %v2651, %v2647
    %v2658 = vmul.f32 %v2651, %v2648
    %v2659 = vmul.f32 %v2651, %v2649
    %v2660 = vadd.f32 %v2614, %v2652
    %v2661 = vadd.f32 %v2615, %v2653
    %v2662 = vadd.f32 %v2616, %v2654
    %v2663 = vadd.f32 %v2617, %v2655
    %v2664 = vadd.f32 %v2618, %v2656
    %v2665 = vadd.f32 %v2619, %v2657
    %v2666 = vadd.f32 %v2620, %v2658
    %v2667 = vadd.f32 %v2621, %v2659
    %s2668 = sld [smem:[#allocation3 + $0x39]]
    %v2669 = vstv %s2668
    %v2670 = vmul.f32 %v2669, %v38
    %v2671 = vmul.f32 %v2669, %v39
    %v2672 = vmul.f32 %v2669, %v40
    %v2673 = vmul.f32 %v2669, %v41
    %v2674 = vmul.f32 %v2669, %v42
    %v2675 = vmul.f32 %v2669, %v43
    %v2676 = vmul.f32 %v2669, %v44
    %v2677 = vmul.f32 %v2669, %v45
    %s2678 = sld [smem:[#allocation3 + $0x79]]
    %v2679 = vstv %s2678
    %v2680 = vadd.f32 %v2670, %v2679
    %v2681 = vadd.f32 %v2671, %v2679
    %v2682 = vadd.f32 %v2672, %v2679
    %v2683 = vadd.f32 %v2673, %v2679
    %v2684 = vadd.f32 %v2674, %v2679
    %v2685 = vadd.f32 %v2675, %v2679
    %v2686 = vadd.f32 %v2676, %v2679
    %v2687 = vadd.f32 %v2677, %v2679
    %v2688 = vmax.f32 %v2680, 0.0
    %v2689 = vmax.f32 %v2681, 0.0
    %v2690 = vmax.f32 %v2682, 0.0
    %v2691 = vmax.f32 %v2683, 0.0
    %v2692 = vmax.f32 %v2684, 0.0
    %v2693 = vmax.f32 %v2685, 0.0
    %v2694 = vmax.f32 %v2686, 0.0
    %v2695 = vmax.f32 %v2687, 0.0
    %s2696 = sld [smem:[#allocation3 + $0xb9]]
    %v2697 = vstv %s2696
    %v2698 = vmul.f32 %v2697, %v2688
    %v2699 = vmul.f32 %v2697, %v2689
    %v2700 = vmul.f32 %v2697, %v2690
    %v2701 = vmul.f32 %v2697, %v2691
    %v2702 = vmul.f32 %v2697, %v2692
    %v2703 = vmul.f32 %v2697, %v2693
    %v2704 = vmul.f32 %v2697, %v2694
    %v2705 = vmul.f32 %v2697, %v2695
    %v2706 = vadd.f32 %v2660, %v2698
    %v2707 = vadd.f32 %v2661, %v2699
    %v2708 = vadd.f32 %v2662, %v2700
    %v2709 = vadd.f32 %v2663, %v2701
    %v2710 = vadd.f32 %v2664, %v2702
    %v2711 = vadd.f32 %v2665, %v2703
    %v2712 = vadd.f32 %v2666, %v2704
    %v2713 = vadd.f32 %v2667, %v2705
    %s2714 = sld [smem:[#allocation3 + $0x3a]]
    %v2715 = vstv %s2714
    %v2716 = vmul.f32 %v2715, %v38
    %v2717 = vmul.f32 %v2715, %v39
    %v2718 = vmul.f32 %v2715, %v40
    %v2719 = vmul.f32 %v2715, %v41
    %v2720 = vmul.f32 %v2715, %v42
    %v2721 = vmul.f32 %v2715, %v43
    %v2722 = vmul.f32 %v2715, %v44
    %v2723 = vmul.f32 %v2715, %v45
    %s2724 = sld [smem:[#allocation3 + $0x7a]]
    %v2725 = vstv %s2724
    %v2726 = vadd.f32 %v2716, %v2725
    %v2727 = vadd.f32 %v2717, %v2725
    %v2728 = vadd.f32 %v2718, %v2725
    %v2729 = vadd.f32 %v2719, %v2725
    %v2730 = vadd.f32 %v2720, %v2725
    %v2731 = vadd.f32 %v2721, %v2725
    %v2732 = vadd.f32 %v2722, %v2725
    %v2733 = vadd.f32 %v2723, %v2725
    %v2734 = vmax.f32 %v2726, 0.0
    %v2735 = vmax.f32 %v2727, 0.0
    %v2736 = vmax.f32 %v2728, 0.0
    %v2737 = vmax.f32 %v2729, 0.0
    %v2738 = vmax.f32 %v2730, 0.0
    %v2739 = vmax.f32 %v2731, 0.0
    %v2740 = vmax.f32 %v2732, 0.0
    %v2741 = vmax.f32 %v2733, 0.0
    %s2742 = sld [smem:[#allocation3 + $0xba]]
    %v2743 = vstv %s2742
    %v2744 = vmul.f32 %v2743, %v2734
    %v2745 = vmul.f32 %v2743, %v2735
    %v2746 = vmul.f32 %v2743, %v2736
    %v2747 = vmul.f32 %v2743, %v2737
    %v2748 = vmul.f32 %v2743, %v2738
    %v2749 = vmul.f32 %v2743, %v2739
    %v2750 = vmul.f32 %v2743, %v2740
    %v2751 = vmul.f32 %v2743, %v2741
    %v2752 = vadd.f32 %v2706, %v2744
    %v2753 = vadd.f32 %v2707, %v2745
    %v2754 = vadd.f32 %v2708, %v2746
    %v2755 = vadd.f32 %v2709, %v2747
    %v2756 = vadd.f32 %v2710, %v2748
    %v2757 = vadd.f32 %v2711, %v2749
    %v2758 = vadd.f32 %v2712, %v2750
    %v2759 = vadd.f32 %v2713, %v2751
    %s2760 = sld [smem:[#allocation3 + $0x3b]]
    %v2761 = vstv %s2760
    %v2762 = vmul.f32 %v2761, %v38
    %v2763 = vmul.f32 %v2761, %v39
    %v2764 = vmul.f32 %v2761, %v40
    %v2765 = vmul.f32 %v2761, %v41
    %v2766 = vmul.f32 %v2761, %v42
    %v2767 = vmul.f32 %v2761, %v43
    %v2768 = vmul.f32 %v2761, %v44
    %v2769 = vmul.f32 %v2761, %v45
    %s2770 = sld [smem:[#allocation3 + $0x7b]]
    %v2771 = vstv %s2770
    %v2772 = vadd.f32 %v2762, %v2771
    %v2773 = vadd.f32 %v2763, %v2771
    %v2774 = vadd.f32 %v2764, %v2771
    %v2775 = vadd.f32 %v2765, %v2771
    %v2776 = vadd.f32 %v2766, %v2771
    %v2777 = vadd.f32 %v2767, %v2771
    %v2778 = vadd.f32 %v2768, %v2771
    %v2779 = vadd.f32 %v2769, %v2771
    %v2780 = vmax.f32 %v2772, 0.0
    %v2781 = vmax.f32 %v2773, 0.0
    %v2782 = vmax.f32 %v2774, 0.0
    %v2783 = vmax.f32 %v2775, 0.0
    %v2784 = vmax.f32 %v2776, 0.0
    %v2785 = vmax.f32 %v2777, 0.0
    %v2786 = vmax.f32 %v2778, 0.0
    %v2787 = vmax.f32 %v2779, 0.0
    %s2788 = sld [smem:[#allocation3 + $0xbb]]
    %v2789 = vstv %s2788
    %v2790 = vmul.f32 %v2789, %v2780
    %v2791 = vmul.f32 %v2789, %v2781
    %v2792 = vmul.f32 %v2789, %v2782
    %v2793 = vmul.f32 %v2789, %v2783
    %v2794 = vmul.f32 %v2789, %v2784
    %v2795 = vmul.f32 %v2789, %v2785
    %v2796 = vmul.f32 %v2789, %v2786
    %v2797 = vmul.f32 %v2789, %v2787
    %v2798 = vadd.f32 %v2752, %v2790
    %v2799 = vadd.f32 %v2753, %v2791
    %v2800 = vadd.f32 %v2754, %v2792
    %v2801 = vadd.f32 %v2755, %v2793
    %v2802 = vadd.f32 %v2756, %v2794
    %v2803 = vadd.f32 %v2757, %v2795
    %v2804 = vadd.f32 %v2758, %v2796
    %v2805 = vadd.f32 %v2759, %v2797
    %s2806 = sld [smem:[#allocation3 + $0x3c]]
    %v2807 = vstv %s2806
    %v2808 = vmul.f32 %v2807, %v38
    %v2809 = vmul.f32 %v2807, %v39
    %v2810 = vmul.f32 %v2807, %v40
    %v2811 = vmul.f32 %v2807, %v41
    %v2812 = vmul.f32 %v2807, %v42
    %v2813 = vmul.f32 %v2807, %v43
    %v2814 = vmul.f32 %v2807, %v44
    %v2815 = vmul.f32 %v2807, %v45
    %s2816 = sld [smem:[#allocation3 + $0x7c]]
    %v2817 = vstv %s2816
    %v2818 = vadd.f32 %v2808, %v2817
    %v2819 = vadd.f32 %v2809, %v2817
    %v2820 = vadd.f32 %v2810, %v2817
    %v2821 = vadd.f32 %v2811, %v2817
    %v2822 = vadd.f32 %v2812, %v2817
    %v2823 = vadd.f32 %v2813, %v2817
    %v2824 = vadd.f32 %v2814, %v2817
    %v2825 = vadd.f32 %v2815, %v2817
    %v2826 = vmax.f32 %v2818, 0.0
    %v2827 = vmax.f32 %v2819, 0.0
    %v2828 = vmax.f32 %v2820, 0.0
    %v2829 = vmax.f32 %v2821, 0.0
    %v2830 = vmax.f32 %v2822, 0.0
    %v2831 = vmax.f32 %v2823, 0.0
    %v2832 = vmax.f32 %v2824, 0.0
    %v2833 = vmax.f32 %v2825, 0.0
    %s2834 = sld [smem:[#allocation3 + $0xbc]]
    %v2835 = vstv %s2834
    %v2836 = vmul.f32 %v2835, %v2826
    %v2837 = vmul.f32 %v2835, %v2827
    %v2838 = vmul.f32 %v2835, %v2828
    %v2839 = vmul.f32 %v2835, %v2829
    %v2840 = vmul.f32 %v2835, %v2830
    %v2841 = vmul.f32 %v2835, %v2831
    %v2842 = vmul.f32 %v2835, %v2832
    %v2843 = vmul.f32 %v2835, %v2833
    %v2844 = vadd.f32 %v2798, %v2836
    %v2845 = vadd.f32 %v2799, %v2837
    %v2846 = vadd.f32 %v2800, %v2838
    %v2847 = vadd.f32 %v2801, %v2839
    %v2848 = vadd.f32 %v2802, %v2840
    %v2849 = vadd.f32 %v2803, %v2841
    %v2850 = vadd.f32 %v2804, %v2842
    %v2851 = vadd.f32 %v2805, %v2843
    %s2852 = sld [smem:[#allocation3 + $0x3d]]
    %v2853 = vstv %s2852
    %v2854 = vmul.f32 %v2853, %v38
    %v2855 = vmul.f32 %v2853, %v39
    %v2856 = vmul.f32 %v2853, %v40
    %v2857 = vmul.f32 %v2853, %v41
    %v2858 = vmul.f32 %v2853, %v42
    %v2859 = vmul.f32 %v2853, %v43
    %v2860 = vmul.f32 %v2853, %v44
    %v2861 = vmul.f32 %v2853, %v45
    %s2862 = sld [smem:[#allocation3 + $0x7d]]
    %v2863 = vstv %s2862
    %v2864 = vadd.f32 %v2854, %v2863
    %v2865 = vadd.f32 %v2855, %v2863
    %v2866 = vadd.f32 %v2856, %v2863
    %v2867 = vadd.f32 %v2857, %v2863
    %v2868 = vadd.f32 %v2858, %v2863
    %v2869 = vadd.f32 %v2859, %v2863
    %v2870 = vadd.f32 %v2860, %v2863
    %v2871 = vadd.f32 %v2861, %v2863
    %v2872 = vmax.f32 %v2864, 0.0
    %v2873 = vmax.f32 %v2865, 0.0
    %v2874 = vmax.f32 %v2866, 0.0
    %v2875 = vmax.f32 %v2867, 0.0
    %v2876 = vmax.f32 %v2868, 0.0
    %v2877 = vmax.f32 %v2869, 0.0
    %v2878 = vmax.f32 %v2870, 0.0
    %v2879 = vmax.f32 %v2871, 0.0
    %s2880 = sld [smem:[#allocation3 + $0xbd]]
    %v2881 = vstv %s2880
    %v2882 = vmul.f32 %v2881, %v2872
    %v2883 = vmul.f32 %v2881, %v2873
    %v2884 = vmul.f32 %v2881, %v2874
    %v2885 = vmul.f32 %v2881, %v2875
    %v2886 = vmul.f32 %v2881, %v2876
    %v2887 = vmul.f32 %v2881, %v2877
    %v2888 = vmul.f32 %v2881, %v2878
    %v2889 = vmul.f32 %v2881, %v2879
    %v2890 = vadd.f32 %v2844, %v2882
    %v2891 = vadd.f32 %v2845, %v2883
    %v2892 = vadd.f32 %v2846, %v2884
    %v2893 = vadd.f32 %v2847, %v2885
    %v2894 = vadd.f32 %v2848, %v2886
    %v2895 = vadd.f32 %v2849, %v2887
    %v2896 = vadd.f32 %v2850, %v2888
    %v2897 = vadd.f32 %v2851, %v2889
    %s2898 = sld [smem:[#allocation3 + $0x3e]]
    %v2899 = vstv %s2898
    %v2900 = vmul.f32 %v2899, %v38
    %v2901 = vmul.f32 %v2899, %v39
    %v2902 = vmul.f32 %v2899, %v40
    %v2903 = vmul.f32 %v2899, %v41
    %v2904 = vmul.f32 %v2899, %v42
    %v2905 = vmul.f32 %v2899, %v43
    %v2906 = vmul.f32 %v2899, %v44
    %v2907 = vmul.f32 %v2899, %v45
    %s2908 = sld [smem:[#allocation3 + $0x7e]]
    %v2909 = vstv %s2908
    %v2910 = vadd.f32 %v2900, %v2909
    %v2911 = vadd.f32 %v2901, %v2909
    %v2912 = vadd.f32 %v2902, %v2909
    %v2913 = vadd.f32 %v2903, %v2909
    %v2914 = vadd.f32 %v2904, %v2909
    %v2915 = vadd.f32 %v2905, %v2909
    %v2916 = vadd.f32 %v2906, %v2909
    %v2917 = vadd.f32 %v2907, %v2909
    %v2918 = vmax.f32 %v2910, 0.0
    %v2919 = vmax.f32 %v2911, 0.0
    %v2920 = vmax.f32 %v2912, 0.0
    %v2921 = vmax.f32 %v2913, 0.0
    %v2922 = vmax.f32 %v2914, 0.0
    %v2923 = vmax.f32 %v2915, 0.0
    %v2924 = vmax.f32 %v2916, 0.0
    %v2925 = vmax.f32 %v2917, 0.0
    %s2926 = sld [smem:[#allocation3 + $0xbe]]
    %v2927 = vstv %s2926
    %v2928 = vmul.f32 %v2927, %v2918
    %v2929 = vmul.f32 %v2927, %v2919
    %v2930 = vmul.f32 %v2927, %v2920
    %v2931 = vmul.f32 %v2927, %v2921
    %v2932 = vmul.f32 %v2927, %v2922
    %v2933 = vmul.f32 %v2927, %v2923
    %v2934 = vmul.f32 %v2927, %v2924
    %v2935 = vmul.f32 %v2927, %v2925
    %v2936 = vadd.f32 %v2890, %v2928
    %v2937 = vadd.f32 %v2891, %v2929
    %v2938 = vadd.f32 %v2892, %v2930
    %v2939 = vadd.f32 %v2893, %v2931
    %v2940 = vadd.f32 %v2894, %v2932
    %v2941 = vadd.f32 %v2895, %v2933
    %v2942 = vadd.f32 %v2896, %v2934
    %v2943 = vadd.f32 %v2897, %v2935
    %s2944 = sld [smem:[#allocation3 + $0x3f]]
    %v2945 = vstv %s2944
    %v2946 = vmul.f32 %v2945, %v38
    %v2947 = vmul.f32 %v2945, %v39
    %v2948 = vmul.f32 %v2945, %v40
    %v2949 = vmul.f32 %v2945, %v41
    %v2950 = vmul.f32 %v2945, %v42
    %v2951 = vmul.f32 %v2945, %v43
    %v2952 = vmul.f32 %v2945, %v44
    %v2953 = vmul.f32 %v2945, %v45
    %s2954 = sld [smem:[#allocation3 + $0x7f]]
    %v2955 = vstv %s2954
    %v2956 = vadd.f32 %v2946, %v2955
    %v2957 = vadd.f32 %v2947, %v2955
    %v2958 = vadd.f32 %v2948, %v2955
    %v2959 = vadd.f32 %v2949, %v2955
    %v2960 = vadd.f32 %v2950, %v2955
    %v2961 = vadd.f32 %v2951, %v2955
    %v2962 = vadd.f32 %v2952, %v2955
    %v2963 = vadd.f32 %v2953, %v2955
    %v2964 = vmax.f32 %v2956, 0.0
    %v2965 = vmax.f32 %v2957, 0.0
    %v2966 = vmax.f32 %v2958, 0.0
    %v2967 = vmax.f32 %v2959, 0.0
    %v2968 = vmax.f32 %v2960, 0.0
    %v2969 = vmax.f32 %v2961, 0.0
    %v2970 = vmax.f32 %v2962, 0.0
    %v2971 = vmax.f32 %v2963, 0.0
    %s2972 = sld [smem:[#allocation3 + $0xbf]]
    %v2973 = vstv %s2972
    %v2974 = vmul.f32 %v2973, %v2964
    %v2975 = vmul.f32 %v2973, %v2965
    %v2976 = vmul.f32 %v2973, %v2966
    %v2977 = vmul.f32 %v2973, %v2967
    %v2978 = vmul.f32 %v2973, %v2968
    %v2979 = vmul.f32 %v2973, %v2969
    %v2980 = vmul.f32 %v2973, %v2970
    %v2981 = vmul.f32 %v2973, %v2971
    %v2982 = vadd.f32 %v2936, %v2974
    %v2983 = vadd.f32 %v2937, %v2975
    %v2984 = vadd.f32 %v2938, %v2976
    %v2985 = vadd.f32 %v2939, %v2977
    %v2986 = vadd.f32 %v2940, %v2978
    %v2987 = vadd.f32 %v2941, %v2979
    %v2988 = vadd.f32 %v2942, %v2980
    %v2989 = vadd.f32 %v2943, %v2981
    %v2990 = vstv %s34
    %v2991 = vadd.f32 %v2982, %v2990
    %v2992 = vadd.f32 %v2983, %v2990
    %v2993 = vadd.f32 %v2984, %v2990
    %v2994 = vadd.f32 %v2985, %v2990
    %v2995 = vadd.f32 %v2986, %v2990
    %v2996 = vadd.f32 %v2987, %v2990
    %v2997 = vadd.f32 %v2988, %v2990
    %v2998 = vadd.f32 %v2989, %v2990
    %s2999 = smul.addr %s35, 8
    %s3000 = scalar_lea.vmem [#allocation7], %s2999
    %3001 = vst [vmem:[%s3000] sm:$0xff] %v2991
    %3002 = vst [vmem:[%s3000 + $0x8] sm:$0xff] %v2992
    %3003 = vst [vmem:[%s3000 + $0x10] sm:$0xff] %v2993
    %3004 = vst [vmem:[%s3000 + $0x18] sm:$0xff] %v2994
    %3005 = vst [vmem:[%s3000 + $0x20] sm:$0xff] %v2995
    %3006 = vst [vmem:[%s3000 + $0x28] sm:$0xff] %v2996
    %3007 = vst [vmem:[%s3000 + $0x30] sm:$0xff] %v2997
    %3008 = vst [vmem:[%s3000 + $0x38] sm:$0xff] %v2998
    // Predicated region
    $region10: #{tpu_custom_call.1} parent=1 // pred_check
      _
    $region11: #{tpu_custom_call.1} parent=1 // pred_check_branch
      %3010 = sbr.rel (0) target = $region13
    $region12: #{tpu_custom_call.1} parent=1 // pred_region
      %3012 = vsyncadd [#allocation6], 0
      %s3013 = sshll.u32 [#allocation7], 4
      %s3014 = int_to_ptr.vmem [resolvable:$true] %s3013
      %s3015 = sshll.u32 %s2, 4
      %s3016 = int_to_ptr.hbm [resolvable:$true] %s3015
      %3021 = dma.vmem_to_hbm [thread:$0]  %s3014, 1024, %s3016, [#allocation6], 512, 512, 32
    $region13: #{tpu_custom_call.1} parent=1 // pred_fallthru
      _
    // Predicated region
    $region14: #{tpu_custom_call.1} parent=1 // pred_check
      _
    $region15: #{tpu_custom_call.1} parent=1 // pred_check_branch
      %3023 = sbr.rel (0) target = $region17
    $region16: #{tpu_custom_call.1} parent=1 // pred_region
      %3025 = dma.done [#allocation6], 1024
    $region17: #{tpu_custom_call.1} parent=1 // pred_fallthru
      _
    %3026 = vsyncpa [#allocation5], 1
    %3027 = vsyncpa [#allocation6], 1

</llo_original>
